<compile_context>
chip_gen: v6e
topology: v6e:2x2x1
jax: 0.10.0
libtpu: 0.0.40
codegen_flags: <defaults>
</compile_context>

<pallas_src>
import math

import jax
import jax.numpy as jnp
from jax.experimental import pallas as pl
from jax.experimental.pallas import tpu as pltpu

_EPS = 1e-5  # PyTorch BatchNorm2d default eps


def _conv_bn_relu(h, w_ref, g_ref, beta_ref, K, col_ref):
    """nn.Conv2d((K,1)) + training-mode nn.BatchNorm2d + ReLU on [B, H, C].

    Conv is done as im2col: the K shifted tap slices are written side-by-side in the
    lane dimension of the VMEM scratch `col_ref`, then ONE matmul per layer contracts
    the full K*Cin input against the [K*Cin, Cout] weight.  The conv bias is omitted:
    under batch-statistics BatchNorm it is cancelled exactly by the mean subtraction.
    """
    B, H, Cin = h.shape
    Ho = H - K + 1
    KC = K * Cin
    for k in range(K):  # static, unrolled: K lane-offset stores into scratch
        col_ref[:, :Ho, k * Cin:(k + 1) * Cin] = h[:, k:k + Ho, :]
    cols = col_ref[:, :Ho, :KC]                               # [B, Ho, K*Cin]
    acc = jnp.einsum('bhc,cd->bhd', cols, w_ref[...],
                     preferred_element_type=jnp.float32)      # [B, Ho, Cout]

    # BatchNorm2d in training mode: per-channel batch stats (biased variance),
    # computed in one pass; rsqrt folded into gamma, mean folded into beta.
    n = float(B * Ho)
    s1 = jnp.sum(acc, axis=(0, 1), keepdims=True)
    s2 = jnp.sum(acc * acc, axis=(0, 1), keepdims=True)
    m = s1 * (1.0 / n)
    v = s2 * (1.0 / n) - m * m
    scale = g_ref[...][None] * jax.lax.rsqrt(v + _EPS)
    shift = beta_ref[...][None] - m * scale
    return jnp.maximum(acc * scale + shift, 0.0)


def _maxpool2(h):
    """nn.MaxPool2d((2,1)) along H (floor mode)."""
    # NOTE: the strided-slice formulation (h[:, 0::2] vs h[:, 1::2]) would avoid the
    # re-tiled intermediate, but strided value slices are not a dependable Mosaic
    # lowering; the reshaped intermediate here is <2 KB.
    B, H, C = h.shape
    Ho = H // 2
    return jnp.max(h[:, :2 * Ho, :].reshape(B, Ho, 2, C), axis=2)


def manifoldnet_kernel(x_ref, w0_ref, b0_ref,
                       c1w_ref, g1_ref, be1_ref,
                       c2w_ref, g2_ref, be2_ref,
                       c3w_ref, g3_ref, be3_ref,
                       l2w_ref, l2b_ref, l3w_ref, l3b_ref,
                       out_ref, col_ref):
    # ---- front end: complex_conv1 + proj1 + SURE -------------------------------------
    # TODO(synk): shrinkage_layers.{ComplexConv2Deffangle4Dxy, ReLU4Dsp, SURE_pure4D}
    # sources are unavailable; approximated as |z| magnitude -> strided (5,1)/(5,1)
    # conv (1->20 ch) -> ReLU, with SURE as identity (labels=None => losses=None).
    # Output shape matches calc_next(128, (5,1), 5, 20) = [B, 20, 25, 1].
    x = x_ref[...]                                          # [B, 25, 5, 2] (stride-5 windows, I/Q last)
    mag = jnp.sqrt(x[..., 0] ** 2 + x[..., 1] ** 2)         # [B, 25, 5]   (sqrt -> EUP)
    h = jnp.einsum('bhk,kd->bhd', mag, w0_ref[...],
                   preferred_element_type=jnp.float32) + b0_ref[...][None]
    h = jnp.maximum(h, 0.0)                                 # proj1 + relu -> [B, 25, 20]

    # ---- regular conv stack -----------------------------------------------------------
    h = _conv_bn_relu(h, c1w_ref, g1_ref, be1_ref, 5, col_ref)   # conv_1/bn_1/relu -> [B, 21, 40]
    h = _maxpool2(h)                                             # mp_1             -> [B, 10, 40]
    h = _conv_bn_relu(h, c2w_ref, g2_ref, be2_ref, 5, col_ref)   # conv_2/bn_2/relu -> [B,  6, 60]
    h = _maxpool2(h)                                             # mp_2             -> [B,  3, 60]
    h = _conv_bn_relu(h, c3w_ref, g3_ref, be3_ref, 3, col_ref)   # conv_3/bn_3/relu -> [B,  1, 80]

    # ---- FC head ------------------------------------------------------------------------
    feat = h[:, 0, :]                                            # squeeze(-1).squeeze(-1) -> [B, 80]
    z = jnp.dot(feat, l2w_ref[...], preferred_element_type=jnp.float32) + l2b_ref[...]
    z = jnp.maximum(z, 0.0)                                      # linear_2 + relu  -> [B, 40]
    out_ref[...] = (jnp.dot(z, l3w_ref[...], preferred_element_type=jnp.float32)
                    + l3b_ref[...])                              # linear_3         -> [B, 11]


def init_params(key):
    """Deterministic PyTorch-style uniform(-1/sqrt(fan_in), 1/sqrt(fan_in)) init."""
    def u(k, shape, fan_in):
        b = 1.0 / math.sqrt(fan_in)
        return jax.random.uniform(k, shape, jnp.float32, -b, b)

    ks = jax.random.split(key, 9)
    p = {
        'w0':  u(ks[0], (5, 20), 5),
        'b0':  u(ks[1], (1, 20), 5),
        # im2col conv weights [K*Cin, Cout]; conv biases omitted (cancelled by BN).
        'c1w': u(ks[2], (5 * 20, 40), 20 * 5),
        'c2w': u(ks[3], (5 * 40, 60), 40 * 5),
        'c3w': u(ks[4], (3 * 60, 80), 60 * 3),
        'g1': jnp.ones((1, 40), jnp.float32), 'be1': jnp.zeros((1, 40), jnp.float32),
        'g2': jnp.ones((1, 60), jnp.float32), 'be2': jnp.zeros((1, 60), jnp.float32),
        'g3': jnp.ones((1, 80), jnp.float32), 'be3': jnp.zeros((1, 80), jnp.float32),
        'l2w': u(ks[5], (80, 40), 80),        'l2b': u(ks[6], (1, 40), 80),
        'l3w': u(ks[7], (40, 11), 40),        'l3b': u(ks[8], (1, 11), 40),
    }
    return p


_PARAM_ORDER = ['w0', 'b0', 'c1w', 'g1', 'be1', 'c2w', 'g2', 'be2',
                'c3w', 'g3', 'be3', 'l2w', 'l2b', 'l3w', 'l3b']


@jax.jit
def manifoldnet_forward(x, params):
    """x: [B, 1, 128, 2] float32 (batch, channel=1, signal length 128, I/Q).

    Returns (logits[B, 11], res_loss).  labels=None -> SURE losses is None ->
    res_loss = 0 (loss_weight unused).
    """
    B = x.shape[0]
    # glue: the 25 non-overlapping (5,1)-stride-(5,1) windows for the front end
    # (contiguous slice + reshape -> cheap / fusable HLO outside the kernel).
    x4 = x[:, 0, :125, :].reshape(B, 25, 5, 2)

    args = (x4,) + tuple(params[k] for k in _PARAM_ORDER)
    logits = pl.pallas_call(
        manifoldnet_kernel,
        out_shape=jax.ShapeDtypeStruct((B, 11), jnp.float32),
        in_specs=[pl.BlockSpec(memory_space=pltpu.MemorySpace.VMEM)] * len(args),
        out_specs=pl.BlockSpec(memory_space=pltpu.MemorySpace.VMEM),
        # shared im2col scratch, sized for the largest layer ([B, 21, 200] f32 ~ 34 KB)
        scratch_shapes=[pltpu.VMEM((B, 21, 200), jnp.float32)],
    )(*args)

    res_loss = jnp.float32(0.0)
    return logits, res_loss


if __name__ == "__main__":
    key = jax.random.PRNGKey(0)
    kx, kp = jax.random.split(key)
    x = jax.random.normal(kx, (2, 1, 128, 2), jnp.float32)
    params = init_params(kp)

    logits, res_loss = manifoldnet_forward(x, params)
    jax.block_until_ready(logits)

    assert logits.shape == (2, 11), logits.shape
    assert logits.dtype == jnp.float32
    print("KERNEL_OK")
</pallas_src>

<mosaic_0001>
module attributes {stable_mosaic.version = 11 : i64} {
  func.func @manifoldnet_kernel(%arg0: memref<2x25x5x2xf32, #tpu.memory_space<vmem>>, %arg1: memref<5x20xf32, #tpu.memory_space<vmem>>, %arg2: memref<1x20xf32, #tpu.memory_space<vmem>>, %arg3: memref<100x40xf32, #tpu.memory_space<vmem>>, %arg4: memref<1x40xf32, #tpu.memory_space<vmem>>, %arg5: memref<1x40xf32, #tpu.memory_space<vmem>>, %arg6: memref<200x60xf32, #tpu.memory_space<vmem>>, %arg7: memref<1x60xf32, #tpu.memory_space<vmem>>, %arg8: memref<1x60xf32, #tpu.memory_space<vmem>>, %arg9: memref<180x80xf32, #tpu.memory_space<vmem>>, %arg10: memref<1x80xf32, #tpu.memory_space<vmem>>, %arg11: memref<1x80xf32, #tpu.memory_space<vmem>>, %arg12: memref<80x40xf32, #tpu.memory_space<vmem>>, %arg13: memref<1x40xf32, #tpu.memory_space<vmem>>, %arg14: memref<40x11xf32, #tpu.memory_space<vmem>>, %arg15: memref<1x11xf32, #tpu.memory_space<vmem>>, %arg16: memref<2x11xf32, #tpu.memory_space<vmem>>, %arg17: memref<2x21x200xf32, #tpu.memory_space<vmem>>) attributes {dimension_semantics = [], scalar_prefetch = 0 : i64, scratch_operands = 1 : i64, tpu.core_type = #tpu.core_type<tc>} {
    %c0 = arith.constant 0 : index
    %c0_0 = arith.constant 0 : index
    %c0_1 = arith.constant 0 : index
    %c0_2 = arith.constant 0 : index
    %0 = vector.load %arg0[%c0, %c0_0, %c0_1, %c0_2] : memref<2x25x5x2xf32, #tpu.memory_space<vmem>>, vector<2x25x5x2xf32>
    %1 = vector.extract_strided_slice %0 {offsets = [0, 0, 0, 0], sizes = [2, 25, 5, 1], strides = [1, 1, 1, 1]} : vector<2x25x5x2xf32> to vector<2x25x5x1xf32>
    %2 = vector.shape_cast %1 : vector<2x25x5x1xf32> to vector<2x25x5xf32>
    %3 = arith.mulf %2, %2 : vector<2x25x5xf32>
    %4 = vector.extract_strided_slice %0 {offsets = [0, 0, 0, 1], sizes = [2, 25, 5, 1], strides = [1, 1, 1, 1]} : vector<2x25x5x2xf32> to vector<2x25x5x1xf32>
    %5 = vector.shape_cast %4 : vector<2x25x5x1xf32> to vector<2x25x5xf32>
    %6 = arith.mulf %5, %5 : vector<2x25x5xf32>
    %7 = arith.addf %3, %6 : vector<2x25x5xf32>
    %8 = math.sqrt %7 : vector<2x25x5xf32>
    %c0_3 = arith.constant 0 : index
    %c0_4 = arith.constant 0 : index
    %9 = vector.load %arg1[%c0_3, %c0_4] : memref<5x20xf32, #tpu.memory_space<vmem>>, vector<5x20xf32>
    "tpu.trace_start"() <{level = 10 : i32, message = "bhk,kd->bhd"}> : () -> ()
    %cst = arith.constant dense<0.000000e+00> : vector<2x25x20xf32>
    %10 = tpu.matmul %8, %9, %cst {dimension_numbers = #tpu.dot_dimension_numbers<[2], [0], [0, 1], [1], [0, 0, 0, 1, 1, 1], [], []>} : vector<2x25x5xf32>, vector<5x20xf32>, vector<2x25x20xf32> -> vector<2x25x20xf32>
    "tpu.trace_stop"() : () -> ()
    %c0_5 = arith.constant 0 : index
    %c0_6 = arith.constant 0 : index
    %11 = vector.load %arg2[%c0_5, %c0_6] : memref<1x20xf32, #tpu.memory_space<vmem>>, vector<1x20xf32>
    %12 = vector.shape_cast %11 : vector<1x20xf32> to vector<1x1x20xf32>
    %13 = vector.broadcast %12 : vector<1x1x20xf32> to vector<2x25x20xf32>
    %14 = arith.addf %10, %13 : vector<2x25x20xf32>
    %cst_7 = arith.constant 0.000000e+00 : f32
    %15 = vector.broadcast %cst_7 : f32 to vector<2x25x20xf32>
    %16 = arith.maximumf %14, %15 : vector<2x25x20xf32>
    %17 = vector.extract_strided_slice %16 {offsets = [0, 0, 0], sizes = [2, 21, 20], strides = [1, 1, 1]} : vector<2x25x20xf32> to vector<2x21x20xf32>
    %c0_8 = arith.constant 0 : index
    %c0_9 = arith.constant 0 : index
    %c0_10 = arith.constant 0 : index
    %18 = vector.load %arg17[%c0_8, %c0_9, %c0_10] : memref<2x21x200xf32, #tpu.memory_space<vmem>>, vector<2x21x20xf32>
    tpu.vector_store %arg17[%c0_8, %c0_9, %c0_10], %17 {strides = array<i32>} : memref<2x21x200xf32, #tpu.memory_space<vmem>>, vector<2x21x20xf32>,
    %19 = vector.extract_strided_slice %16 {offsets = [0, 1, 0], sizes = [2, 21, 20], strides = [1, 1, 1]} : vector<2x25x20xf32> to vector<2x21x20xf32>
    %c0_11 = arith.constant 0 : index
    %c0_12 = arith.constant 0 : index
    %c20 = arith.constant 20 : index
    %20 = vector.load %arg17[%c0_11, %c0_12, %c20] : memref<2x21x200xf32, #tpu.memory_space<vmem>>, vector<2x21x20xf32>
    tpu.vector_store %arg17[%c0_11, %c0_12, %c20], %19 {strides = array<i32>} : memref<2x21x200xf32, #tpu.memory_space<vmem>>, vector<2x21x20xf32>,
    %21 = vector.extract_strided_slice %16 {offsets = [0, 2, 0], sizes = [2, 21, 20], strides = [1, 1, 1]} : vector<2x25x20xf32> to vector<2x21x20xf32>
    %c0_13 = arith.constant 0 : index
    %c0_14 = arith.constant 0 : index
    %c40 = arith.constant 40 : index
    %22 = vector.load %arg17[%c0_13, %c0_14, %c40] : memref<2x21x200xf32, #tpu.memory_space<vmem>>, vector<2x21x20xf32>
    tpu.vector_store %arg17[%c0_13, %c0_14, %c40], %21 {strides = array<i32>} : memref<2x21x200xf32, #tpu.memory_space<vmem>>, vector<2x21x20xf32>,
    %23 = vector.extract_strided_slice %16 {offsets = [0, 3, 0], sizes = [2, 21, 20], strides = [1, 1, 1]} : vector<2x25x20xf32> to vector<2x21x20xf32>
    %c0_15 = arith.constant 0 : index
    %c0_16 = arith.constant 0 : index
    %c60 = arith.constant 60 : index
    %24 = vector.load %arg17[%c0_15, %c0_16, %c60] : memref<2x21x200xf32, #tpu.memory_space<vmem>>, vector<2x21x20xf32>
    tpu.vector_store %arg17[%c0_15, %c0_16, %c60], %23 {strides = array<i32>} : memref<2x21x200xf32, #tpu.memory_space<vmem>>, vector<2x21x20xf32>,
    %25 = vector.extract_strided_slice %16 {offsets = [0, 4, 0], sizes = [2, 21, 20], strides = [1, 1, 1]} : vector<2x25x20xf32> to vector<2x21x20xf32>
    %c0_17 = arith.constant 0 : index
    %c0_18 = arith.constant 0 : index
    %c80 = arith.constant 80 : index
    %26 = vector.load %arg17[%c0_17, %c0_18, %c80] : memref<2x21x200xf32, #tpu.memory_space<vmem>>, vector<2x21x20xf32>
    tpu.vector_store %arg17[%c0_17, %c0_18, %c80], %25 {strides = array<i32>} : memref<2x21x200xf32, #tpu.memory_space<vmem>>, vector<2x21x20xf32>,
    %c0_19 = arith.constant 0 : index
    %c0_20 = arith.constant 0 : index
    %c0_21 = arith.constant 0 : index
    %27 = vector.load %arg17[%c0_19, %c0_20, %c0_21] : memref<2x21x200xf32, #tpu.memory_space<vmem>>, vector<2x21x100xf32>
    %c0_22 = arith.constant 0 : index
    %c0_23 = arith.constant 0 : index
    %28 = vector.load %arg3[%c0_22, %c0_23] : memref<100x40xf32, #tpu.memory_space<vmem>>, vector<100x40xf32>
    "tpu.trace_start"() <{level = 10 : i32, message = "bhc,cd->bhd"}> : () -> ()
    %cst_24 = arith.constant dense<0.000000e+00> : vector<2x21x40xf32>
    %29 = tpu.matmul %27, %28, %cst_24 {dimension_numbers = #tpu.dot_dimension_numbers<[2], [0], [0, 1], [1], [0, 0, 0, 1, 1, 1], [], []>} : vector<2x21x100xf32>, vector<100x40xf32>, vector<2x21x40xf32> -> vector<2x21x40xf32>
    "tpu.trace_stop"() : () -> ()
    %cst_25 = arith.constant dense<0.000000e+00> : vector<40xf32>
    %30 = vector.multi_reduction <add>, %29, %cst_25 [0, 1] : vector<2x21x40xf32> to vector<40xf32>
    %31 = vector.shape_cast %30 : vector<40xf32> to vector<1x1x40xf32>
    %32 = arith.mulf %29, %29 : vector<2x21x40xf32>
    %cst_26 = arith.constant dense<0.000000e+00> : vector<40xf32>
    %33 = vector.multi_reduction <add>, %32, %cst_26 [0, 1] : vector<2x21x40xf32> to vector<40xf32>
    %34 = vector.shape_cast %33 : vector<40xf32> to vector<1x1x40xf32>
    %cst_27 = arith.constant 0.0238095243 : f32
    %35 = vector.broadcast %cst_27 : f32 to vector<1x1x40xf32>
    %36 = arith.mulf %31, %35 : vector<1x1x40xf32>
    %cst_28 = arith.constant 0.0238095243 : f32
    %37 = vector.broadcast %cst_28 : f32 to vector<1x1x40xf32>
    %38 = arith.mulf %34, %37 : vector<1x1x40xf32>
    %39 = arith.mulf %36, %36 : vector<1x1x40xf32>
    %40 = arith.subf %38, %39 : vector<1x1x40xf32>
    %c0_29 = arith.constant 0 : index
    %c0_30 = arith.constant 0 : index
    %41 = vector.load %arg4[%c0_29, %c0_30] : memref<1x40xf32, #tpu.memory_space<vmem>>, vector<1x40xf32>
    %42 = vector.shape_cast %41 : vector<1x40xf32> to vector<1x1x40xf32>
    %cst_31 = arith.constant 9.99999974E-6 : f32
    %43 = vector.broadcast %cst_31 : f32 to vector<1x1x40xf32>
    %44 = arith.addf %40, %43 : vector<1x1x40xf32>
    %45 = math.rsqrt %44 : vector<1x1x40xf32>
    %46 = arith.mulf %42, %45 : vector<1x1x40xf32>
    %c0_32 = arith.constant 0 : index
    %c0_33 = arith.constant 0 : index
    %47 = vector.load %arg5[%c0_32, %c0_33] : memref<1x40xf32, #tpu.memory_space<vmem>>, vector<1x40xf32>
    %48 = vector.shape_cast %47 : vector<1x40xf32> to vector<1x1x40xf32>
    %49 = arith.mulf %36, %46 : vector<1x1x40xf32>
    %50 = arith.subf %48, %49 : vector<1x1x40xf32>
    %51 = vector.broadcast %46 : vector<1x1x40xf32> to vector<2x21x40xf32>
    %52 = arith.mulf %29, %51 : vector<2x21x40xf32>
    %53 = vector.broadcast %50 : vector<1x1x40xf32> to vector<2x21x40xf32>
    %54 = arith.addf %52, %53 : vector<2x21x40xf32>
    %cst_34 = arith.constant 0.000000e+00 : f32
    %55 = vector.broadcast %cst_34 : f32 to vector<2x21x40xf32>
    %56 = arith.maximumf %54, %55 : vector<2x21x40xf32>
    %57 = vector.extract_strided_slice %56 {offsets = [0, 0, 0], sizes = [2, 20, 40], strides = [1, 1, 1]} : vector<2x21x40xf32> to vector<2x20x40xf32>
    %58 = vector.shape_cast %57 : vector<2x20x40xf32> to vector<2x10x2x40xf32>
    %cst_35 = arith.constant dense<0xFF800000> : vector<2x10x40xf32>
    %59 = vector.multi_reduction <maximumf>, %58, %cst_35 [2] : vector<2x10x2x40xf32> to vector<2x10x40xf32>
    %60 = vector.extract_strided_slice %59 {offsets = [0, 0, 0], sizes = [2, 6, 40], strides = [1, 1, 1]} : vector<2x10x40xf32> to vector<2x6x40xf32>
    %c0_36 = arith.constant 0 : index
    %c0_37 = arith.constant 0 : index
    %c0_38 = arith.constant 0 : index
    %61 = vector.load %arg17[%c0_36, %c0_37, %c0_38] : memref<2x21x200xf32, #tpu.memory_space<vmem>>, vector<2x6x40xf32>
    tpu.vector_store %arg17[%c0_36, %c0_37, %c0_38], %60 {strides = array<i32>} : memref<2x21x200xf32, #tpu.memory_space<vmem>>, vector<2x6x40xf32>,
    %62 = vector.extract_strided_slice %59 {offsets = [0, 1, 0], sizes = [2, 6, 40], strides = [1, 1, 1]} : vector<2x10x40xf32> to vector<2x6x40xf32>
    %c0_39 = arith.constant 0 : index
    %c0_40 = arith.constant 0 : index
    %c40_41 = arith.constant 40 : index
    %63 = vector.load %arg17[%c0_39, %c0_40, %c40_41] : memref<2x21x200xf32, #tpu.memory_space<vmem>>, vector<2x6x40xf32>
    tpu.vector_store %arg17[%c0_39, %c0_40, %c40_41], %62 {strides = array<i32>} : memref<2x21x200xf32, #tpu.memory_space<vmem>>, vector<2x6x40xf32>,
    %64 = vector.extract_strided_slice %59 {offsets = [0, 2, 0], sizes = [2, 6, 40], strides = [1, 1, 1]} : vector<2x10x40xf32> to vector<2x6x40xf32>
    %c0_42 = arith.constant 0 : index
    %c0_43 = arith.constant 0 : index
    %c80_44 = arith.constant 80 : index
    %65 = vector.load %arg17[%c0_42, %c0_43, %c80_44] : memref<2x21x200xf32, #tpu.memory_space<vmem>>, vector<2x6x40xf32>
    tpu.vector_store %arg17[%c0_42, %c0_43, %c80_44], %64 {strides = array<i32>} : memref<2x21x200xf32, #tpu.memory_space<vmem>>, vector<2x6x40xf32>,
    %66 = vector.extract_strided_slice %59 {offsets = [0, 3, 0], sizes = [2, 6, 40], strides = [1, 1, 1]} : vector<2x10x40xf32> to vector<2x6x40xf32>
    %c0_45 = arith.constant 0 : index
    %c0_46 = arith.constant 0 : index
    %c120 = arith.constant 120 : index
    %67 = vector.load %arg17[%c0_45, %c0_46, %c120] : memref<2x21x200xf32, #tpu.memory_space<vmem>>, vector<2x6x40xf32>
    tpu.vector_store %arg17[%c0_45, %c0_46, %c120], %66 {strides = array<i32>} : memref<2x21x200xf32, #tpu.memory_space<vmem>>, vector<2x6x40xf32>,
    %68 = vector.extract_strided_slice %59 {offsets = [0, 4, 0], sizes = [2, 6, 40], strides = [1, 1, 1]} : vector<2x10x40xf32> to vector<2x6x40xf32>
    %c0_47 = arith.constant 0 : index
    %c0_48 = arith.constant 0 : index
    %c160 = arith.constant 160 : index
    %69 = vector.load %arg17[%c0_47, %c0_48, %c160] : memref<2x21x200xf32, #tpu.memory_space<vmem>>, vector<2x6x40xf32>
    tpu.vector_store %arg17[%c0_47, %c0_48, %c160], %68 {strides = array<i32>} : memref<2x21x200xf32, #tpu.memory_space<vmem>>, vector<2x6x40xf32>,
    %c0_49 = arith.constant 0 : index
    %c0_50 = arith.constant 0 : index
    %c0_51 = arith.constant 0 : index
    %70 = vector.load %arg17[%c0_49, %c0_50, %c0_51] : memref<2x21x200xf32, #tpu.memory_space<vmem>>, vector<2x6x200xf32>
    %c0_52 = arith.constant 0 : index
    %c0_53 = arith.constant 0 : index
    %71 = vector.load %arg6[%c0_52, %c0_53] : memref<200x60xf32, #tpu.memory_space<vmem>>, vector<200x60xf32>
    "tpu.trace_start"() <{level = 10 : i32, message = "bhc,cd->bhd"}> : () -> ()
    %cst_54 = arith.constant dense<0.000000e+00> : vector<2x6x60xf32>
    %72 = tpu.matmul %70, %71, %cst_54 {dimension_numbers = #tpu.dot_dimension_numbers<[2], [0], [0, 1], [1], [0, 0, 0, 1, 1, 1], [], []>} : vector<2x6x200xf32>, vector<200x60xf32>, vector<2x6x60xf32> -> vector<2x6x60xf32>
    "tpu.trace_stop"() : () -> ()
    %cst_55 = arith.constant dense<0.000000e+00> : vector<60xf32>
    %73 = vector.multi_reduction <add>, %72, %cst_55 [0, 1] : vector<2x6x60xf32> to vector<60xf32>
    %74 = vector.shape_cast %73 : vector<60xf32> to vector<1x1x60xf32>
    %75 = arith.mulf %72, %72 : vector<2x6x60xf32>
    %cst_56 = arith.constant dense<0.000000e+00> : vector<60xf32>
    %76 = vector.multi_reduction <add>, %75, %cst_56 [0, 1] : vector<2x6x60xf32> to vector<60xf32>
    %77 = vector.shape_cast %76 : vector<60xf32> to vector<1x1x60xf32>
    %cst_57 = arith.constant 0.0833333358 : f32
    %78 = vector.broadcast %cst_57 : f32 to vector<1x1x60xf32>
    %79 = arith.mulf %74, %78 : vector<1x1x60xf32>
    %cst_58 = arith.constant 0.0833333358 : f32
    %80 = vector.broadcast %cst_58 : f32 to vector<1x1x60xf32>
    %81 = arith.mulf %77, %80 : vector<1x1x60xf32>
    %82 = arith.mulf %79, %79 : vector<1x1x60xf32>
    %83 = arith.subf %81, %82 : vector<1x1x60xf32>
    %c0_59 = arith.constant 0 : index
    %c0_60 = arith.constant 0 : index
    %84 = vector.load %arg7[%c0_59, %c0_60] : memref<1x60xf32, #tpu.memory_space<vmem>>, vector<1x60xf32>
    %85 = vector.shape_cast %84 : vector<1x60xf32> to vector<1x1x60xf32>
    %cst_61 = arith.constant 9.99999974E-6 : f32
    %86 = vector.broadcast %cst_61 : f32 to vector<1x1x60xf32>
    %87 = arith.addf %83, %86 : vector<1x1x60xf32>
    %88 = math.rsqrt %87 : vector<1x1x60xf32>
    %89 = arith.mulf %85, %88 : vector<1x1x60xf32>
    %c0_62 = arith.constant 0 : index
    %c0_63 = arith.constant 0 : index
    %90 = vector.load %arg8[%c0_62, %c0_63] : memref<1x60xf32, #tpu.memory_space<vmem>>, vector<1x60xf32>
    %91 = vector.shape_cast %90 : vector<1x60xf32> to vector<1x1x60xf32>
    %92 = arith.mulf %79, %89 : vector<1x1x60xf32>
    %93 = arith.subf %91, %92 : vector<1x1x60xf32>
    %94 = vector.broadcast %89 : vector<1x1x60xf32> to vector<2x6x60xf32>
    %95 = arith.mulf %72, %94 : vector<2x6x60xf32>
    %96 = vector.broadcast %93 : vector<1x1x60xf32> to vector<2x6x60xf32>
    %97 = arith.addf %95, %96 : vector<2x6x60xf32>
    %cst_64 = arith.constant 0.000000e+00 : f32
    %98 = vector.broadcast %cst_64 : f32 to vector<2x6x60xf32>
    %99 = arith.maximumf %97, %98 : vector<2x6x60xf32>
    %100 = vector.shape_cast %99 : vector<2x6x60xf32> to vector<2x3x2x60xf32>
    %cst_65 = arith.constant dense<0xFF800000> : vector<2x3x60xf32>
    %101 = vector.multi_reduction <maximumf>, %100, %cst_65 [2] : vector<2x3x2x60xf32> to vector<2x3x60xf32>
    %102 = vector.extract_strided_slice %101 {offsets = [0, 0, 0], sizes = [2, 1, 60], strides = [1, 1, 1]} : vector<2x3x60xf32> to vector<2x1x60xf32>
    %c0_66 = arith.constant 0 : index
    %c0_67 = arith.constant 0 : index
    %c0_68 = arith.constant 0 : index
    %103 = vector.load %arg17[%c0_66, %c0_67, %c0_68] : memref<2x21x200xf32, #tpu.memory_space<vmem>>, vector<2x1x60xf32>
    tpu.vector_store %arg17[%c0_66, %c0_67, %c0_68], %102 {strides = array<i32>} : memref<2x21x200xf32, #tpu.memory_space<vmem>>, vector<2x1x60xf32>,
    %104 = vector.extract_strided_slice %101 {offsets = [0, 1, 0], sizes = [2, 1, 60], strides = [1, 1, 1]} : vector<2x3x60xf32> to vector<2x1x60xf32>
    %c0_69 = arith.constant 0 : index
    %c0_70 = arith.constant 0 : index
    %c60_71 = arith.constant 60 : index
    %105 = vector.load %arg17[%c0_69, %c0_70, %c60_71] : memref<2x21x200xf32, #tpu.memory_space<vmem>>, vector<2x1x60xf32>
    tpu.vector_store %arg17[%c0_69, %c0_70, %c60_71], %104 {strides = array<i32>} : memref<2x21x200xf32, #tpu.memory_space<vmem>>, vector<2x1x60xf32>,
    %106 = vector.extract_strided_slice %101 {offsets = [0, 2, 0], sizes = [2, 1, 60], strides = [1, 1, 1]} : vector<2x3x60xf32> to vector<2x1x60xf32>
    %c0_72 = arith.constant 0 : index
    %c0_73 = arith.constant 0 : index
    %c120_74 = arith.constant 120 : index
    %107 = vector.load %arg17[%c0_72, %c0_73, %c120_74] : memref<2x21x200xf32, #tpu.memory_space<vmem>>, vector<2x1x60xf32>
    tpu.vector_store %arg17[%c0_72, %c0_73, %c120_74], %106 {strides = array<i32>} : memref<2x21x200xf32, #tpu.memory_space<vmem>>, vector<2x1x60xf32>,
    %c0_75 = arith.constant 0 : index
    %c0_76 = arith.constant 0 : index
    %c0_77 = arith.constant 0 : index
    %108 = vector.load %arg17[%c0_75, %c0_76, %c0_77] : memref<2x21x200xf32, #tpu.memory_space<vmem>>, vector<2x1x180xf32>
    %c0_78 = arith.constant 0 : index
    %c0_79 = arith.constant 0 : index
    %109 = vector.load %arg9[%c0_78, %c0_79] : memref<180x80xf32, #tpu.memory_space<vmem>>, vector<180x80xf32>
    "tpu.trace_start"() <{level = 10 : i32, message = "bhc,cd->bhd"}> : () -> ()
    %cst_80 = arith.constant dense<0.000000e+00> : vector<2x1x80xf32>
    %110 = tpu.matmul %108, %109, %cst_80 {dimension_numbers = #tpu.dot_dimension_numbers<[2], [0], [0, 1], [1], [0, 0, 0, 1, 1, 1], [], []>} : vector<2x1x180xf32>, vector<180x80xf32>, vector<2x1x80xf32> -> vector<2x1x80xf32>
    "tpu.trace_stop"() : () -> ()
    %cst_81 = arith.constant dense<0.000000e+00> : vector<80xf32>
    %111 = vector.multi_reduction <add>, %110, %cst_81 [0, 1] : vector<2x1x80xf32> to vector<80xf32>
    %112 = vector.shape_cast %111 : vector<80xf32> to vector<1x1x80xf32>
    %113 = arith.mulf %110, %110 : vector<2x1x80xf32>
    %cst_82 = arith.constant dense<0.000000e+00> : vector<80xf32>
    %114 = vector.multi_reduction <add>, %113, %cst_82 [0, 1] : vector<2x1x80xf32> to vector<80xf32>
    %115 = vector.shape_cast %114 : vector<80xf32> to vector<1x1x80xf32>
    %cst_83 = arith.constant 5.000000e-01 : f32
    %116 = vector.broadcast %cst_83 : f32 to vector<1x1x80xf32>
    %117 = arith.mulf %112, %116 : vector<1x1x80xf32>
    %cst_84 = arith.constant 5.000000e-01 : f32
    %118 = vector.broadcast %cst_84 : f32 to vector<1x1x80xf32>
    %119 = arith.mulf %115, %118 : vector<1x1x80xf32>
    %120 = arith.mulf %117, %117 : vector<1x1x80xf32>
    %121 = arith.subf %119, %120 : vector<1x1x80xf32>
    %c0_85 = arith.constant 0 : index
    %c0_86 = arith.constant 0 : index
    %122 = vector.load %arg10[%c0_85, %c0_86] : memref<1x80xf32, #tpu.memory_space<vmem>>, vector<1x80xf32>
    %123 = vector.shape_cast %122 : vector<1x80xf32> to vector<1x1x80xf32>
    %cst_87 = arith.constant 9.99999974E-6 : f32
    %124 = vector.broadcast %cst_87 : f32 to vector<1x1x80xf32>
    %125 = arith.addf %121, %124 : vector<1x1x80xf32>
    %126 = math.rsqrt %125 : vector<1x1x80xf32>
    %127 = arith.mulf %123, %126 : vector<1x1x80xf32>
    %c0_88 = arith.constant 0 : index
    %c0_89 = arith.constant 0 : index
    %128 = vector.load %arg11[%c0_88, %c0_89] : memref<1x80xf32, #tpu.memory_space<vmem>>, vector<1x80xf32>
    %129 = vector.shape_cast %128 : vector<1x80xf32> to vector<1x1x80xf32>
    %130 = arith.mulf %117, %127 : vector<1x1x80xf32>
    %131 = arith.subf %129, %130 : vector<1x1x80xf32>
    %132 = vector.broadcast %127 : vector<1x1x80xf32> to vector<2x1x80xf32>
    %133 = arith.mulf %110, %132 : vector<2x1x80xf32>
    %134 = vector.broadcast %131 : vector<1x1x80xf32> to vector<2x1x80xf32>
    %135 = arith.addf %133, %134 : vector<2x1x80xf32>
    %cst_90 = arith.constant 0.000000e+00 : f32
    %136 = vector.broadcast %cst_90 : f32 to vector<2x1x80xf32>
    %137 = arith.maximumf %135, %136 : vector<2x1x80xf32>
    %138 = vector.shape_cast %137 : vector<2x1x80xf32> to vector<2x80xf32>
    %c0_91 = arith.constant 0 : index
    %c0_92 = arith.constant 0 : index
    %139 = vector.load %arg12[%c0_91, %c0_92] : memref<80x40xf32, #tpu.memory_space<vmem>>, vector<80x40xf32>
    %cst_93 = arith.constant dense<0.000000e+00> : vector<2x40xf32>
    %140 = tpu.matmul %138, %139, %cst_93 {dimension_numbers = #tpu.dot_dimension_numbers<[1], [0], [0], [1], [0, 0, 1, 1], [], []>} : vector<2x80xf32>, vector<80x40xf32>, vector<2x40xf32> -> vector<2x40xf32>
    %c0_94 = arith.constant 0 : index
    %c0_95 = arith.constant 0 : index
    %141 = vector.load %arg13[%c0_94, %c0_95] : memref<1x40xf32, #tpu.memory_space<vmem>>, vector<1x40xf32>
    %142 = vector.broadcast %141 : vector<1x40xf32> to vector<2x40xf32>
    %143 = arith.addf %140, %142 : vector<2x40xf32>
    %cst_96 = arith.constant 0.000000e+00 : f32
    %144 = vector.broadcast %cst_96 : f32 to vector<2x40xf32>
    %145 = arith.maximumf %143, %144 : vector<2x40xf32>
    %c0_97 = arith.constant 0 : index
    %c0_98 = arith.constant 0 : index
    %146 = vector.load %arg14[%c0_97, %c0_98] : memref<40x11xf32, #tpu.memory_space<vmem>>, vector<40x11xf32>
    %cst_99 = arith.constant dense<0.000000e+00> : vector<2x11xf32>
    %147 = tpu.matmul %145, %146, %cst_99 {dimension_numbers = #tpu.dot_dimension_numbers<[1], [0], [0], [1], [0, 0, 1, 1], [], []>} : vector<2x40xf32>, vector<40x11xf32>, vector<2x11xf32> -> vector<2x11xf32>
    %c0_100 = arith.constant 0 : index
    %c0_101 = arith.constant 0 : index
    %148 = vector.load %arg15[%c0_100, %c0_101] : memref<1x11xf32, #tpu.memory_space<vmem>>, vector<1x11xf32>
    %149 = vector.broadcast %148 : vector<1x11xf32> to vector<2x11xf32>
    %150 = arith.addf %147, %149 : vector<2x11xf32>
    %c0_102 = arith.constant 0 : index
    %c0_103 = arith.constant 0 : index
    %151 = vector.load %arg16[%c0_102, %c0_103] : memref<2x11xf32, #tpu.memory_space<vmem>>, vector<2x11xf32>
    tpu.vector_store %arg16[%c0_102, %c0_103], %150 {strides = array<i32>} : memref<2x11xf32, #tpu.memory_space<vmem>>, vector<2x11xf32>,
    return
  }
}

</mosaic_0001>

<llo_original>
// kernel: squeeze.1
$region0: #{squeeze.1}
  %s0 = inlined_call_operand.vmem [shape: f32[2,1,125,2], index: 0, kind: input, shape index: {}]
  %s1 = inlined_call_operand.vmem [shape: f32[2,25,5,2], index: 1, kind: output, shape index: {}]
  $region1: #{squeeze.1} parent=0
    #allocation0 [shape = 'u8[8192]{0}', space=vmem, size = 0x2000, scoped, tag = 'scoped mem for input reshape']
    %s3 = sshll.u32 1, 2
    %s4 = ssub.s32 %s3, 1
    %s5 = scalar_lea.vmem %s0, 2
    %v6 = vld [vmem:[%s5] sm:%s4]
    %s7 = scalar_lea.vmem [#allocation0], 8
    %8 = vst [vmem:[%s7] sm:%s4] %v6
    %v9 = vld [vmem:[%s0] sm:%s4]
    %10 = vst [vmem:[#allocation0] sm:%s4] %v9
    %v11 = vld [vmem:[#allocation0] sm:$0x3]
    %vm12 = vcmask 39936
    %13 = vst.msk [vmem:[%s1] sm:$0x1] %vm12, %v11
    %s14 = scalar_lea.vmem %s1, 31
    %15 = vst.msk [vmem:[%s14] sm:$0x2] %vm12, %v11
    %s16 = scalar_lea.vmem [#allocation0], 8
    %v17 = vld [vmem:[%s16] sm:$0x3]
    %vm18 = vcmask 39936
    %s19 = scalar_lea.vmem %s1, 64
    %20 = vst.msk [vmem:[%s19] sm:$0x1] %vm18, %v17
    %s21 = scalar_lea.vmem %s1, 95
    %22 = vst.msk [vmem:[%s21] sm:$0x2] %vm18, %v17
    %v23 = vld.sshfl [vmem:[#allocation0] sm:$0xff pattern:$0x99999810]
    %24 = vrot.lane.b32.xlu0 %v23, 123
    %v25 = vpop.permute.xlu0 %24
    %vm26 = vcmask 39936
    %s27 = scalar_lea.vmem %s1, 1
    %28 = vst.msk [vmem:[%s27] sm:$0x1] %vm26, %v25
    %s29 = scalar_lea.vmem %s1, 32
    %30 = vst.msk [vmem:[%s29] sm:$0x2] %vm26, %v25
    %s31 = scalar_lea.vmem %s1, 63
    %32 = vst.msk [vmem:[%s31] sm:$0x4] %vm26, %v25
    %s33 = scalar_lea.vmem %s1, 94
    %34 = vst.msk [vmem:[%s33] sm:$0x8] %vm26, %v25
    %v35 = vld.sshfl [vmem:[#allocation0] sm:$0xff pattern:$0x99999810]
    %36 = vrot.lane.b32.xlu0 %v35, 118
    %v37 = vpop.permute.xlu0 %36
    %vm38 = vcmask 39936
    %s39 = scalar_lea.vmem %s1, 2
    %40 = vst.msk [vmem:[%s39] sm:$0x1] %vm38, %v37
    %s41 = scalar_lea.vmem %s1, 33
    %42 = vst.msk [vmem:[%s41] sm:$0x2] %vm38, %v37
    %s43 = scalar_lea.vmem %s1, 64
    %44 = vst.msk [vmem:[%s43] sm:$0x4] %vm38, %v37
    %s45 = scalar_lea.vmem %s1, 95
    %46 = vst.msk [vmem:[%s45] sm:$0x8] %vm38, %v37
    %v47 = vld.sshfl [vmem:[#allocation0] sm:$0xff pattern:$0x99999810]
    %48 = vrot.lane.b32.xlu0 %v47, 113
    %v49 = vpop.permute.xlu0 %48
    %vm50 = vcmask 39936
    %s51 = scalar_lea.vmem %s1, 3
    %52 = vst.msk [vmem:[%s51] sm:$0x1] %vm50, %v49
    %s53 = scalar_lea.vmem %s1, 34
    %54 = vst.msk [vmem:[%s53] sm:$0x2] %vm50, %v49
    %s55 = scalar_lea.vmem %s1, 65
    %56 = vst.msk [vmem:[%s55] sm:$0x4] %vm50, %v49
    %s57 = scalar_lea.vmem %s1, 96
    %58 = vst.msk [vmem:[%s57] sm:$0x8] %vm50, %v49
    %v59 = vld.sshfl [vmem:[#allocation0] sm:$0xff pattern:$0x99999810]
    %60 = vrot.lane.b32.xlu0 %v59, 108
    %v61 = vpop.permute.xlu0 %60
    %vm62 = vcmask 39936
    %s63 = scalar_lea.vmem %s1, 4
    %64 = vst.msk [vmem:[%s63] sm:$0x1] %vm62, %v61
    %s65 = scalar_lea.vmem %s1, 35
    %66 = vst.msk [vmem:[%s65] sm:$0x2] %vm62, %v61
    %s67 = scalar_lea.vmem %s1, 66
    %68 = vst.msk [vmem:[%s67] sm:$0x4] %vm62, %v61
    %s69 = scalar_lea.vmem %s1, 97
    %70 = vst.msk [vmem:[%s69] sm:$0x8] %vm62, %v61
    %v71 = vld.sshfl [vmem:[#allocation0] sm:$0xff pattern:$0x99999810]
    %72 = vrot.lane.b32.xlu0 %v71, 103
    %v73 = vpop.permute.xlu0 %72
    %vm74 = vcmask 39936
    %s75 = scalar_lea.vmem %s1, 5
    %76 = vst.msk [vmem:[%s75] sm:$0x1] %vm74, %v73
    %s77 = scalar_lea.vmem %s1, 36
    %78 = vst.msk [vmem:[%s77] sm:$0x2] %vm74, %v73
    %s79 = scalar_lea.vmem %s1, 67
    %80 = vst.msk [vmem:[%s79] sm:$0x4] %vm74, %v73
    %s81 = scalar_lea.vmem %s1, 98
    %82 = vst.msk [vmem:[%s81] sm:$0x8] %vm74, %v73
    %v83 = vld.sshfl [vmem:[#allocation0] sm:$0xff pattern:$0x99999810]
    %84 = vrot.lane.b32.xlu0 %v83, 98
    %v85 = vpop.permute.xlu0 %84
    %vm86 = vcmask 39936
    %s87 = scalar_lea.vmem %s1, 6
    %88 = vst.msk [vmem:[%s87] sm:$0x1] %vm86, %v85
    %s89 = scalar_lea.vmem %s1, 37
    %90 = vst.msk [vmem:[%s89] sm:$0x2] %vm86, %v85
    %s91 = scalar_lea.vmem %s1, 68
    %92 = vst.msk [vmem:[%s91] sm:$0x4] %vm86, %v85
    %s93 = scalar_lea.vmem %s1, 99
    %94 = vst.msk [vmem:[%s93] sm:$0x8] %vm86, %v85
    %v95 = vld.sshfl [vmem:[#allocation0] sm:$0xff pattern:$0x99999810]
    %96 = vrot.lane.b32.xlu0 %v95, 93
    %v97 = vpop.permute.xlu0 %96
    %vm98 = vcmask 39936
    %s99 = scalar_lea.vmem %s1, 7
    %100 = vst.msk [vmem:[%s99] sm:$0x1] %vm98, %v97
    %s101 = scalar_lea.vmem %s1, 38
    %102 = vst.msk [vmem:[%s101] sm:$0x2] %vm98, %v97
    %s103 = scalar_lea.vmem %s1, 69
    %104 = vst.msk [vmem:[%s103] sm:$0x4] %vm98, %v97
    %s105 = scalar_lea.vmem %s1, 100
    %106 = vst.msk [vmem:[%s105] sm:$0x8] %vm98, %v97
    %v107 = vld.sshfl [vmem:[#allocation0] sm:$0xff pattern:$0x99999810]
    %108 = vrot.lane.b32.xlu0 %v107, 88
    %v109 = vpop.permute.xlu0 %108
    %vm110 = vcmask 39936
    %s111 = scalar_lea.vmem %s1, 8
    %112 = vst.msk [vmem:[%s111] sm:$0x1] %vm110, %v109
    %s113 = scalar_lea.vmem %s1, 39
    %114 = vst.msk [vmem:[%s113] sm:$0x2] %vm110, %v109
    %s115 = scalar_lea.vmem %s1, 70
    %116 = vst.msk [vmem:[%s115] sm:$0x4] %vm110, %v109
    %s117 = scalar_lea.vmem %s1, 101
    %118 = vst.msk [vmem:[%s117] sm:$0x8] %vm110, %v109
    %v119 = vld.sshfl [vmem:[#allocation0] sm:$0xff pattern:$0x99999810]
    %120 = vrot.lane.b32.xlu0 %v119, 83
    %v121 = vpop.permute.xlu0 %120
    %vm122 = vcmask 39936
    %s123 = scalar_lea.vmem %s1, 9
    %124 = vst.msk [vmem:[%s123] sm:$0x1] %vm122, %v121
    %s125 = scalar_lea.vmem %s1, 40
    %126 = vst.msk [vmem:[%s125] sm:$0x2] %vm122, %v121
    %s127 = scalar_lea.vmem %s1, 71
    %128 = vst.msk [vmem:[%s127] sm:$0x4] %vm122, %v121
    %s129 = scalar_lea.vmem %s1, 102
    %130 = vst.msk [vmem:[%s129] sm:$0x8] %vm122, %v121
    %v131 = vld.sshfl [vmem:[#allocation0] sm:$0xff pattern:$0x99999810]
    %132 = vrot.lane.b32.xlu0 %v131, 78
    %v133 = vpop.permute.xlu0 %132
    %vm134 = vcmask 39936
    %s135 = scalar_lea.vmem %s1, 10
    %136 = vst.msk [vmem:[%s135] sm:$0x1] %vm134, %v133
    %s137 = scalar_lea.vmem %s1, 41
    %138 = vst.msk [vmem:[%s137] sm:$0x2] %vm134, %v133
    %s139 = scalar_lea.vmem %s1, 72
    %140 = vst.msk [vmem:[%s139] sm:$0x4] %vm134, %v133
    %s141 = scalar_lea.vmem %s1, 103
    %142 = vst.msk [vmem:[%s141] sm:$0x8] %vm134, %v133
    %v143 = vld.sshfl [vmem:[#allocation0] sm:$0xff pattern:$0x99999810]
    %144 = vrot.lane.b32.xlu0 %v143, 73
    %v145 = vpop.permute.xlu0 %144
    %vm146 = vcmask 39936
    %s147 = scalar_lea.vmem %s1, 11
    %148 = vst.msk [vmem:[%s147] sm:$0x1] %vm146, %v145
    %s149 = scalar_lea.vmem %s1, 42
    %150 = vst.msk [vmem:[%s149] sm:$0x2] %vm146, %v145
    %s151 = scalar_lea.vmem %s1, 73
    %152 = vst.msk [vmem:[%s151] sm:$0x4] %vm146, %v145
    %s153 = scalar_lea.vmem %s1, 104
    %154 = vst.msk [vmem:[%s153] sm:$0x8] %vm146, %v145
    %v155 = vld.sshfl [vmem:[#allocation0] sm:$0xff pattern:$0x99999810]
    %156 = vrot.lane.b32.xlu0 %v155, 68
    %v157 = vpop.permute.xlu0 %156
    %vm158 = vcmask 39936
    %s159 = scalar_lea.vmem %s1, 12
    %160 = vst.msk [vmem:[%s159] sm:$0x1] %vm158, %v157
    %s161 = scalar_lea.vmem %s1, 43
    %162 = vst.msk [vmem:[%s161] sm:$0x2] %vm158, %v157
    %s163 = scalar_lea.vmem %s1, 74
    %164 = vst.msk [vmem:[%s163] sm:$0x4] %vm158, %v157
    %s165 = scalar_lea.vmem %s1, 105
    %166 = vst.msk [vmem:[%s165] sm:$0x8] %vm158, %v157
    %v167 = vld.sshfl [vmem:[#allocation0] sm:$0xff pattern:$0x99999810]
    %168 = vrot.lane.b32.xlu0 %v167, 63
    %v169 = vpop.permute.xlu0 %168
    %vm170 = vcmask 39936
    %s171 = scalar_lea.vmem %s1, 13
    %172 = vst.msk [vmem:[%s171] sm:$0x1] %vm170, %v169
    %s173 = scalar_lea.vmem %s1, 44
    %174 = vst.msk [vmem:[%s173] sm:$0x2] %vm170, %v169
    %s175 = scalar_lea.vmem %s1, 75
    %176 = vst.msk [vmem:[%s175] sm:$0x4] %vm170, %v169
    %s177 = scalar_lea.vmem %s1, 106
    %178 = vst.msk [vmem:[%s177] sm:$0x8] %vm170, %v169
    %v179 = vld.sshfl [vmem:[#allocation0] sm:$0xff pattern:$0x99999810]
    %180 = vrot.lane.b32.xlu0 %v179, 58
    %v181 = vpop.permute.xlu0 %180
    %vm182 = vcmask 39936
    %s183 = scalar_lea.vmem %s1, 14
    %184 = vst.msk [vmem:[%s183] sm:$0x1] %vm182, %v181
    %s185 = scalar_lea.vmem %s1, 45
    %186 = vst.msk [vmem:[%s185] sm:$0x2] %vm182, %v181
    %s187 = scalar_lea.vmem %s1, 76
    %188 = vst.msk [vmem:[%s187] sm:$0x4] %vm182, %v181
    %s189 = scalar_lea.vmem %s1, 107
    %190 = vst.msk [vmem:[%s189] sm:$0x8] %vm182, %v181
    %v191 = vld.sshfl [vmem:[#allocation0] sm:$0xff pattern:$0x99999810]
    %192 = vrot.lane.b32.xlu0 %v191, 53
    %v193 = vpop.permute.xlu0 %192
    %vm194 = vcmask 39936
    %s195 = scalar_lea.vmem %s1, 15
    %196 = vst.msk [vmem:[%s195] sm:$0x1] %vm194, %v193
    %s197 = scalar_lea.vmem %s1, 46
    %198 = vst.msk [vmem:[%s197] sm:$0x2] %vm194, %v193
    %s199 = scalar_lea.vmem %s1, 77
    %200 = vst.msk [vmem:[%s199] sm:$0x4] %vm194, %v193
    %s201 = scalar_lea.vmem %s1, 108
    %202 = vst.msk [vmem:[%s201] sm:$0x8] %vm194, %v193
    %v203 = vld.sshfl [vmem:[#allocation0] sm:$0xff pattern:$0x99999810]
    %204 = vrot.lane.b32.xlu0 %v203, 48
    %v205 = vpop.permute.xlu0 %204
    %vm206 = vcmask 39936
    %s207 = scalar_lea.vmem %s1, 16
    %208 = vst.msk [vmem:[%s207] sm:$0x1] %vm206, %v205
    %s209 = scalar_lea.vmem %s1, 47
    %210 = vst.msk [vmem:[%s209] sm:$0x2] %vm206, %v205
    %s211 = scalar_lea.vmem %s1, 78
    %212 = vst.msk [vmem:[%s211] sm:$0x4] %vm206, %v205
    %s213 = scalar_lea.vmem %s1, 109
    %214 = vst.msk [vmem:[%s213] sm:$0x8] %vm206, %v205
    %v215 = vld.sshfl [vmem:[#allocation0] sm:$0xff pattern:$0x99999810]
    %216 = vrot.lane.b32.xlu0 %v215, 43
    %v217 = vpop.permute.xlu0 %216
    %vm218 = vcmask 39936
    %s219 = scalar_lea.vmem %s1, 17
    %220 = vst.msk [vmem:[%s219] sm:$0x1] %vm218, %v217
    %s221 = scalar_lea.vmem %s1, 48
    %222 = vst.msk [vmem:[%s221] sm:$0x2] %vm218, %v217
    %s223 = scalar_lea.vmem %s1, 79
    %224 = vst.msk [vmem:[%s223] sm:$0x4] %vm218, %v217
    %s225 = scalar_lea.vmem %s1, 110
    %226 = vst.msk [vmem:[%s225] sm:$0x8] %vm218, %v217
    %v227 = vld.sshfl [vmem:[#allocation0] sm:$0xff pattern:$0x99999810]
    %228 = vrot.lane.b32.xlu0 %v227, 38
    %v229 = vpop.permute.xlu0 %228
    %vm230 = vcmask 39936
    %s231 = scalar_lea.vmem %s1, 18
    %232 = vst.msk [vmem:[%s231] sm:$0x1] %vm230, %v229
    %s233 = scalar_lea.vmem %s1, 49
    %234 = vst.msk [vmem:[%s233] sm:$0x2] %vm230, %v229
    %s235 = scalar_lea.vmem %s1, 80
    %236 = vst.msk [vmem:[%s235] sm:$0x4] %vm230, %v229
    %s237 = scalar_lea.vmem %s1, 111
    %238 = vst.msk [vmem:[%s237] sm:$0x8] %vm230, %v229
    %v239 = vld.sshfl [vmem:[#allocation0] sm:$0xff pattern:$0x99999810]
    %240 = vrot.lane.b32.xlu0 %v239, 33
    %v241 = vpop.permute.xlu0 %240
    %vm242 = vcmask 39936
    %s243 = scalar_lea.vmem %s1, 19
    %244 = vst.msk [vmem:[%s243] sm:$0x1] %vm242, %v241
    %s245 = scalar_lea.vmem %s1, 50
    %246 = vst.msk [vmem:[%s245] sm:$0x2] %vm242, %v241
    %s247 = scalar_lea.vmem %s1, 81
    %248 = vst.msk [vmem:[%s247] sm:$0x4] %vm242, %v241
    %s249 = scalar_lea.vmem %s1, 112
    %250 = vst.msk [vmem:[%s249] sm:$0x8] %vm242, %v241
    %v251 = vld.sshfl [vmem:[#allocation0] sm:$0xff pattern:$0x99999810]
    %252 = vrot.lane.b32.xlu0 %v251, 28
    %v253 = vpop.permute.xlu0 %252
    %vm254 = vcmask 39936
    %s255 = scalar_lea.vmem %s1, 20
    %256 = vst.msk [vmem:[%s255] sm:$0x1] %vm254, %v253
    %s257 = scalar_lea.vmem %s1, 51
    %258 = vst.msk [vmem:[%s257] sm:$0x2] %vm254, %v253
    %s259 = scalar_lea.vmem %s1, 82
    %260 = vst.msk [vmem:[%s259] sm:$0x4] %vm254, %v253
    %s261 = scalar_lea.vmem %s1, 113
    %262 = vst.msk [vmem:[%s261] sm:$0x8] %vm254, %v253
    %v263 = vld.sshfl [vmem:[#allocation0] sm:$0xff pattern:$0x99999810]
    %264 = vrot.lane.b32.xlu0 %v263, 23
    %v265 = vpop.permute.xlu0 %264
    %vm266 = vcmask 39936
    %s267 = scalar_lea.vmem %s1, 21
    %268 = vst.msk [vmem:[%s267] sm:$0x1] %vm266, %v265
    %s269 = scalar_lea.vmem %s1, 52
    %270 = vst.msk [vmem:[%s269] sm:$0x2] %vm266, %v265
    %s271 = scalar_lea.vmem %s1, 83
    %272 = vst.msk [vmem:[%s271] sm:$0x4] %vm266, %v265
    %s273 = scalar_lea.vmem %s1, 114
    %274 = vst.msk [vmem:[%s273] sm:$0x8] %vm266, %v265
    %v275 = vld.sshfl [vmem:[#allocation0] sm:$0xff pattern:$0x99999810]
    %276 = vrot.lane.b32.xlu0 %v275, 18
    %v277 = vpop.permute.xlu0 %276
    %vm278 = vcmask 39936
    %s279 = scalar_lea.vmem %s1, 22
    %280 = vst.msk [vmem:[%s279] sm:$0x1] %vm278, %v277
    %s281 = scalar_lea.vmem %s1, 53
    %282 = vst.msk [vmem:[%s281] sm:$0x2] %vm278, %v277
    %s283 = scalar_lea.vmem %s1, 84
    %284 = vst.msk [vmem:[%s283] sm:$0x4] %vm278, %v277
    %s285 = scalar_lea.vmem %s1, 115
    %286 = vst.msk [vmem:[%s285] sm:$0x8] %vm278, %v277
    %v287 = vld.sshfl [vmem:[#allocation0] sm:$0xff pattern:$0x99999810]
    %288 = vrot.lane.b32.xlu0 %v287, 13
    %v289 = vpop.permute.xlu0 %288
    %vm290 = vcmask 39936
    %s291 = scalar_lea.vmem %s1, 23
    %292 = vst.msk [vmem:[%s291] sm:$0x1] %vm290, %v289
    %s293 = scalar_lea.vmem %s1, 54
    %294 = vst.msk [vmem:[%s293] sm:$0x2] %vm290, %v289
    %s295 = scalar_lea.vmem %s1, 85
    %296 = vst.msk [vmem:[%s295] sm:$0x4] %vm290, %v289
    %s297 = scalar_lea.vmem %s1, 116
    %298 = vst.msk [vmem:[%s297] sm:$0x8] %vm290, %v289
    %v299 = vld.sshfl [vmem:[#allocation0] sm:$0xff pattern:$0x99999810]
    %300 = vrot.lane.b32.xlu0 %v299, 8
    %v301 = vpop.permute.xlu0 %300
    %vm302 = vcmask 39936
    %s303 = scalar_lea.vmem %s1, 24
    %304 = vst.msk [vmem:[%s303] sm:$0x1] %vm302, %v301
    %s305 = scalar_lea.vmem %s1, 55
    %306 = vst.msk [vmem:[%s305] sm:$0x2] %vm302, %v301
    %s307 = scalar_lea.vmem %s1, 86
    %308 = vst.msk [vmem:[%s307] sm:$0x4] %vm302, %v301
    %s309 = scalar_lea.vmem %s1, 117
    %310 = vst.msk [vmem:[%s309] sm:$0x8] %vm302, %v301

// kernel: manifoldnet_forward.1
$region0: #{manifoldnet_forward.1}
  #allocation0 [shape = 'u32[]', space=smem, size = 0x4, offset = 0x4, fixed_abs, tag = 'smem constant byte address 0x4 - core index']
  #allocation1 [shape = 'u32[144,128]{1,0:T(1,128)}', space=vmem, size = 0x12000, scoped, tag = 'internal scratch']
  #allocation2 [shape = 'f32[2,21,200]{2,1,0:T(8,128)}', space=vmem, size = 0xc000, scoped, tag = 'scratch operand']
  %s0 = inlined_call_operand.vmem [shape: f32[2,25,5,2], index: 0, kind: input, shape index: {}]
  %s1 = inlined_call_operand.vmem [shape: f32[5,20], index: 1, kind: input, shape index: {}]
  %s2 = inlined_call_operand.vmem [shape: f32[1,20], index: 2, kind: input, shape index: {}]
  %s3 = inlined_call_operand.vmem [shape: f32[100,40], index: 3, kind: input, shape index: {}]
  %s4 = inlined_call_operand.vmem [shape: f32[1,40], index: 4, kind: input, shape index: {}]
  %s5 = inlined_call_operand.vmem [shape: f32[1,40], index: 5, kind: input, shape index: {}]
  %s6 = inlined_call_operand.vmem [shape: f32[200,60], index: 6, kind: input, shape index: {}]
  %s7 = inlined_call_operand.vmem [shape: f32[1,60], index: 7, kind: input, shape index: {}]
  %s8 = inlined_call_operand.vmem [shape: f32[1,60], index: 8, kind: input, shape index: {}]
  %s9 = inlined_call_operand.vmem [shape: f32[180,80], index: 9, kind: input, shape index: {}]
  %s10 = inlined_call_operand.vmem [shape: f32[1,80], index: 10, kind: input, shape index: {}]
  %s11 = inlined_call_operand.vmem [shape: f32[1,80], index: 11, kind: input, shape index: {}]
  %s12 = inlined_call_operand.vmem [shape: f32[80,40], index: 12, kind: input, shape index: {}]
  %s13 = inlined_call_operand.vmem [shape: f32[1,40], index: 13, kind: input, shape index: {}]
  %s14 = inlined_call_operand.vmem [shape: f32[40,11], index: 14, kind: input, shape index: {}]
  %s15 = inlined_call_operand.vmem [shape: f32[1,11], index: 15, kind: input, shape index: {}]
  %s16 = inlined_call_operand.hbm [shape: f32[2,11], index: 16, kind: output, shape index: {}]
  %s17 = sld [smem:[#allocation0]]
  $region74: #{manifoldnet_forward.1} parent=0
    _
  %s19 = ssub.s32 1, %s17
  %s20 = scalar_select 0, %s19, %s17
  $region1: #{manifoldnet_forward.1} parent=0
    #allocation3 [shape = 'u8[1024]{0}', space=vmem, size = 0x400, scoped, tag = 'output window, operand 0, single buffered']
    #allocation4 [shape = 's32[1]{0}', space=sflag, size = 0x4, scoped, tag = 'scoped memory for manifoldnet_forward.1']
    %21 = vsyncpa [#allocation4], 0
    // Predicated region
    $region2: #{manifoldnet_forward.1} parent=1 // pred_check
      _
    $region3: #{manifoldnet_forward.1} parent=1 // pred_check_branch
      %23 = sbr.rel (0) target = $region5
    $region4: #{manifoldnet_forward.1} parent=1 // pred_region
      _
    $region5: #{manifoldnet_forward.1} parent=1 // pred_fallthru
      _
    // Predicated region
    $region6: #{manifoldnet_forward.1} parent=1 // pred_check
      _
    $region7: #{manifoldnet_forward.1} parent=1 // pred_check_branch
      %25 = sbr.rel (0) target = $region9
    $region8: #{manifoldnet_forward.1} parent=1 // pred_region
      _
    $region9: #{manifoldnet_forward.1} parent=1 // pred_fallthru
      _
    // Predicated region
    $region10: #{manifoldnet_forward.1} parent=1 // pred_check
      _
    $region11: #{manifoldnet_forward.1} parent=1 // pred_check_branch
      %27 = sbr.rel (0) target = $region13
    $region12: #{manifoldnet_forward.1} parent=1 // pred_region
      _
    $region13: #{manifoldnet_forward.1} parent=1 // pred_fallthru
      _
    // Predicated region
    $region14: #{manifoldnet_forward.1} parent=1 // pred_check
      _
    $region15: #{manifoldnet_forward.1} parent=1 // pred_check_branch
      %29 = sbr.rel (0) target = $region17
    $region16: #{manifoldnet_forward.1} parent=1 // pred_region
      _
    $region17: #{manifoldnet_forward.1} parent=1 // pred_fallthru
      _
    // Predicated region
    $region18: #{manifoldnet_forward.1} parent=1 // pred_check
      _
    $region19: #{manifoldnet_forward.1} parent=1 // pred_check_branch
      %31 = sbr.rel (0) target = $region21
    $region20: #{manifoldnet_forward.1} parent=1 // pred_region
      _
    $region21: #{manifoldnet_forward.1} parent=1 // pred_fallthru
      _
    // Predicated region
    $region22: #{manifoldnet_forward.1} parent=1 // pred_check
      _
    $region23: #{manifoldnet_forward.1} parent=1 // pred_check_branch
      %33 = sbr.rel (0) target = $region25
    $region24: #{manifoldnet_forward.1} parent=1 // pred_region
      _
    $region25: #{manifoldnet_forward.1} parent=1 // pred_fallthru
      _
    // Predicated region
    $region26: #{manifoldnet_forward.1} parent=1 // pred_check
      _
    $region27: #{manifoldnet_forward.1} parent=1 // pred_check_branch
      %35 = sbr.rel (0) target = $region29
    $region28: #{manifoldnet_forward.1} parent=1 // pred_region
      _
    $region29: #{manifoldnet_forward.1} parent=1 // pred_fallthru
      _
    // Predicated region
    $region30: #{manifoldnet_forward.1} parent=1 // pred_check
      _
    $region31: #{manifoldnet_forward.1} parent=1 // pred_check_branch
      %37 = sbr.rel (0) target = $region33
    $region32: #{manifoldnet_forward.1} parent=1 // pred_region
      _
    $region33: #{manifoldnet_forward.1} parent=1 // pred_fallthru
      _
    // Predicated region
    $region34: #{manifoldnet_forward.1} parent=1 // pred_check
      _
    $region35: #{manifoldnet_forward.1} parent=1 // pred_check_branch
      %39 = sbr.rel (0) target = $region37
    $region36: #{manifoldnet_forward.1} parent=1 // pred_region
      _
    $region37: #{manifoldnet_forward.1} parent=1 // pred_fallthru
      _
    // Predicated region
    $region38: #{manifoldnet_forward.1} parent=1 // pred_check
      _
    $region39: #{manifoldnet_forward.1} parent=1 // pred_check_branch
      %41 = sbr.rel (0) target = $region41
    $region40: #{manifoldnet_forward.1} parent=1 // pred_region
      _
    $region41: #{manifoldnet_forward.1} parent=1 // pred_fallthru
      _
    // Predicated region
    $region42: #{manifoldnet_forward.1} parent=1 // pred_check
      _
    $region43: #{manifoldnet_forward.1} parent=1 // pred_check_branch
      %43 = sbr.rel (0) target = $region45
    $region44: #{manifoldnet_forward.1} parent=1 // pred_region
      _
    $region45: #{manifoldnet_forward.1} parent=1 // pred_fallthru
      _
    // Predicated region
    $region46: #{manifoldnet_forward.1} parent=1 // pred_check
      _
    $region47: #{manifoldnet_forward.1} parent=1 // pred_check_branch
      %45 = sbr.rel (0) target = $region49
    $region48: #{manifoldnet_forward.1} parent=1 // pred_region
      _
    $region49: #{manifoldnet_forward.1} parent=1 // pred_fallthru
      _
    // Predicated region
    $region50: #{manifoldnet_forward.1} parent=1 // pred_check
      _
    $region51: #{manifoldnet_forward.1} parent=1 // pred_check_branch
      %47 = sbr.rel (0) target = $region53
    $region52: #{manifoldnet_forward.1} parent=1 // pred_region
      _
    $region53: #{manifoldnet_forward.1} parent=1 // pred_fallthru
      _
    // Predicated region
    $region54: #{manifoldnet_forward.1} parent=1 // pred_check
      _
    $region55: #{manifoldnet_forward.1} parent=1 // pred_check_branch
      %49 = sbr.rel (0) target = $region57
    $region56: #{manifoldnet_forward.1} parent=1 // pred_region
      _
    $region57: #{manifoldnet_forward.1} parent=1 // pred_fallthru
      _
    // Predicated region
    $region58: #{manifoldnet_forward.1} parent=1 // pred_check
      _
    $region59: #{manifoldnet_forward.1} parent=1 // pred_check_branch
      %51 = sbr.rel (0) target = $region61
    $region60: #{manifoldnet_forward.1} parent=1 // pred_region
      _
    $region61: #{manifoldnet_forward.1} parent=1 // pred_fallthru
      _
    // Predicated region
    $region62: #{manifoldnet_forward.1} parent=1 // pred_check
      _
    $region63: #{manifoldnet_forward.1} parent=1 // pred_check_branch
      %53 = sbr.rel (0) target = $region65
    $region64: #{manifoldnet_forward.1} parent=1 // pred_region
      _
    $region65: #{manifoldnet_forward.1} parent=1 // pred_fallthru
      _
    %v54 = vld [vmem:[%s0] sm:$0x1f]
    %v55 = vld [vmem:[%s0 + $0x8] sm:$0x1f]
    %v56 = vld [vmem:[%s0 + $0x10] sm:$0x1f]
    %v57 = vld [vmem:[%s0 + $0x18] sm:$0x1f]
    %v58 = vld [vmem:[%s0 + $0x20] sm:$0x1f]
    %v59 = vld [vmem:[%s0 + $0x28] sm:$0x1f]
    %v60 = vld [vmem:[%s0 + $0x30] sm:$0x1f]
    %v61 = vld [vmem:[%s0 + $0x38] sm:$0x1f]
    %v62 = vld [vmem:[%s0 + $0x40] sm:$0x1f]
    %v63 = vld [vmem:[%s0 + $0x48] sm:$0x1f]
    %v64 = vld [vmem:[%s0 + $0x50] sm:$0x1f]
    %v65 = vld [vmem:[%s0 + $0x58] sm:$0x1f]
    %v66 = vld [vmem:[%s0 + $0x60] sm:$0x1f]
    %v67 = vld [vmem:[%s0 + $0x68] sm:$0x1f]
    %v68 = vld [vmem:[%s0 + $0x70] sm:$0x1f]
    %v69 = vld [vmem:[%s0 + $0x78] sm:$0x1f]
    %v70 = vld [vmem:[%s0 + $0x80] sm:$0x1f]
    %v71 = vld [vmem:[%s0 + $0x88] sm:$0x1f]
    %v72 = vld [vmem:[%s0 + $0x90] sm:$0x1f]
    %v73 = vld [vmem:[%s0 + $0x98] sm:$0x1f]
    %v74 = vld [vmem:[%s0 + $0xa0] sm:$0x1f]
    %v75 = vld [vmem:[%s0 + $0xa8] sm:$0x1f]
    %v76 = vld [vmem:[%s0 + $0xb0] sm:$0x1f]
    %v77 = vld [vmem:[%s0 + $0xb8] sm:$0x1f]
    %v78 = vld [vmem:[%s0 + $0xc0] sm:$0x1f]
    %v79 = vld [vmem:[%s0 + $0xc8] sm:$0x1f]
    %v80 = vld [vmem:[%s0 + $0xd0] sm:$0x1f]
    %v81 = vld [vmem:[%s0 + $0xd8] sm:$0x1f]
    %v82 = vld [vmem:[%s0 + $0xe0] sm:$0x1f]
    %v83 = vld [vmem:[%s0 + $0xe8] sm:$0x1f]
    %v84 = vld [vmem:[%s0 + $0xf0] sm:$0x1f]
    %v85 = vld [vmem:[%s0 + $0xf8] sm:$0x1f]
    %v86 = vld [vmem:[%s0 + $0x100] sm:$0x1f]
    %v87 = vld [vmem:[%s0 + $0x108] sm:$0x1f]
    %v88 = vld [vmem:[%s0 + $0x110] sm:$0x1f]
    %v89 = vld [vmem:[%s0 + $0x118] sm:$0x1f]
    %v90 = vld [vmem:[%s0 + $0x120] sm:$0x1f]
    %v91 = vld [vmem:[%s0 + $0x128] sm:$0x1f]
    %v92 = vld [vmem:[%s0 + $0x130] sm:$0x1f]
    %v93 = vld [vmem:[%s0 + $0x138] sm:$0x1f]
    %v94 = vld [vmem:[%s0 + $0x140] sm:$0x1f]
    %v95 = vld [vmem:[%s0 + $0x148] sm:$0x1f]
    %v96 = vld [vmem:[%s0 + $0x150] sm:$0x1f]
    %v97 = vld [vmem:[%s0 + $0x158] sm:$0x1f]
    %v98 = vld [vmem:[%s0 + $0x160] sm:$0x1f]
    %v99 = vld [vmem:[%s0 + $0x168] sm:$0x1f]
    %v100 = vld [vmem:[%s0 + $0x170] sm:$0x1f]
    %v101 = vld [vmem:[%s0 + $0x178] sm:$0x1f]
    %v102 = vld [vmem:[%s0 + $0x180] sm:$0x1f]
    %v103 = vld [vmem:[%s0 + $0x188] sm:$0x1f]
    %v104 = vmul.f32 %v54, %v54
    %v105 = vmul.f32 %v55, %v55
    %v106 = vmul.f32 %v56, %v56
    %v107 = vmul.f32 %v57, %v57
    %v108 = vmul.f32 %v58, %v58
    %v109 = vmul.f32 %v59, %v59
    %v110 = vmul.f32 %v60, %v60
    %v111 = vmul.f32 %v61, %v61
    %v112 = vmul.f32 %v62, %v62
    %v113 = vmul.f32 %v63, %v63
    %v114 = vmul.f32 %v64, %v64
    %v115 = vmul.f32 %v65, %v65
    %v116 = vmul.f32 %v66, %v66
    %v117 = vmul.f32 %v67, %v67
    %v118 = vmul.f32 %v68, %v68
    %v119 = vmul.f32 %v69, %v69
    %v120 = vmul.f32 %v70, %v70
    %v121 = vmul.f32 %v71, %v71
    %v122 = vmul.f32 %v72, %v72
    %v123 = vmul.f32 %v73, %v73
    %v124 = vmul.f32 %v74, %v74
    %v125 = vmul.f32 %v75, %v75
    %v126 = vmul.f32 %v76, %v76
    %v127 = vmul.f32 %v77, %v77
    %v128 = vmul.f32 %v78, %v78
    %v129 = vmul.f32 %v79, %v79
    %v130 = vmul.f32 %v80, %v80
    %v131 = vmul.f32 %v81, %v81
    %v132 = vmul.f32 %v82, %v82
    %v133 = vmul.f32 %v83, %v83
    %v134 = vmul.f32 %v84, %v84
    %v135 = vmul.f32 %v85, %v85
    %v136 = vmul.f32 %v86, %v86
    %v137 = vmul.f32 %v87, %v87
    %v138 = vmul.f32 %v88, %v88
    %v139 = vmul.f32 %v89, %v89
    %v140 = vmul.f32 %v90, %v90
    %v141 = vmul.f32 %v91, %v91
    %v142 = vmul.f32 %v92, %v92
    %v143 = vmul.f32 %v93, %v93
    %v144 = vmul.f32 %v94, %v94
    %v145 = vmul.f32 %v95, %v95
    %v146 = vmul.f32 %v96, %v96
    %v147 = vmul.f32 %v97, %v97
    %v148 = vmul.f32 %v98, %v98
    %v149 = vmul.f32 %v99, %v99
    %v150 = vmul.f32 %v100, %v100
    %v151 = vmul.f32 %v101, %v101
    %v152 = vmul.f32 %v102, %v102
    %v153 = vmul.f32 %v103, %v103
    %204 = vrot.lane.b32.xlu0 %v104, 127
    %v205 = vpop.permute.xlu0 %204
    %206 = vrot.lane.b32.xlu0 %v105, 127
    %v207 = vpop.permute.xlu0 %206
    %208 = vrot.lane.b32.xlu0 %v106, 127
    %v209 = vpop.permute.xlu0 %208
    %210 = vrot.lane.b32.xlu0 %v107, 127
    %v211 = vpop.permute.xlu0 %210
    %212 = vrot.lane.b32.xlu0 %v108, 127
    %v213 = vpop.permute.xlu0 %212
    %214 = vrot.lane.b32.xlu0 %v109, 127
    %v215 = vpop.permute.xlu0 %214
    %216 = vrot.lane.b32.xlu0 %v110, 127
    %v217 = vpop.permute.xlu0 %216
    %218 = vrot.lane.b32.xlu0 %v111, 127
    %v219 = vpop.permute.xlu0 %218
    %220 = vrot.lane.b32.xlu0 %v112, 127
    %v221 = vpop.permute.xlu0 %220
    %222 = vrot.lane.b32.xlu0 %v113, 127
    %v223 = vpop.permute.xlu0 %222
    %224 = vrot.lane.b32.xlu0 %v114, 127
    %v225 = vpop.permute.xlu0 %224
    %226 = vrot.lane.b32.xlu0 %v115, 127
    %v227 = vpop.permute.xlu0 %226
    %228 = vrot.lane.b32.xlu0 %v116, 127
    %v229 = vpop.permute.xlu0 %228
    %230 = vrot.lane.b32.xlu0 %v117, 127
    %v231 = vpop.permute.xlu0 %230
    %232 = vrot.lane.b32.xlu0 %v118, 127
    %v233 = vpop.permute.xlu0 %232
    %234 = vrot.lane.b32.xlu0 %v119, 127
    %v235 = vpop.permute.xlu0 %234
    %236 = vrot.lane.b32.xlu0 %v120, 127
    %v237 = vpop.permute.xlu0 %236
    %238 = vrot.lane.b32.xlu0 %v121, 127
    %v239 = vpop.permute.xlu0 %238
    %240 = vrot.lane.b32.xlu0 %v122, 127
    %v241 = vpop.permute.xlu0 %240
    %242 = vrot.lane.b32.xlu0 %v123, 127
    %v243 = vpop.permute.xlu0 %242
    %244 = vrot.lane.b32.xlu0 %v124, 127
    %v245 = vpop.permute.xlu0 %244
    %246 = vrot.lane.b32.xlu0 %v125, 127
    %v247 = vpop.permute.xlu0 %246
    %248 = vrot.lane.b32.xlu0 %v126, 127
    %v249 = vpop.permute.xlu0 %248
    %250 = vrot.lane.b32.xlu0 %v127, 127
    %v251 = vpop.permute.xlu0 %250
    %252 = vrot.lane.b32.xlu0 %v128, 127
    %v253 = vpop.permute.xlu0 %252
    %254 = vrot.lane.b32.xlu0 %v129, 127
    %v255 = vpop.permute.xlu0 %254
    %256 = vrot.lane.b32.xlu0 %v130, 127
    %v257 = vpop.permute.xlu0 %256
    %258 = vrot.lane.b32.xlu0 %v131, 127
    %v259 = vpop.permute.xlu0 %258
    %260 = vrot.lane.b32.xlu0 %v132, 127
    %v261 = vpop.permute.xlu0 %260
    %262 = vrot.lane.b32.xlu0 %v133, 127
    %v263 = vpop.permute.xlu0 %262
    %264 = vrot.lane.b32.xlu0 %v134, 127
    %v265 = vpop.permute.xlu0 %264
    %266 = vrot.lane.b32.xlu0 %v135, 127
    %v267 = vpop.permute.xlu0 %266
    %268 = vrot.lane.b32.xlu0 %v136, 127
    %v269 = vpop.permute.xlu0 %268
    %270 = vrot.lane.b32.xlu0 %v137, 127
    %v271 = vpop.permute.xlu0 %270
    %272 = vrot.lane.b32.xlu0 %v138, 127
    %v273 = vpop.permute.xlu0 %272
    %274 = vrot.lane.b32.xlu0 %v139, 127
    %v275 = vpop.permute.xlu0 %274
    %276 = vrot.lane.b32.xlu0 %v140, 127
    %v277 = vpop.permute.xlu0 %276
    %278 = vrot.lane.b32.xlu0 %v141, 127
    %v279 = vpop.permute.xlu0 %278
    %280 = vrot.lane.b32.xlu0 %v142, 127
    %v281 = vpop.permute.xlu0 %280
    %282 = vrot.lane.b32.xlu0 %v143, 127
    %v283 = vpop.permute.xlu0 %282
    %284 = vrot.lane.b32.xlu0 %v144, 127
    %v285 = vpop.permute.xlu0 %284
    %286 = vrot.lane.b32.xlu0 %v145, 127
    %v287 = vpop.permute.xlu0 %286
    %288 = vrot.lane.b32.xlu0 %v146, 127
    %v289 = vpop.permute.xlu0 %288
    %290 = vrot.lane.b32.xlu0 %v147, 127
    %v291 = vpop.permute.xlu0 %290
    %292 = vrot.lane.b32.xlu0 %v148, 127
    %v293 = vpop.permute.xlu0 %292
    %294 = vrot.lane.b32.xlu0 %v149, 127
    %v295 = vpop.permute.xlu0 %294
    %296 = vrot.lane.b32.xlu0 %v150, 127
    %v297 = vpop.permute.xlu0 %296
    %298 = vrot.lane.b32.xlu0 %v151, 127
    %v299 = vpop.permute.xlu0 %298
    %300 = vrot.lane.b32.xlu0 %v152, 127
    %v301 = vpop.permute.xlu0 %300
    %302 = vrot.lane.b32.xlu0 %v153, 127
    %v303 = vpop.permute.xlu0 %302
    %v354 = vadd.f32 %v104, %v205
    %v355 = vadd.f32 %v105, %v207
    %v356 = vadd.f32 %v106, %v209
    %v357 = vadd.f32 %v107, %v211
    %v358 = vadd.f32 %v108, %v213
    %v359 = vadd.f32 %v109, %v215
    %v360 = vadd.f32 %v110, %v217
    %v361 = vadd.f32 %v111, %v219
    %v362 = vadd.f32 %v112, %v221
    %v363 = vadd.f32 %v113, %v223
    %v364 = vadd.f32 %v114, %v225
    %v365 = vadd.f32 %v115, %v227
    %v366 = vadd.f32 %v116, %v229
    %v367 = vadd.f32 %v117, %v231
    %v368 = vadd.f32 %v118, %v233
    %v369 = vadd.f32 %v119, %v235
    %v370 = vadd.f32 %v120, %v237
    %v371 = vadd.f32 %v121, %v239
    %v372 = vadd.f32 %v122, %v241
    %v373 = vadd.f32 %v123, %v243
    %v374 = vadd.f32 %v124, %v245
    %v375 = vadd.f32 %v125, %v247
    %v376 = vadd.f32 %v126, %v249
    %v377 = vadd.f32 %v127, %v251
    %v378 = vadd.f32 %v128, %v253
    %v379 = vadd.f32 %v129, %v255
    %v380 = vadd.f32 %v130, %v257
    %v381 = vadd.f32 %v131, %v259
    %v382 = vadd.f32 %v132, %v261
    %v383 = vadd.f32 %v133, %v263
    %v384 = vadd.f32 %v134, %v265
    %v385 = vadd.f32 %v135, %v267
    %v386 = vadd.f32 %v136, %v269
    %v387 = vadd.f32 %v137, %v271
    %v388 = vadd.f32 %v138, %v273
    %v389 = vadd.f32 %v139, %v275
    %v390 = vadd.f32 %v140, %v277
    %v391 = vadd.f32 %v141, %v279
    %v392 = vadd.f32 %v142, %v281
    %v393 = vadd.f32 %v143, %v283
    %v394 = vadd.f32 %v144, %v285
    %v395 = vadd.f32 %v145, %v287
    %v396 = vadd.f32 %v146, %v289
    %v397 = vadd.f32 %v147, %v291
    %v398 = vadd.f32 %v148, %v293
    %v399 = vadd.f32 %v149, %v295
    %v400 = vadd.f32 %v150, %v297
    %v401 = vadd.f32 %v151, %v299
    %v402 = vadd.f32 %v152, %v301
    %v403 = vadd.f32 %v153, %v303
    %v404 = vrsqrt.pop %v354
    %v405 = vmul.f32 %v354, %v404
    %vm406 = vcmp.eq.f32.partialorder %v354, inf
    %v407 = vsel %vm406, %v354, %v405
    %vm408 = vcmp.eq.f32.partialorder %v354, 0.0
    %v409 = vand.u32 %v354, 2147483648
    %v410 = vsel %vm408, %v409, %v407
    %v411 = vrsqrt.pop %v355
    %v412 = vmul.f32 %v355, %v411
    %vm413 = vcmp.eq.f32.partialorder %v355, inf
    %v414 = vsel %vm413, %v355, %v412
    %vm415 = vcmp.eq.f32.partialorder %v355, 0.0
    %v416 = vand.u32 %v355, 2147483648
    %v417 = vsel %vm415, %v416, %v414
    %v418 = vrsqrt.pop %v356
    %v419 = vmul.f32 %v356, %v418
    %vm420 = vcmp.eq.f32.partialorder %v356, inf
    %v421 = vsel %vm420, %v356, %v419
    %vm422 = vcmp.eq.f32.partialorder %v356, 0.0
    %v423 = vand.u32 %v356, 2147483648
    %v424 = vsel %vm422, %v423, %v421
    %v425 = vrsqrt.pop %v357
    %v426 = vmul.f32 %v357, %v425
    %vm427 = vcmp.eq.f32.partialorder %v357, inf
    %v428 = vsel %vm427, %v357, %v426
    %vm429 = vcmp.eq.f32.partialorder %v357, 0.0
    %v430 = vand.u32 %v357, 2147483648
    %v431 = vsel %vm429, %v430, %v428
    %v432 = vrsqrt.pop %v358
    %v433 = vmul.f32 %v358, %v432
    %vm434 = vcmp.eq.f32.partialorder %v358, inf
    %v435 = vsel %vm434, %v358, %v433
    %vm436 = vcmp.eq.f32.partialorder %v358, 0.0
    %v437 = vand.u32 %v358, 2147483648
    %v438 = vsel %vm436, %v437, %v435
    %v439 = vrsqrt.pop %v359
    %v440 = vmul.f32 %v359, %v439
    %vm441 = vcmp.eq.f32.partialorder %v359, inf
    %v442 = vsel %vm441, %v359, %v440
    %vm443 = vcmp.eq.f32.partialorder %v359, 0.0
    %v444 = vand.u32 %v359, 2147483648
    %v445 = vsel %vm443, %v444, %v442
    %v446 = vrsqrt.pop %v360
    %v447 = vmul.f32 %v360, %v446
    %vm448 = vcmp.eq.f32.partialorder %v360, inf
    %v449 = vsel %vm448, %v360, %v447
    %vm450 = vcmp.eq.f32.partialorder %v360, 0.0
    %v451 = vand.u32 %v360, 2147483648
    %v452 = vsel %vm450, %v451, %v449
    %v453 = vrsqrt.pop %v361
    %v454 = vmul.f32 %v361, %v453
    %vm455 = vcmp.eq.f32.partialorder %v361, inf
    %v456 = vsel %vm455, %v361, %v454
    %vm457 = vcmp.eq.f32.partialorder %v361, 0.0
    %v458 = vand.u32 %v361, 2147483648
    %v459 = vsel %vm457, %v458, %v456
    %v460 = vrsqrt.pop %v362
    %v461 = vmul.f32 %v362, %v460
    %vm462 = vcmp.eq.f32.partialorder %v362, inf
    %v463 = vsel %vm462, %v362, %v461
    %vm464 = vcmp.eq.f32.partialorder %v362, 0.0
    %v465 = vand.u32 %v362, 2147483648
    %v466 = vsel %vm464, %v465, %v463
    %v467 = vrsqrt.pop %v363
    %v468 = vmul.f32 %v363, %v467
    %vm469 = vcmp.eq.f32.partialorder %v363, inf
    %v470 = vsel %vm469, %v363, %v468
    %vm471 = vcmp.eq.f32.partialorder %v363, 0.0
    %v472 = vand.u32 %v363, 2147483648
    %v473 = vsel %vm471, %v472, %v470
    %v474 = vrsqrt.pop %v364
    %v475 = vmul.f32 %v364, %v474
    %vm476 = vcmp.eq.f32.partialorder %v364, inf
    %v477 = vsel %vm476, %v364, %v475
    %vm478 = vcmp.eq.f32.partialorder %v364, 0.0
    %v479 = vand.u32 %v364, 2147483648
    %v480 = vsel %vm478, %v479, %v477
    %v481 = vrsqrt.pop %v365
    %v482 = vmul.f32 %v365, %v481
    %vm483 = vcmp.eq.f32.partialorder %v365, inf
    %v484 = vsel %vm483, %v365, %v482
    %vm485 = vcmp.eq.f32.partialorder %v365, 0.0
    %v486 = vand.u32 %v365, 2147483648
    %v487 = vsel %vm485, %v486, %v484
    %v488 = vrsqrt.pop %v366
    %v489 = vmul.f32 %v366, %v488
    %vm490 = vcmp.eq.f32.partialorder %v366, inf
    %v491 = vsel %vm490, %v366, %v489
    %vm492 = vcmp.eq.f32.partialorder %v366, 0.0
    %v493 = vand.u32 %v366, 2147483648
    %v494 = vsel %vm492, %v493, %v491
    %v495 = vrsqrt.pop %v367
    %v496 = vmul.f32 %v367, %v495
    %vm497 = vcmp.eq.f32.partialorder %v367, inf
    %v498 = vsel %vm497, %v367, %v496
    %vm499 = vcmp.eq.f32.partialorder %v367, 0.0
    %v500 = vand.u32 %v367, 2147483648
    %v501 = vsel %vm499, %v500, %v498
    %v502 = vrsqrt.pop %v368
    %v503 = vmul.f32 %v368, %v502
    %vm504 = vcmp.eq.f32.partialorder %v368, inf
    %v505 = vsel %vm504, %v368, %v503
    %vm506 = vcmp.eq.f32.partialorder %v368, 0.0
    %v507 = vand.u32 %v368, 2147483648
    %v508 = vsel %vm506, %v507, %v505
    %v509 = vrsqrt.pop %v369
    %v510 = vmul.f32 %v369, %v509
    %vm511 = vcmp.eq.f32.partialorder %v369, inf
    %v512 = vsel %vm511, %v369, %v510
    %vm513 = vcmp.eq.f32.partialorder %v369, 0.0
    %v514 = vand.u32 %v369, 2147483648
    %v515 = vsel %vm513, %v514, %v512
    %v516 = vrsqrt.pop %v370
    %v517 = vmul.f32 %v370, %v516
    %vm518 = vcmp.eq.f32.partialorder %v370, inf
    %v519 = vsel %vm518, %v370, %v517
    %vm520 = vcmp.eq.f32.partialorder %v370, 0.0
    %v521 = vand.u32 %v370, 2147483648
    %v522 = vsel %vm520, %v521, %v519
    %v523 = vrsqrt.pop %v371
    %v524 = vmul.f32 %v371, %v523
    %vm525 = vcmp.eq.f32.partialorder %v371, inf
    %v526 = vsel %vm525, %v371, %v524
    %vm527 = vcmp.eq.f32.partialorder %v371, 0.0
    %v528 = vand.u32 %v371, 2147483648
    %v529 = vsel %vm527, %v528, %v526
    %v530 = vrsqrt.pop %v372
    %v531 = vmul.f32 %v372, %v530
    %vm532 = vcmp.eq.f32.partialorder %v372, inf
    %v533 = vsel %vm532, %v372, %v531
    %vm534 = vcmp.eq.f32.partialorder %v372, 0.0
    %v535 = vand.u32 %v372, 2147483648
    %v536 = vsel %vm534, %v535, %v533
    %v537 = vrsqrt.pop %v373
    %v538 = vmul.f32 %v373, %v537
    %vm539 = vcmp.eq.f32.partialorder %v373, inf
    %v540 = vsel %vm539, %v373, %v538
    %vm541 = vcmp.eq.f32.partialorder %v373, 0.0
    %v542 = vand.u32 %v373, 2147483648
    %v543 = vsel %vm541, %v542, %v540
    %v544 = vrsqrt.pop %v374
    %v545 = vmul.f32 %v374, %v544
    %vm546 = vcmp.eq.f32.partialorder %v374, inf
    %v547 = vsel %vm546, %v374, %v545
    %vm548 = vcmp.eq.f32.partialorder %v374, 0.0
    %v549 = vand.u32 %v374, 2147483648
    %v550 = vsel %vm548, %v549, %v547
    %v551 = vrsqrt.pop %v375
    %v552 = vmul.f32 %v375, %v551
    %vm553 = vcmp.eq.f32.partialorder %v375, inf
    %v554 = vsel %vm553, %v375, %v552
    %vm555 = vcmp.eq.f32.partialorder %v375, 0.0
    %v556 = vand.u32 %v375, 2147483648
    %v557 = vsel %vm555, %v556, %v554
    %v558 = vrsqrt.pop %v376
    %v559 = vmul.f32 %v376, %v558
    %vm560 = vcmp.eq.f32.partialorder %v376, inf
    %v561 = vsel %vm560, %v376, %v559
    %vm562 = vcmp.eq.f32.partialorder %v376, 0.0
    %v563 = vand.u32 %v376, 2147483648
    %v564 = vsel %vm562, %v563, %v561
    %v565 = vrsqrt.pop %v377
    %v566 = vmul.f32 %v377, %v565
    %vm567 = vcmp.eq.f32.partialorder %v377, inf
    %v568 = vsel %vm567, %v377, %v566
    %vm569 = vcmp.eq.f32.partialorder %v377, 0.0
    %v570 = vand.u32 %v377, 2147483648
    %v571 = vsel %vm569, %v570, %v568
    %v572 = vrsqrt.pop %v378
    %v573 = vmul.f32 %v378, %v572
    %vm574 = vcmp.eq.f32.partialorder %v378, inf
    %v575 = vsel %vm574, %v378, %v573
    %vm576 = vcmp.eq.f32.partialorder %v378, 0.0
    %v577 = vand.u32 %v378, 2147483648
    %v578 = vsel %vm576, %v577, %v575
    %v579 = vrsqrt.pop %v379
    %v580 = vmul.f32 %v379, %v579
    %vm581 = vcmp.eq.f32.partialorder %v379, inf
    %v582 = vsel %vm581, %v379, %v580
    %vm583 = vcmp.eq.f32.partialorder %v379, 0.0
    %v584 = vand.u32 %v379, 2147483648
    %v585 = vsel %vm583, %v584, %v582
    %v586 = vrsqrt.pop %v380
    %v587 = vmul.f32 %v380, %v586
    %vm588 = vcmp.eq.f32.partialorder %v380, inf
    %v589 = vsel %vm588, %v380, %v587
    %vm590 = vcmp.eq.f32.partialorder %v380, 0.0
    %v591 = vand.u32 %v380, 2147483648
    %v592 = vsel %vm590, %v591, %v589
    %v593 = vrsqrt.pop %v381
    %v594 = vmul.f32 %v381, %v593
    %vm595 = vcmp.eq.f32.partialorder %v381, inf
    %v596 = vsel %vm595, %v381, %v594
    %vm597 = vcmp.eq.f32.partialorder %v381, 0.0
    %v598 = vand.u32 %v381, 2147483648
    %v599 = vsel %vm597, %v598, %v596
    %v600 = vrsqrt.pop %v382
    %v601 = vmul.f32 %v382, %v600
    %vm602 = vcmp.eq.f32.partialorder %v382, inf
    %v603 = vsel %vm602, %v382, %v601
    %vm604 = vcmp.eq.f32.partialorder %v382, 0.0
    %v605 = vand.u32 %v382, 2147483648
    %v606 = vsel %vm604, %v605, %v603
    %v607 = vrsqrt.pop %v383
    %v608 = vmul.f32 %v383, %v607
    %vm609 = vcmp.eq.f32.partialorder %v383, inf
    %v610 = vsel %vm609, %v383, %v608
    %vm611 = vcmp.eq.f32.partialorder %v383, 0.0
    %v612 = vand.u32 %v383, 2147483648
    %v613 = vsel %vm611, %v612, %v610
    %v614 = vrsqrt.pop %v384
    %v615 = vmul.f32 %v384, %v614
    %vm616 = vcmp.eq.f32.partialorder %v384, inf
    %v617 = vsel %vm616, %v384, %v615
    %vm618 = vcmp.eq.f32.partialorder %v384, 0.0
    %v619 = vand.u32 %v384, 2147483648
    %v620 = vsel %vm618, %v619, %v617
    %v621 = vrsqrt.pop %v385
    %v622 = vmul.f32 %v385, %v621
    %vm623 = vcmp.eq.f32.partialorder %v385, inf
    %v624 = vsel %vm623, %v385, %v622
    %vm625 = vcmp.eq.f32.partialorder %v385, 0.0
    %v626 = vand.u32 %v385, 2147483648
    %v627 = vsel %vm625, %v626, %v624
    %v628 = vrsqrt.pop %v386
    %v629 = vmul.f32 %v386, %v628
    %vm630 = vcmp.eq.f32.partialorder %v386, inf
    %v631 = vsel %vm630, %v386, %v629
    %vm632 = vcmp.eq.f32.partialorder %v386, 0.0
    %v633 = vand.u32 %v386, 2147483648
    %v634 = vsel %vm632, %v633, %v631
    %v635 = vrsqrt.pop %v387
    %v636 = vmul.f32 %v387, %v635
    %vm637 = vcmp.eq.f32.partialorder %v387, inf
    %v638 = vsel %vm637, %v387, %v636
    %vm639 = vcmp.eq.f32.partialorder %v387, 0.0
    %v640 = vand.u32 %v387, 2147483648
    %v641 = vsel %vm639, %v640, %v638
    %v642 = vrsqrt.pop %v388
    %v643 = vmul.f32 %v388, %v642
    %vm644 = vcmp.eq.f32.partialorder %v388, inf
    %v645 = vsel %vm644, %v388, %v643
    %vm646 = vcmp.eq.f32.partialorder %v388, 0.0
    %v647 = vand.u32 %v388, 2147483648
    %v648 = vsel %vm646, %v647, %v645
    %v649 = vrsqrt.pop %v389
    %v650 = vmul.f32 %v389, %v649
    %vm651 = vcmp.eq.f32.partialorder %v389, inf
    %v652 = vsel %vm651, %v389, %v650
    %vm653 = vcmp.eq.f32.partialorder %v389, 0.0
    %v654 = vand.u32 %v389, 2147483648
    %v655 = vsel %vm653, %v654, %v652
    %v656 = vrsqrt.pop %v390
    %v657 = vmul.f32 %v390, %v656
    %vm658 = vcmp.eq.f32.partialorder %v390, inf
    %v659 = vsel %vm658, %v390, %v657
    %vm660 = vcmp.eq.f32.partialorder %v390, 0.0
    %v661 = vand.u32 %v390, 2147483648
    %v662 = vsel %vm660, %v661, %v659
    %v663 = vrsqrt.pop %v391
    %v664 = vmul.f32 %v391, %v663
    %vm665 = vcmp.eq.f32.partialorder %v391, inf
    %v666 = vsel %vm665, %v391, %v664
    %vm667 = vcmp.eq.f32.partialorder %v391, 0.0
    %v668 = vand.u32 %v391, 2147483648
    %v669 = vsel %vm667, %v668, %v666
    %v670 = vrsqrt.pop %v392
    %v671 = vmul.f32 %v392, %v670
    %vm672 = vcmp.eq.f32.partialorder %v392, inf
    %v673 = vsel %vm672, %v392, %v671
    %vm674 = vcmp.eq.f32.partialorder %v392, 0.0
    %v675 = vand.u32 %v392, 2147483648
    %v676 = vsel %vm674, %v675, %v673
    %v677 = vrsqrt.pop %v393
    %v678 = vmul.f32 %v393, %v677
    %vm679 = vcmp.eq.f32.partialorder %v393, inf
    %v680 = vsel %vm679, %v393, %v678
    %vm681 = vcmp.eq.f32.partialorder %v393, 0.0
    %v682 = vand.u32 %v393, 2147483648
    %v683 = vsel %vm681, %v682, %v680
    %v684 = vrsqrt.pop %v394
    %v685 = vmul.f32 %v394, %v684
    %vm686 = vcmp.eq.f32.partialorder %v394, inf
    %v687 = vsel %vm686, %v394, %v685
    %vm688 = vcmp.eq.f32.partialorder %v394, 0.0
    %v689 = vand.u32 %v394, 2147483648
    %v690 = vsel %vm688, %v689, %v687
    %v691 = vrsqrt.pop %v395
    %v692 = vmul.f32 %v395, %v691
    %vm693 = vcmp.eq.f32.partialorder %v395, inf
    %v694 = vsel %vm693, %v395, %v692
    %vm695 = vcmp.eq.f32.partialorder %v395, 0.0
    %v696 = vand.u32 %v395, 2147483648
    %v697 = vsel %vm695, %v696, %v694
    %v698 = vrsqrt.pop %v396
    %v699 = vmul.f32 %v396, %v698
    %vm700 = vcmp.eq.f32.partialorder %v396, inf
    %v701 = vsel %vm700, %v396, %v699
    %vm702 = vcmp.eq.f32.partialorder %v396, 0.0
    %v703 = vand.u32 %v396, 2147483648
    %v704 = vsel %vm702, %v703, %v701
    %v705 = vrsqrt.pop %v397
    %v706 = vmul.f32 %v397, %v705
    %vm707 = vcmp.eq.f32.partialorder %v397, inf
    %v708 = vsel %vm707, %v397, %v706
    %vm709 = vcmp.eq.f32.partialorder %v397, 0.0
    %v710 = vand.u32 %v397, 2147483648
    %v711 = vsel %vm709, %v710, %v708
    %v712 = vrsqrt.pop %v398
    %v713 = vmul.f32 %v398, %v712
    %vm714 = vcmp.eq.f32.partialorder %v398, inf
    %v715 = vsel %vm714, %v398, %v713
    %vm716 = vcmp.eq.f32.partialorder %v398, 0.0
    %v717 = vand.u32 %v398, 2147483648
    %v718 = vsel %vm716, %v717, %v715
    %v719 = vrsqrt.pop %v399
    %v720 = vmul.f32 %v399, %v719
    %vm721 = vcmp.eq.f32.partialorder %v399, inf
    %v722 = vsel %vm721, %v399, %v720
    %vm723 = vcmp.eq.f32.partialorder %v399, 0.0
    %v724 = vand.u32 %v399, 2147483648
    %v725 = vsel %vm723, %v724, %v722
    %v726 = vrsqrt.pop %v400
    %v727 = vmul.f32 %v400, %v726
    %vm728 = vcmp.eq.f32.partialorder %v400, inf
    %v729 = vsel %vm728, %v400, %v727
    %vm730 = vcmp.eq.f32.partialorder %v400, 0.0
    %v731 = vand.u32 %v400, 2147483648
    %v732 = vsel %vm730, %v731, %v729
    %v733 = vrsqrt.pop %v401
    %v734 = vmul.f32 %v401, %v733
    %vm735 = vcmp.eq.f32.partialorder %v401, inf
    %v736 = vsel %vm735, %v401, %v734
    %vm737 = vcmp.eq.f32.partialorder %v401, 0.0
    %v738 = vand.u32 %v401, 2147483648
    %v739 = vsel %vm737, %v738, %v736
    %v740 = vrsqrt.pop %v402
    %v741 = vmul.f32 %v402, %v740
    %vm742 = vcmp.eq.f32.partialorder %v402, inf
    %v743 = vsel %vm742, %v402, %v741
    %vm744 = vcmp.eq.f32.partialorder %v402, 0.0
    %v745 = vand.u32 %v402, 2147483648
    %v746 = vsel %vm744, %v745, %v743
    %v747 = vrsqrt.pop %v403
    %v748 = vmul.f32 %v403, %v747
    %vm749 = vcmp.eq.f32.partialorder %v403, inf
    %v750 = vsel %vm749, %v403, %v748
    %vm751 = vcmp.eq.f32.partialorder %v403, 0.0
    %v752 = vand.u32 %v403, 2147483648
    %v753 = vsel %vm751, %v752, %v750
    %v754 = vld [vmem:[%s1] sm:$0x1f]
    %v755 = vld [vmem:[%s2] sm:$0x1]
    %v757 = vlaneseq
    %v758 = vshrl.u32 %v757, 7
    %v759 = vsub.s32 0, %v758
    %v760 = vrot.slane %v755, %v759
    %v761 = vcombine.high %v760, %v760
    %v763 = vunpack.c.l.s4 1966171168
    %v764 = vunpack.c.0.s8 %v763
    %v765 = vlaneseq
    %v766 = vshrl.u32 %v765, 7
    %v767 = vsub.s32 %v764, %v766
    %v768 = vrot.slane %v760, %v767
    %v770 = vunpack.c.l.s4 1966171168
    %v771 = vunpack.c.0.s8 %v770
    %v772 = vlaneseq
    %v773 = vshrl.u32 %v772, 7
    %v774 = vsub.s32 %v771, %v773
    %v775 = vrot.slane %v761, %v774
    %v776 = vcombine.high %v768, %v768
    %v777 = vcombine.high %v775, %v775
    %v779 = vunpack.c.l.s4 1966171168
    %v780 = vunpack.c.0.s8 %v779
    %v781 = vlaneseq
    %v782 = vshrl.u32 %v781, 7
    %v783 = vsub.s32 %v780, %v782
    %v784 = vrot.slane %v768, %v783
    %v786 = vunpack.c.l.s4 1966171168
    %v787 = vunpack.c.0.s8 %v786
    %v788 = vlaneseq
    %v789 = vshrl.u32 %v788, 7
    %v790 = vsub.s32 %v787, %v789
    %v791 = vrot.slane %v775, %v790
    %v793 = vunpack.c.l.s4 1966171168
    %v794 = vunpack.c.0.s8 %v793
    %v795 = vlaneseq
    %v796 = vshrl.u32 %v795, 7
    %v797 = vsub.s32 %v794, %v796
    %v798 = vrot.slane %v776, %v797
    %v800 = vunpack.c.l.s4 1966171168
    %v801 = vunpack.c.0.s8 %v800
    %v802 = vlaneseq
    %v803 = vshrl.u32 %v802, 7
    %v804 = vsub.s32 %v801, %v803
    %v805 = vrot.slane %v777, %v804
    %v806 = vcombine.high %v784, %v784
    %v807 = vcombine.high %v791, %v791
    %v808 = vcombine.high %v798, %v798
    %v809 = vcombine.high %v805, %v805
    %860 = vset.pattern.permute.xlu0 0
    %861 = vperm.xlu0 %860, %v410
    %v862 = vpop.permute.xlu0 %861
    %863 = vset.pattern.permute.xlu0 0
    %864 = vperm.xlu0 %863, %v417
    %v865 = vpop.permute.xlu0 %864
    %866 = vset.pattern.permute.xlu0 0
    %867 = vperm.xlu0 %866, %v424
    %v868 = vpop.permute.xlu0 %867
    %869 = vset.pattern.permute.xlu0 0
    %870 = vperm.xlu0 %869, %v431
    %v871 = vpop.permute.xlu0 %870
    %872 = vset.pattern.permute.xlu0 0
    %873 = vperm.xlu0 %872, %v438
    %v874 = vpop.permute.xlu0 %873
    %875 = vset.pattern.permute.xlu0 0
    %876 = vperm.xlu0 %875, %v445
    %v877 = vpop.permute.xlu0 %876
    %878 = vset.pattern.permute.xlu0 0
    %879 = vperm.xlu0 %878, %v452
    %v880 = vpop.permute.xlu0 %879
    %881 = vset.pattern.permute.xlu0 0
    %882 = vperm.xlu0 %881, %v459
    %v883 = vpop.permute.xlu0 %882
    %884 = vset.pattern.permute.xlu0 0
    %885 = vperm.xlu0 %884, %v466
    %v886 = vpop.permute.xlu0 %885
    %887 = vset.pattern.permute.xlu0 0
    %888 = vperm.xlu0 %887, %v473
    %v889 = vpop.permute.xlu0 %888
    %890 = vset.pattern.permute.xlu0 0
    %891 = vperm.xlu0 %890, %v480
    %v892 = vpop.permute.xlu0 %891
    %893 = vset.pattern.permute.xlu0 0
    %894 = vperm.xlu0 %893, %v487
    %v895 = vpop.permute.xlu0 %894
    %896 = vset.pattern.permute.xlu0 0
    %897 = vperm.xlu0 %896, %v494
    %v898 = vpop.permute.xlu0 %897
    %899 = vset.pattern.permute.xlu0 0
    %900 = vperm.xlu0 %899, %v501
    %v901 = vpop.permute.xlu0 %900
    %902 = vset.pattern.permute.xlu0 0
    %903 = vperm.xlu0 %902, %v508
    %v904 = vpop.permute.xlu0 %903
    %905 = vset.pattern.permute.xlu0 0
    %906 = vperm.xlu0 %905, %v515
    %v907 = vpop.permute.xlu0 %906
    %908 = vset.pattern.permute.xlu0 0
    %909 = vperm.xlu0 %908, %v522
    %v910 = vpop.permute.xlu0 %909
    %911 = vset.pattern.permute.xlu0 0
    %912 = vperm.xlu0 %911, %v529
    %v913 = vpop.permute.xlu0 %912
    %914 = vset.pattern.permute.xlu0 0
    %915 = vperm.xlu0 %914, %v536
    %v916 = vpop.permute.xlu0 %915
    %917 = vset.pattern.permute.xlu0 0
    %918 = vperm.xlu0 %917, %v543
    %v919 = vpop.permute.xlu0 %918
    %920 = vset.pattern.permute.xlu0 0
    %921 = vperm.xlu0 %920, %v550
    %v922 = vpop.permute.xlu0 %921
    %923 = vset.pattern.permute.xlu0 0
    %924 = vperm.xlu0 %923, %v557
    %v925 = vpop.permute.xlu0 %924
    %926 = vset.pattern.permute.xlu0 0
    %927 = vperm.xlu0 %926, %v564
    %v928 = vpop.permute.xlu0 %927
    %929 = vset.pattern.permute.xlu0 0
    %930 = vperm.xlu0 %929, %v571
    %v931 = vpop.permute.xlu0 %930
    %932 = vset.pattern.permute.xlu0 0
    %933 = vperm.xlu0 %932, %v578
    %v934 = vpop.permute.xlu0 %933
    %935 = vset.pattern.permute.xlu0 0
    %936 = vperm.xlu0 %935, %v585
    %v937 = vpop.permute.xlu0 %936
    %938 = vset.pattern.permute.xlu0 0
    %939 = vperm.xlu0 %938, %v592
    %v940 = vpop.permute.xlu0 %939
    %941 = vset.pattern.permute.xlu0 0
    %942 = vperm.xlu0 %941, %v599
    %v943 = vpop.permute.xlu0 %942
    %944 = vset.pattern.permute.xlu0 0
    %945 = vperm.xlu0 %944, %v606
    %v946 = vpop.permute.xlu0 %945
    %947 = vset.pattern.permute.xlu0 0
    %948 = vperm.xlu0 %947, %v613
    %v949 = vpop.permute.xlu0 %948
    %950 = vset.pattern.permute.xlu0 0
    %951 = vperm.xlu0 %950, %v620
    %v952 = vpop.permute.xlu0 %951
    %953 = vset.pattern.permute.xlu0 0
    %954 = vperm.xlu0 %953, %v627
    %v955 = vpop.permute.xlu0 %954
    %956 = vset.pattern.permute.xlu0 0
    %957 = vperm.xlu0 %956, %v634
    %v958 = vpop.permute.xlu0 %957
    %959 = vset.pattern.permute.xlu0 0
    %960 = vperm.xlu0 %959, %v641
    %v961 = vpop.permute.xlu0 %960
    %962 = vset.pattern.permute.xlu0 0
    %963 = vperm.xlu0 %962, %v648
    %v964 = vpop.permute.xlu0 %963
    %965 = vset.pattern.permute.xlu0 0
    %966 = vperm.xlu0 %965, %v655
    %v967 = vpop.permute.xlu0 %966
    %968 = vset.pattern.permute.xlu0 0
    %969 = vperm.xlu0 %968, %v662
    %v970 = vpop.permute.xlu0 %969
    %971 = vset.pattern.permute.xlu0 0
    %972 = vperm.xlu0 %971, %v669
    %v973 = vpop.permute.xlu0 %972
    %974 = vset.pattern.permute.xlu0 0
    %975 = vperm.xlu0 %974, %v676
    %v976 = vpop.permute.xlu0 %975
    %977 = vset.pattern.permute.xlu0 0
    %978 = vperm.xlu0 %977, %v683
    %v979 = vpop.permute.xlu0 %978
    %980 = vset.pattern.permute.xlu0 0
    %981 = vperm.xlu0 %980, %v690
    %v982 = vpop.permute.xlu0 %981
    %983 = vset.pattern.permute.xlu0 0
    %984 = vperm.xlu0 %983, %v697
    %v985 = vpop.permute.xlu0 %984
    %986 = vset.pattern.permute.xlu0 0
    %987 = vperm.xlu0 %986, %v704
    %v988 = vpop.permute.xlu0 %987
    %989 = vset.pattern.permute.xlu0 0
    %990 = vperm.xlu0 %989, %v711
    %v991 = vpop.permute.xlu0 %990
    %992 = vset.pattern.permute.xlu0 0
    %993 = vperm.xlu0 %992, %v718
    %v994 = vpop.permute.xlu0 %993
    %995 = vset.pattern.permute.xlu0 0
    %996 = vperm.xlu0 %995, %v725
    %v997 = vpop.permute.xlu0 %996
    %998 = vset.pattern.permute.xlu0 0
    %999 = vperm.xlu0 %998, %v732
    %v1000 = vpop.permute.xlu0 %999
    %1001 = vset.pattern.permute.xlu0 0
    %1002 = vperm.xlu0 %1001, %v739
    %v1003 = vpop.permute.xlu0 %1002
    %1004 = vset.pattern.permute.xlu0 0
    %1005 = vperm.xlu0 %1004, %v746
    %v1006 = vpop.permute.xlu0 %1005
    %1007 = vset.pattern.permute.xlu0 0
    %1008 = vperm.xlu0 %1007, %v753
    %v1009 = vpop.permute.xlu0 %1008
    %v1010 = vlaneseq
    %v1011 = vand.u32 %v1010, 127
    %v1012 = vlaneseq
    %v1013 = vshrl.u32 %v1012, 7
    %v1014 = vsub.s32 %v1011, %v1013
    %v1015 = vrot.slane %v862, %v1014
    %v1016 = vlaneseq
    %v1017 = vshrl.u32 %v1016, 7
    %v1018 = vsub.s32 %v1011, %v1017
    %v1019 = vrot.slane %v865, %v1018
    %v1020 = vlaneseq
    %v1021 = vshrl.u32 %v1020, 7
    %v1022 = vsub.s32 %v1011, %v1021
    %v1023 = vrot.slane %v868, %v1022
    %v1024 = vlaneseq
    %v1025 = vshrl.u32 %v1024, 7
    %v1026 = vsub.s32 %v1011, %v1025
    %v1027 = vrot.slane %v871, %v1026
    %v1028 = vlaneseq
    %v1029 = vshrl.u32 %v1028, 7
    %v1030 = vsub.s32 %v1011, %v1029
    %v1031 = vrot.slane %v874, %v1030
    %v1032 = vlaneseq
    %v1033 = vshrl.u32 %v1032, 7
    %v1034 = vsub.s32 %v1011, %v1033
    %v1035 = vrot.slane %v877, %v1034
    %v1036 = vlaneseq
    %v1037 = vshrl.u32 %v1036, 7
    %v1038 = vsub.s32 %v1011, %v1037
    %v1039 = vrot.slane %v880, %v1038
    %v1040 = vlaneseq
    %v1041 = vshrl.u32 %v1040, 7
    %v1042 = vsub.s32 %v1011, %v1041
    %v1043 = vrot.slane %v883, %v1042
    %v1044 = vlaneseq
    %v1045 = vshrl.u32 %v1044, 7
    %v1046 = vsub.s32 %v1011, %v1045
    %v1047 = vrot.slane %v886, %v1046
    %v1048 = vlaneseq
    %v1049 = vshrl.u32 %v1048, 7
    %v1050 = vsub.s32 %v1011, %v1049
    %v1051 = vrot.slane %v889, %v1050
    %v1052 = vlaneseq
    %v1053 = vshrl.u32 %v1052, 7
    %v1054 = vsub.s32 %v1011, %v1053
    %v1055 = vrot.slane %v892, %v1054
    %v1056 = vlaneseq
    %v1057 = vshrl.u32 %v1056, 7
    %v1058 = vsub.s32 %v1011, %v1057
    %v1059 = vrot.slane %v895, %v1058
    %v1060 = vlaneseq
    %v1061 = vshrl.u32 %v1060, 7
    %v1062 = vsub.s32 %v1011, %v1061
    %v1063 = vrot.slane %v898, %v1062
    %v1064 = vlaneseq
    %v1065 = vshrl.u32 %v1064, 7
    %v1066 = vsub.s32 %v1011, %v1065
    %v1067 = vrot.slane %v901, %v1066
    %v1068 = vlaneseq
    %v1069 = vshrl.u32 %v1068, 7
    %v1070 = vsub.s32 %v1011, %v1069
    %v1071 = vrot.slane %v904, %v1070
    %v1072 = vlaneseq
    %v1073 = vshrl.u32 %v1072, 7
    %v1074 = vsub.s32 %v1011, %v1073
    %v1075 = vrot.slane %v907, %v1074
    %v1076 = vlaneseq
    %v1077 = vshrl.u32 %v1076, 7
    %v1078 = vsub.s32 %v1011, %v1077
    %v1079 = vrot.slane %v910, %v1078
    %v1080 = vlaneseq
    %v1081 = vshrl.u32 %v1080, 7
    %v1082 = vsub.s32 %v1011, %v1081
    %v1083 = vrot.slane %v913, %v1082
    %v1084 = vlaneseq
    %v1085 = vshrl.u32 %v1084, 7
    %v1086 = vsub.s32 %v1011, %v1085
    %v1087 = vrot.slane %v916, %v1086
    %v1088 = vlaneseq
    %v1089 = vshrl.u32 %v1088, 7
    %v1090 = vsub.s32 %v1011, %v1089
    %v1091 = vrot.slane %v919, %v1090
    %v1092 = vlaneseq
    %v1093 = vshrl.u32 %v1092, 7
    %v1094 = vsub.s32 %v1011, %v1093
    %v1095 = vrot.slane %v922, %v1094
    %v1096 = vlaneseq
    %v1097 = vshrl.u32 %v1096, 7
    %v1098 = vsub.s32 %v1011, %v1097
    %v1099 = vrot.slane %v925, %v1098
    %v1100 = vlaneseq
    %v1101 = vshrl.u32 %v1100, 7
    %v1102 = vsub.s32 %v1011, %v1101
    %v1103 = vrot.slane %v928, %v1102
    %v1104 = vlaneseq
    %v1105 = vshrl.u32 %v1104, 7
    %v1106 = vsub.s32 %v1011, %v1105
    %v1107 = vrot.slane %v931, %v1106
    %v1108 = vlaneseq
    %v1109 = vshrl.u32 %v1108, 7
    %v1110 = vsub.s32 %v1011, %v1109
    %v1111 = vrot.slane %v934, %v1110
    %v1112 = vlaneseq
    %v1113 = vshrl.u32 %v1112, 7
    %v1114 = vsub.s32 %v1011, %v1113
    %v1115 = vrot.slane %v937, %v1114
    %v1116 = vlaneseq
    %v1117 = vshrl.u32 %v1116, 7
    %v1118 = vsub.s32 %v1011, %v1117
    %v1119 = vrot.slane %v940, %v1118
    %v1120 = vlaneseq
    %v1121 = vshrl.u32 %v1120, 7
    %v1122 = vsub.s32 %v1011, %v1121
    %v1123 = vrot.slane %v943, %v1122
    %v1124 = vlaneseq
    %v1125 = vshrl.u32 %v1124, 7
    %v1126 = vsub.s32 %v1011, %v1125
    %v1127 = vrot.slane %v946, %v1126
    %v1128 = vlaneseq
    %v1129 = vshrl.u32 %v1128, 7
    %v1130 = vsub.s32 %v1011, %v1129
    %v1131 = vrot.slane %v949, %v1130
    %v1132 = vlaneseq
    %v1133 = vshrl.u32 %v1132, 7
    %v1134 = vsub.s32 %v1011, %v1133
    %v1135 = vrot.slane %v952, %v1134
    %v1136 = vlaneseq
    %v1137 = vshrl.u32 %v1136, 7
    %v1138 = vsub.s32 %v1011, %v1137
    %v1139 = vrot.slane %v955, %v1138
    %v1140 = vlaneseq
    %v1141 = vshrl.u32 %v1140, 7
    %v1142 = vsub.s32 %v1011, %v1141
    %v1143 = vrot.slane %v958, %v1142
    %v1144 = vlaneseq
    %v1145 = vshrl.u32 %v1144, 7
    %v1146 = vsub.s32 %v1011, %v1145
    %v1147 = vrot.slane %v961, %v1146
    %v1148 = vlaneseq
    %v1149 = vshrl.u32 %v1148, 7
    %v1150 = vsub.s32 %v1011, %v1149
    %v1151 = vrot.slane %v964, %v1150
    %v1152 = vlaneseq
    %v1153 = vshrl.u32 %v1152, 7
    %v1154 = vsub.s32 %v1011, %v1153
    %v1155 = vrot.slane %v967, %v1154
    %v1156 = vlaneseq
    %v1157 = vshrl.u32 %v1156, 7
    %v1158 = vsub.s32 %v1011, %v1157
    %v1159 = vrot.slane %v970, %v1158
    %v1160 = vlaneseq
    %v1161 = vshrl.u32 %v1160, 7
    %v1162 = vsub.s32 %v1011, %v1161
    %v1163 = vrot.slane %v973, %v1162
    %v1164 = vlaneseq
    %v1165 = vshrl.u32 %v1164, 7
    %v1166 = vsub.s32 %v1011, %v1165
    %v1167 = vrot.slane %v976, %v1166
    %v1168 = vlaneseq
    %v1169 = vshrl.u32 %v1168, 7
    %v1170 = vsub.s32 %v1011, %v1169
    %v1171 = vrot.slane %v979, %v1170
    %v1172 = vlaneseq
    %v1173 = vshrl.u32 %v1172, 7
    %v1174 = vsub.s32 %v1011, %v1173
    %v1175 = vrot.slane %v982, %v1174
    %v1176 = vlaneseq
    %v1177 = vshrl.u32 %v1176, 7
    %v1178 = vsub.s32 %v1011, %v1177
    %v1179 = vrot.slane %v985, %v1178
    %v1180 = vlaneseq
    %v1181 = vshrl.u32 %v1180, 7
    %v1182 = vsub.s32 %v1011, %v1181
    %v1183 = vrot.slane %v988, %v1182
    %v1184 = vlaneseq
    %v1185 = vshrl.u32 %v1184, 7
    %v1186 = vsub.s32 %v1011, %v1185
    %v1187 = vrot.slane %v991, %v1186
    %v1188 = vlaneseq
    %v1189 = vshrl.u32 %v1188, 7
    %v1190 = vsub.s32 %v1011, %v1189
    %v1191 = vrot.slane %v994, %v1190
    %v1192 = vlaneseq
    %v1193 = vshrl.u32 %v1192, 7
    %v1194 = vsub.s32 %v1011, %v1193
    %v1195 = vrot.slane %v997, %v1194
    %v1196 = vlaneseq
    %v1197 = vshrl.u32 %v1196, 7
    %v1198 = vsub.s32 %v1011, %v1197
    %v1199 = vrot.slane %v1000, %v1198
    %v1200 = vlaneseq
    %v1201 = vshrl.u32 %v1200, 7
    %v1202 = vsub.s32 %v1011, %v1201
    %v1203 = vrot.slane %v1003, %v1202
    %v1204 = vlaneseq
    %v1205 = vshrl.u32 %v1204, 7
    %v1206 = vsub.s32 %v1011, %v1205
    %v1207 = vrot.slane %v1006, %v1206
    %v1208 = vlaneseq
    %v1209 = vshrl.u32 %v1208, 7
    %v1210 = vsub.s32 %v1011, %v1209
    %v1211 = vrot.slane %v1009, %v1210
    %vm1212 = vcmask 1041409
    %v1213 = vsel %vm1212, %v1019, %v1015
    %vm1214 = vcmask 1042434
    %v1215 = vsel %vm1214, %v1023, %v1213
    %vm1216 = vcmask 1043459
    %v1217 = vsel %vm1216, %v1027, %v1215
    %vm1218 = vcmask 1044484
    %v1219 = vsel %vm1218, %v1031, %v1217
    %vm1220 = vcmask 1045509
    %v1221 = vsel %vm1220, %v1035, %v1219
    %vm1222 = vcmask 1046534
    %v1223 = vsel %vm1222, %v1039, %v1221
    %vm1224 = vcmask 1047559
    %v1225 = vsel %vm1224, %v1043, %v1223
    %v1226 = vsel %vm1212, %v1051, %v1047
    %v1227 = vsel %vm1214, %v1055, %v1226
    %v1228 = vsel %vm1216, %v1059, %v1227
    %v1229 = vsel %vm1218, %v1063, %v1228
    %v1230 = vsel %vm1220, %v1067, %v1229
    %v1231 = vsel %vm1222, %v1071, %v1230
    %v1232 = vsel %vm1224, %v1075, %v1231
    %v1233 = vsel %vm1212, %v1083, %v1079
    %v1234 = vsel %vm1214, %v1087, %v1233
    %v1235 = vsel %vm1216, %v1091, %v1234
    %v1236 = vsel %vm1218, %v1095, %v1235
    %v1237 = vsel %vm1220, %v1099, %v1236
    %v1238 = vsel %vm1222, %v1103, %v1237
    %v1239 = vsel %vm1224, %v1107, %v1238
    %v1240 = vsel %vm1212, %v1115, %v1111
    %v1241 = vsel %vm1214, %v1119, %v1240
    %v1242 = vsel %vm1216, %v1123, %v1241
    %v1243 = vsel %vm1218, %v1127, %v1242
    %v1244 = vsel %vm1220, %v1131, %v1243
    %v1245 = vsel %vm1222, %v1135, %v1244
    %v1246 = vsel %vm1224, %v1139, %v1245
    %v1247 = vsel %vm1212, %v1147, %v1143
    %v1248 = vsel %vm1214, %v1151, %v1247
    %v1249 = vsel %vm1216, %v1155, %v1248
    %v1250 = vsel %vm1218, %v1159, %v1249
    %v1251 = vsel %vm1220, %v1163, %v1250
    %v1252 = vsel %vm1222, %v1167, %v1251
    %v1253 = vsel %vm1224, %v1171, %v1252
    %v1254 = vsel %vm1212, %v1179, %v1175
    %v1255 = vsel %vm1214, %v1183, %v1254
    %v1256 = vsel %vm1216, %v1187, %v1255
    %v1257 = vsel %vm1218, %v1191, %v1256
    %v1258 = vsel %vm1220, %v1195, %v1257
    %v1259 = vsel %vm1222, %v1199, %v1258
    %v1260 = vsel %vm1224, %v1203, %v1259
    %v1261 = vsel %vm1212, %v1211, %v1207
    %v1262 = vcombine.low %v784, %v798
    %v1263 = vcombine.low %v806, %v808
    %v1264 = vcombine.low %v791, %v805
    %v1265 = vcombine.low %v807, %v809
    %v1267 = vunpack.c.l.s4 1966171168
    %v1268 = vunpack.c.0.s8 %v1267
    %v1269 = vlaneseq
    %v1270 = vshrl.u32 %v1269, 7
    %v1271 = vsub.s32 %v1268, %v1270
    %v1272 = vrot.slane %v1262, %v1271
    %v1274 = vunpack.c.l.s4 1966171168
    %v1275 = vunpack.c.0.s8 %v1274
    %v1276 = vlaneseq
    %v1277 = vshrl.u32 %v1276, 7
    %v1278 = vsub.s32 %v1275, %v1277
    %v1279 = vrot.slane %v1263, %v1278
    %v1281 = vunpack.c.l.s4 1966171168
    %v1282 = vunpack.c.0.s8 %v1281
    %v1283 = vlaneseq
    %v1284 = vshrl.u32 %v1283, 7
    %v1285 = vsub.s32 %v1282, %v1284
    %v1286 = vrot.slane %v1264, %v1285
    %v1288 = vunpack.c.l.s4 1966171168
    %v1289 = vunpack.c.0.s8 %v1288
    %v1290 = vlaneseq
    %v1291 = vshrl.u32 %v1290, 7
    %v1292 = vsub.s32 %v1289, %v1291
    %v1293 = vrot.slane %v1265, %v1292
    %v1294 = vcombine.low %v1272, %v1279
    %v1295 = vcombine.low %v1286, %v1293
    %v1297 = vunpack.c.l.s4 1966171168
    %v1298 = vunpack.c.0.s8 %v1297
    %v1299 = vlaneseq
    %v1300 = vshrl.u32 %v1299, 7
    %v1301 = vsub.s32 %v1298, %v1300
    %v1302 = vrot.slane %v1294, %v1301
    %v1304 = vunpack.c.l.s4 1966171168
    %v1305 = vunpack.c.0.s8 %v1304
    %v1306 = vlaneseq
    %v1307 = vshrl.u32 %v1306, 7
    %v1308 = vsub.s32 %v1305, %v1307
    %v1309 = vrot.slane %v1295, %v1308
    %v1310 = vcombine.low %v1302, %v1309
    %v1311 = vcombine.low %v784, %v784
    %v1312 = vcombine.low %v798, %v806
    %v1313 = vcombine.low %v808, %v791
    %v1314 = vcombine.low %v805, %v807
    %v1316 = vunpack.c.l.s4 1966171168
    %v1317 = vunpack.c.0.s8 %v1316
    %v1318 = vlaneseq
    %v1319 = vshrl.u32 %v1318, 7
    %v1320 = vsub.s32 %v1317, %v1319
    %v1321 = vrot.slane %v1311, %v1320
    %v1323 = vunpack.c.l.s4 1966171168
    %v1324 = vunpack.c.0.s8 %v1323
    %v1325 = vlaneseq
    %v1326 = vshrl.u32 %v1325, 7
    %v1327 = vsub.s32 %v1324, %v1326
    %v1328 = vrot.slane %v1312, %v1327
    %v1330 = vunpack.c.l.s4 1966171168
    %v1331 = vunpack.c.0.s8 %v1330
    %v1332 = vlaneseq
    %v1333 = vshrl.u32 %v1332, 7
    %v1334 = vsub.s32 %v1331, %v1333
    %v1335 = vrot.slane %v1313, %v1334
    %v1337 = vunpack.c.l.s4 1966171168
    %v1338 = vunpack.c.0.s8 %v1337
    %v1339 = vlaneseq
    %v1340 = vshrl.u32 %v1339, 7
    %v1341 = vsub.s32 %v1338, %v1340
    %v1342 = vrot.slane %v1314, %v1341
    %v1343 = vcombine.low %v1321, %v1328
    %v1344 = vcombine.low %v1335, %v1342
    %v1346 = vunpack.c.l.s4 1966171168
    %v1347 = vunpack.c.0.s8 %v1346
    %v1348 = vlaneseq
    %v1349 = vshrl.u32 %v1348, 7
    %v1350 = vsub.s32 %v1347, %v1349
    %v1351 = vrot.slane %v1343, %v1350
    %v1353 = vunpack.c.l.s4 1966171168
    %v1354 = vunpack.c.0.s8 %v1353
    %v1355 = vlaneseq
    %v1356 = vshrl.u32 %v1355, 7
    %v1357 = vsub.s32 %v1354, %v1356
    %v1358 = vrot.slane %v1344, %v1357
    %v1359 = vcombine.low %v1351, %v1358
    %v1360 = vcombine.low %v809, %v784
    %v1362 = vunpack.c.l.s4 1966171168
    %v1363 = vunpack.c.0.s8 %v1362
    %v1364 = vlaneseq
    %v1365 = vshrl.u32 %v1364, 7
    %v1366 = vsub.s32 %v1363, %v1365
    %v1367 = vrot.slane %v1360, %v1366
    %v1368 = vcombine.low %v1367, %v1328
    %v1370 = vunpack.c.l.s4 1966171168
    %v1371 = vunpack.c.0.s8 %v1370
    %v1372 = vlaneseq
    %v1373 = vshrl.u32 %v1372, 7
    %v1374 = vsub.s32 %v1371, %v1373
    %v1375 = vrot.slane %v1368, %v1374
    %v1376 = vcombine.low %v1375, %v1358
    %v1378 = vunpack.c.l.s4 1966171168
    %v1379 = vunpack.c.0.s8 %v1378
    %v1380 = vlaneseq
    %v1381 = vshrl.u32 %v1380, 7
    %v1382 = vsub.s32 %v1379, %v1381
    %v1383 = vrot.slane %v1367, %v1382
    %vm1388 = vcmask 39936
    %v1389 = vsel %vm1388, %v1225, 0
    %v1391 = vsel %vm1388, %v1232, 0
    %v1393 = vsel %vm1388, %v1239, 0
    %v1395 = vsel %vm1388, %v1246, 0
    %v1397 = vsel %vm1388, %v1253, 0
    %v1399 = vsel %vm1388, %v1260, 0
    %v1401 = vsel %vm1388, %v1261, 0
    %vm1403 = vcmask 1044480
    %v1405 = vsel %vm1403, %v754, 0
    %1407 = vmatprep.subr.mxu0 0.0
    %1408 = vmatpush1.msra.mxu0 0.0
    %1409 = vmatprep.subr.mxu0 0.0
    %1410 = vmatpush1.msra.mxu0 0.0
    %1411 = vmatprep.subr.mxu0 0.0
    %1412 = vmatpush1.msra.mxu0 0.0
    %1413 = vmatprep.subr.mxu0 0.0
    %1414 = vmatpush1.msra.mxu0 0.0
    %1415 = vmatprep.subr.mxu0 0.0
    %1416 = vmatpush1.msra.mxu0 0.0
    %1417 = vmatprep.subr.mxu0 0.0
    %1418 = vmatpush1.msra.mxu0 0.0
    %1419 = vmatprep.subr.mxu0 0.0
    %1420 = vmatpush1.msra.mxu0 0.0
    %1421 = vmatprep.subr.mxu0 0.0
    %1422 = vmatpush1.msra.mxu0 0.0
    %1423 = vmatprep.subr.mxu0 0.0
    %1424 = vmatpush1.msra.mxu0 0.0
    %1425 = vmatprep.subr.mxu0 0.0
    %1426 = vmatpush1.msra.mxu0 0.0
    %1427 = vmatprep.subr.mxu0 0.0
    %1428 = vmatpush1.msra.mxu0 0.0
    %1429 = vmatprep.subr.mxu0 0.0
    %1430 = vmatpush1.msra.mxu0 0.0
    %1431 = vmatprep.subr.mxu0 0.0
    %1432 = vmatpush1.msra.mxu0 0.0
    %1433 = vmatprep.subr.mxu0 0.0
    %1434 = vmatpush1.msra.mxu0 0.0
    %1435 = vmatprep.subr.mxu0 0.0
    %1436 = vmatpush1.msra.mxu0 0.0
    %1437 = vmatprep.subr.mxu0 0.0
    %1438 = vmatpush1.msra.mxu0 %v1405
    %1439 = vmatprep.subr.mxu0 0.0
    %1440 = vmatpush2.msra.mxu0 0.0
    %1441 = vmatprep.subr.mxu0 0.0
    %1442 = vmatpush2.msra.mxu0 0.0
    %1443 = vmatprep.subr.mxu0 0.0
    %1444 = vmatpush2.msra.mxu0 0.0
    %1445 = vmatprep.subr.mxu0 0.0
    %1446 = vmatpush2.msra.mxu0 0.0
    %1447 = vmatprep.subr.mxu0 0.0
    %1448 = vmatpush2.msra.mxu0 0.0
    %1449 = vmatprep.subr.mxu0 0.0
    %1450 = vmatpush2.msra.mxu0 0.0
    %1451 = vmatprep.subr.mxu0 0.0
    %1452 = vmatpush2.msra.mxu0 0.0
    %1453 = vmatprep.subr.mxu0 0.0
    %1454 = vmatpush2.msra.mxu0 0.0
    %1455 = vmatprep.subr.mxu0 0.0
    %1456 = vmatpush2.msra.mxu0 0.0
    %1457 = vmatprep.subr.mxu0 0.0
    %1458 = vmatpush2.msra.mxu0 0.0
    %1459 = vmatprep.subr.mxu0 0.0
    %1460 = vmatpush2.msra.mxu0 0.0
    %1461 = vmatprep.subr.mxu0 0.0
    %1462 = vmatpush2.msra.mxu0 0.0
    %1463 = vmatprep.subr.mxu0 0.0
    %1464 = vmatpush2.msra.mxu0 0.0
    %1465 = vmatprep.subr.mxu0 0.0
    %1466 = vmatpush2.msra.mxu0 0.0
    %1467 = vmatprep.subr.mxu0 0.0
    %1468 = vmatpush2.msra.mxu0 0.0
    %1469 = vmatprep.subr.mxu0 0.0
    %1470 = vmatpush2.msra.mxu0 0.0
    %1471 = vmatprep.mubr.f32.mxu0 0.0
    %1472 = vmatmul.mubr.f32.gmra.mxu0 %v1389
    %v1473 = vpop.f32.mrf.mxu0
    %v1474 = vadd.f32 %v1310, %v1473
    %v1475 = vpop.f32.mrf.mxu0
    %1476 = vmatprep.mubr.f32.mxu0 0.0
    %1477 = vmatmul.mubr.f32.gmra.mxu0 %v1391
    %v1478 = vpop.f32.mrf.mxu0
    %v1479 = vadd.f32 %v1310, %v1478
    %v1480 = vpop.f32.mrf.mxu0
    %1481 = vmatprep.mubr.f32.mxu0 0.0
    %1482 = vmatmul.mubr.f32.gmra.mxu0 %v1393
    %v1483 = vpop.f32.mrf.mxu0
    %v1484 = vadd.f32 %v1310, %v1483
    %v1485 = vpop.f32.mrf.mxu0
    %1486 = vmatprep.mubr.f32.mxu0 0.0
    %1487 = vmatmul.mubr.f32.gmra.mxu0 %v1395
    %v1488 = vpop.f32.mrf.mxu0
    %v1489 = vadd.f32 %v1359, %v1488
    %v1490 = vpop.f32.mrf.mxu0
    %1491 = vmatprep.mubr.f32.mxu0 0.0
    %1492 = vmatmul.mubr.f32.gmra.mxu0 %v1397
    %v1493 = vpop.f32.mrf.mxu0
    %v1494 = vadd.f32 %v1376, %v1493
    %v1495 = vpop.f32.mrf.mxu0
    %1496 = vmatprep.mubr.f32.mxu0 0.0
    %1497 = vmatmul.mubr.f32.gmra.mxu0 %v1399
    %v1498 = vpop.f32.mrf.mxu0
    %v1499 = vadd.f32 %v1376, %v1498
    %v1500 = vpop.f32.mrf.mxu0
    %1501 = vmatprep.mubr.f32.mxu0 0.0
    %1502 = vmatmul.mubr.f32.gmra.mxu0 %v1401
    %v1503 = vpop.f32.mrf.mxu0
    %v1504 = vadd.f32 %v1383, %v1503
    %v1505 = vpop.f32.mrf.mxu0
    %1506 = vdwg.mxu0
    %v1514 = vcombine.high %v1474, %v1474
    %v1516 = vunpack.c.l.s4 1966171168
    %v1517 = vunpack.c.0.s8 %v1516
    %v1518 = vlaneseq
    %v1519 = vshrl.u32 %v1518, 7
    %v1520 = vsub.s32 %v1517, %v1519
    %v1521 = vrot.slane %v1474, %v1520
    %v1523 = vunpack.c.l.s4 1966171168
    %v1524 = vunpack.c.0.s8 %v1523
    %v1525 = vlaneseq
    %v1526 = vshrl.u32 %v1525, 7
    %v1527 = vsub.s32 %v1524, %v1526
    %v1528 = vrot.slane %v1514, %v1527
    %v1529 = vcombine.high %v1521, %v1521
    %v1530 = vcombine.high %v1528, %v1528
    %v1532 = vunpack.c.l.s4 1966171168
    %v1533 = vunpack.c.0.s8 %v1532
    %v1534 = vlaneseq
    %v1535 = vshrl.u32 %v1534, 7
    %v1536 = vsub.s32 %v1533, %v1535
    %v1537 = vrot.slane %v1521, %v1536
    %v1539 = vunpack.c.l.s4 1966171168
    %v1540 = vunpack.c.0.s8 %v1539
    %v1541 = vlaneseq
    %v1542 = vshrl.u32 %v1541, 7
    %v1543 = vsub.s32 %v1540, %v1542
    %v1544 = vrot.slane %v1528, %v1543
    %v1546 = vunpack.c.l.s4 1966171168
    %v1547 = vunpack.c.0.s8 %v1546
    %v1548 = vlaneseq
    %v1549 = vshrl.u32 %v1548, 7
    %v1550 = vsub.s32 %v1547, %v1549
    %v1551 = vrot.slane %v1529, %v1550
    %v1553 = vunpack.c.l.s4 1966171168
    %v1554 = vunpack.c.0.s8 %v1553
    %v1555 = vlaneseq
    %v1556 = vshrl.u32 %v1555, 7
    %v1557 = vsub.s32 %v1554, %v1556
    %v1558 = vrot.slane %v1530, %v1557
    %v1559 = vcombine.high %v1537, %v1537
    %v1560 = vcombine.high %v1544, %v1544
    %v1561 = vcombine.high %v1551, %v1551
    %v1562 = vcombine.high %v1558, %v1558
    %v1563 = vcombine.high %v1479, %v1479
    %v1565 = vunpack.c.l.s4 1966171168
    %v1566 = vunpack.c.0.s8 %v1565
    %v1567 = vlaneseq
    %v1568 = vshrl.u32 %v1567, 7
    %v1569 = vsub.s32 %v1566, %v1568
    %v1570 = vrot.slane %v1479, %v1569
    %v1572 = vunpack.c.l.s4 1966171168
    %v1573 = vunpack.c.0.s8 %v1572
    %v1574 = vlaneseq
    %v1575 = vshrl.u32 %v1574, 7
    %v1576 = vsub.s32 %v1573, %v1575
    %v1577 = vrot.slane %v1563, %v1576
    %v1578 = vcombine.high %v1570, %v1570
    %v1579 = vcombine.high %v1577, %v1577
    %v1581 = vunpack.c.l.s4 1966171168
    %v1582 = vunpack.c.0.s8 %v1581
    %v1583 = vlaneseq
    %v1584 = vshrl.u32 %v1583, 7
    %v1585 = vsub.s32 %v1582, %v1584
    %v1586 = vrot.slane %v1570, %v1585
    %v1588 = vunpack.c.l.s4 1966171168
    %v1589 = vunpack.c.0.s8 %v1588
    %v1590 = vlaneseq
    %v1591 = vshrl.u32 %v1590, 7
    %v1592 = vsub.s32 %v1589, %v1591
    %v1593 = vrot.slane %v1577, %v1592
    %v1595 = vunpack.c.l.s4 1966171168
    %v1596 = vunpack.c.0.s8 %v1595
    %v1597 = vlaneseq
    %v1598 = vshrl.u32 %v1597, 7
    %v1599 = vsub.s32 %v1596, %v1598
    %v1600 = vrot.slane %v1578, %v1599
    %v1602 = vunpack.c.l.s4 1966171168
    %v1603 = vunpack.c.0.s8 %v1602
    %v1604 = vlaneseq
    %v1605 = vshrl.u32 %v1604, 7
    %v1606 = vsub.s32 %v1603, %v1605
    %v1607 = vrot.slane %v1579, %v1606
    %v1608 = vcombine.high %v1586, %v1586
    %v1609 = vcombine.high %v1593, %v1593
    %v1610 = vcombine.high %v1600, %v1600
    %v1611 = vcombine.high %v1607, %v1607
    %v1612 = vcombine.high %v1484, %v1484
    %v1614 = vunpack.c.l.s4 1966171168
    %v1615 = vunpack.c.0.s8 %v1614
    %v1616 = vlaneseq
    %v1617 = vshrl.u32 %v1616, 7
    %v1618 = vsub.s32 %v1615, %v1617
    %v1619 = vrot.slane %v1484, %v1618
    %v1621 = vunpack.c.l.s4 1966171168
    %v1622 = vunpack.c.0.s8 %v1621
    %v1623 = vlaneseq
    %v1624 = vshrl.u32 %v1623, 7
    %v1625 = vsub.s32 %v1622, %v1624
    %v1626 = vrot.slane %v1612, %v1625
    %v1627 = vcombine.high %v1619, %v1619
    %v1628 = vcombine.high %v1626, %v1626
    %v1630 = vunpack.c.l.s4 1966171168
    %v1631 = vunpack.c.0.s8 %v1630
    %v1632 = vlaneseq
    %v1633 = vshrl.u32 %v1632, 7
    %v1634 = vsub.s32 %v1631, %v1633
    %v1635 = vrot.slane %v1619, %v1634
    %v1637 = vunpack.c.l.s4 1966171168
    %v1638 = vunpack.c.0.s8 %v1637
    %v1639 = vlaneseq
    %v1640 = vshrl.u32 %v1639, 7
    %v1641 = vsub.s32 %v1638, %v1640
    %v1642 = vrot.slane %v1626, %v1641
    %v1644 = vunpack.c.l.s4 1966171168
    %v1645 = vunpack.c.0.s8 %v1644
    %v1646 = vlaneseq
    %v1647 = vshrl.u32 %v1646, 7
    %v1648 = vsub.s32 %v1645, %v1647
    %v1649 = vrot.slane %v1627, %v1648
    %v1651 = vunpack.c.l.s4 1966171168
    %v1652 = vunpack.c.0.s8 %v1651
    %v1653 = vlaneseq
    %v1654 = vshrl.u32 %v1653, 7
    %v1655 = vsub.s32 %v1652, %v1654
    %v1656 = vrot.slane %v1628, %v1655
    %v1657 = vcombine.high %v1635, %v1635
    %v1658 = vcombine.high %v1642, %v1642
    %v1659 = vcombine.high %v1649, %v1649
    %v1660 = vcombine.high %v1656, %v1656
    %v1661 = vcombine.high %v1489, %v1489
    %v1663 = vunpack.c.l.s4 1966171168
    %v1664 = vunpack.c.0.s8 %v1663
    %v1665 = vlaneseq
    %v1666 = vshrl.u32 %v1665, 7
    %v1667 = vsub.s32 %v1664, %v1666
    %v1668 = vrot.slane %v1489, %v1667
    %v1670 = vunpack.c.l.s4 1966171168
    %v1671 = vunpack.c.0.s8 %v1670
    %v1672 = vlaneseq
    %v1673 = vshrl.u32 %v1672, 7
    %v1674 = vsub.s32 %v1671, %v1673
    %v1675 = vrot.slane %v1661, %v1674
    %v1676 = vcombine.high %v1668, %v1668
    %v1677 = vcombine.high %v1675, %v1675
    %v1679 = vunpack.c.l.s4 1966171168
    %v1680 = vunpack.c.0.s8 %v1679
    %v1681 = vlaneseq
    %v1682 = vshrl.u32 %v1681, 7
    %v1683 = vsub.s32 %v1680, %v1682
    %v1684 = vrot.slane %v1668, %v1683
    %v1686 = vunpack.c.l.s4 1966171168
    %v1687 = vunpack.c.0.s8 %v1686
    %v1688 = vlaneseq
    %v1689 = vshrl.u32 %v1688, 7
    %v1690 = vsub.s32 %v1687, %v1689
    %v1691 = vrot.slane %v1675, %v1690
    %v1693 = vunpack.c.l.s4 1966171168
    %v1694 = vunpack.c.0.s8 %v1693
    %v1695 = vlaneseq
    %v1696 = vshrl.u32 %v1695, 7
    %v1697 = vsub.s32 %v1694, %v1696
    %v1698 = vrot.slane %v1676, %v1697
    %v1700 = vunpack.c.l.s4 1966171168
    %v1701 = vunpack.c.0.s8 %v1700
    %v1702 = vlaneseq
    %v1703 = vshrl.u32 %v1702, 7
    %v1704 = vsub.s32 %v1701, %v1703
    %v1705 = vrot.slane %v1677, %v1704
    %v1706 = vcombine.high %v1684, %v1684
    %v1707 = vcombine.high %v1691, %v1691
    %v1708 = vcombine.high %v1698, %v1698
    %v1709 = vcombine.high %v1705, %v1705
    %v1710 = vcombine.high %v1494, %v1494
    %v1712 = vunpack.c.l.s4 1966171168
    %v1713 = vunpack.c.0.s8 %v1712
    %v1714 = vlaneseq
    %v1715 = vshrl.u32 %v1714, 7
    %v1716 = vsub.s32 %v1713, %v1715
    %v1717 = vrot.slane %v1494, %v1716
    %v1719 = vunpack.c.l.s4 1966171168
    %v1720 = vunpack.c.0.s8 %v1719
    %v1721 = vlaneseq
    %v1722 = vshrl.u32 %v1721, 7
    %v1723 = vsub.s32 %v1720, %v1722
    %v1724 = vrot.slane %v1710, %v1723
    %v1725 = vcombine.high %v1717, %v1717
    %v1726 = vcombine.high %v1724, %v1724
    %v1728 = vunpack.c.l.s4 1966171168
    %v1729 = vunpack.c.0.s8 %v1728
    %v1730 = vlaneseq
    %v1731 = vshrl.u32 %v1730, 7
    %v1732 = vsub.s32 %v1729, %v1731
    %v1733 = vrot.slane %v1717, %v1732
    %v1735 = vunpack.c.l.s4 1966171168
    %v1736 = vunpack.c.0.s8 %v1735
    %v1737 = vlaneseq
    %v1738 = vshrl.u32 %v1737, 7
    %v1739 = vsub.s32 %v1736, %v1738
    %v1740 = vrot.slane %v1724, %v1739
    %v1742 = vunpack.c.l.s4 1966171168
    %v1743 = vunpack.c.0.s8 %v1742
    %v1744 = vlaneseq
    %v1745 = vshrl.u32 %v1744, 7
    %v1746 = vsub.s32 %v1743, %v1745
    %v1747 = vrot.slane %v1725, %v1746
    %v1749 = vunpack.c.l.s4 1966171168
    %v1750 = vunpack.c.0.s8 %v1749
    %v1751 = vlaneseq
    %v1752 = vshrl.u32 %v1751, 7
    %v1753 = vsub.s32 %v1750, %v1752
    %v1754 = vrot.slane %v1726, %v1753
    %v1755 = vcombine.high %v1733, %v1733
    %v1756 = vcombine.high %v1740, %v1740
    %v1757 = vcombine.high %v1747, %v1747
    %v1758 = vcombine.high %v1754, %v1754
    %v1759 = vcombine.high %v1499, %v1499
    %v1761 = vunpack.c.l.s4 1966171168
    %v1762 = vunpack.c.0.s8 %v1761
    %v1763 = vlaneseq
    %v1764 = vshrl.u32 %v1763, 7
    %v1765 = vsub.s32 %v1762, %v1764
    %v1766 = vrot.slane %v1499, %v1765
    %v1768 = vunpack.c.l.s4 1966171168
    %v1769 = vunpack.c.0.s8 %v1768
    %v1770 = vlaneseq
    %v1771 = vshrl.u32 %v1770, 7
    %v1772 = vsub.s32 %v1769, %v1771
    %v1773 = vrot.slane %v1759, %v1772
    %v1774 = vcombine.high %v1766, %v1766
    %v1775 = vcombine.high %v1773, %v1773
    %v1777 = vunpack.c.l.s4 1966171168
    %v1778 = vunpack.c.0.s8 %v1777
    %v1779 = vlaneseq
    %v1780 = vshrl.u32 %v1779, 7
    %v1781 = vsub.s32 %v1778, %v1780
    %v1782 = vrot.slane %v1766, %v1781
    %v1784 = vunpack.c.l.s4 1966171168
    %v1785 = vunpack.c.0.s8 %v1784
    %v1786 = vlaneseq
    %v1787 = vshrl.u32 %v1786, 7
    %v1788 = vsub.s32 %v1785, %v1787
    %v1789 = vrot.slane %v1773, %v1788
    %v1791 = vunpack.c.l.s4 1966171168
    %v1792 = vunpack.c.0.s8 %v1791
    %v1793 = vlaneseq
    %v1794 = vshrl.u32 %v1793, 7
    %v1795 = vsub.s32 %v1792, %v1794
    %v1796 = vrot.slane %v1774, %v1795
    %v1798 = vunpack.c.l.s4 1966171168
    %v1799 = vunpack.c.0.s8 %v1798
    %v1800 = vlaneseq
    %v1801 = vshrl.u32 %v1800, 7
    %v1802 = vsub.s32 %v1799, %v1801
    %v1803 = vrot.slane %v1775, %v1802
    %v1804 = vcombine.high %v1782, %v1782
    %v1805 = vcombine.high %v1789, %v1789
    %v1806 = vcombine.high %v1796, %v1796
    %v1807 = vcombine.high %v1803, %v1803
    %v1809 = vunpack.c.l.s4 1966171168
    %v1810 = vunpack.c.0.s8 %v1809
    %v1811 = vlaneseq
    %v1812 = vshrl.u32 %v1811, 7
    %v1813 = vsub.s32 %v1810, %v1812
    %v1814 = vrot.slane %v1504, %v1813
    %v1815 = vcombine.high %v1814, %v1814
    %v1817 = vunpack.c.l.s4 1966171168
    %v1818 = vunpack.c.0.s8 %v1817
    %v1819 = vlaneseq
    %v1820 = vshrl.u32 %v1819, 7
    %v1821 = vsub.s32 %v1818, %v1820
    %v1822 = vrot.slane %v1814, %v1821
    %v1824 = vunpack.c.l.s4 1966171168
    %v1825 = vunpack.c.0.s8 %v1824
    %v1826 = vlaneseq
    %v1827 = vshrl.u32 %v1826, 7
    %v1828 = vsub.s32 %v1825, %v1827
    %v1829 = vrot.slane %v1815, %v1828
    %v1880 = vmax.f32 %v1537, 0.0
    %v1881 = vmax.f32 %v1551, 0.0
    %v1882 = vmax.f32 %v1559, 0.0
    %v1883 = vmax.f32 %v1561, 0.0
    %v1884 = vmax.f32 %v1544, 0.0
    %v1885 = vmax.f32 %v1558, 0.0
    %v1886 = vmax.f32 %v1560, 0.0
    %v1887 = vmax.f32 %v1562, 0.0
    %v1888 = vmax.f32 %v1586, 0.0
    %v1889 = vmax.f32 %v1600, 0.0
    %v1890 = vmax.f32 %v1608, 0.0
    %v1891 = vmax.f32 %v1610, 0.0
    %v1892 = vmax.f32 %v1593, 0.0
    %v1893 = vmax.f32 %v1607, 0.0
    %v1894 = vmax.f32 %v1609, 0.0
    %v1895 = vmax.f32 %v1611, 0.0
    %v1896 = vmax.f32 %v1635, 0.0
    %v1897 = vmax.f32 %v1649, 0.0
    %v1898 = vmax.f32 %v1657, 0.0
    %v1899 = vmax.f32 %v1659, 0.0
    %v1900 = vmax.f32 %v1642, 0.0
    %v1901 = vmax.f32 %v1656, 0.0
    %v1902 = vmax.f32 %v1658, 0.0
    %v1903 = vmax.f32 %v1660, 0.0
    %v1904 = vmax.f32 %v1684, 0.0
    %v1905 = vmax.f32 %v1698, 0.0
    %v1906 = vmax.f32 %v1706, 0.0
    %v1907 = vmax.f32 %v1708, 0.0
    %v1908 = vmax.f32 %v1691, 0.0
    %v1909 = vmax.f32 %v1705, 0.0
    %v1910 = vmax.f32 %v1707, 0.0
    %v1911 = vmax.f32 %v1709, 0.0
    %v1912 = vmax.f32 %v1733, 0.0
    %v1913 = vmax.f32 %v1747, 0.0
    %v1914 = vmax.f32 %v1755, 0.0
    %v1915 = vmax.f32 %v1757, 0.0
    %v1916 = vmax.f32 %v1740, 0.0
    %v1917 = vmax.f32 %v1754, 0.0
    %v1918 = vmax.f32 %v1756, 0.0
    %v1919 = vmax.f32 %v1758, 0.0
    %v1920 = vmax.f32 %v1782, 0.0
    %v1921 = vmax.f32 %v1796, 0.0
    %v1922 = vmax.f32 %v1804, 0.0
    %v1923 = vmax.f32 %v1806, 0.0
    %v1924 = vmax.f32 %v1789, 0.0
    %v1925 = vmax.f32 %v1803, 0.0
    %v1926 = vmax.f32 %v1805, 0.0
    %v1927 = vmax.f32 %v1807, 0.0
    %v1928 = vmax.f32 %v1822, 0.0
    %v1929 = vmax.f32 %v1829, 0.0
    %v1972 = vcombine.low %v1880, %v1881
    %v1973 = vcombine.low %v1882, %v1883
    %v1974 = vcombine.low %v1884, %v1885
    %v1975 = vcombine.low %v1886, %v1887
    %v1977 = vunpack.c.l.s4 1966171168
    %v1978 = vunpack.c.0.s8 %v1977
    %v1979 = vlaneseq
    %v1980 = vshrl.u32 %v1979, 7
    %v1981 = vsub.s32 %v1978, %v1980
    %v1982 = vrot.slane %v1972, %v1981
    %v1984 = vunpack.c.l.s4 1966171168
    %v1985 = vunpack.c.0.s8 %v1984
    %v1986 = vlaneseq
    %v1987 = vshrl.u32 %v1986, 7
    %v1988 = vsub.s32 %v1985, %v1987
    %v1989 = vrot.slane %v1973, %v1988
    %v1991 = vunpack.c.l.s4 1966171168
    %v1992 = vunpack.c.0.s8 %v1991
    %v1993 = vlaneseq
    %v1994 = vshrl.u32 %v1993, 7
    %v1995 = vsub.s32 %v1992, %v1994
    %v1996 = vrot.slane %v1974, %v1995
    %v1998 = vunpack.c.l.s4 1966171168
    %v1999 = vunpack.c.0.s8 %v1998
    %v2000 = vlaneseq
    %v2001 = vshrl.u32 %v2000, 7
    %v2002 = vsub.s32 %v1999, %v2001
    %v2003 = vrot.slane %v1975, %v2002
    %v2004 = vcombine.low %v1982, %v1989
    %v2005 = vcombine.low %v1996, %v2003
    %v2007 = vunpack.c.l.s4 1966171168
    %v2008 = vunpack.c.0.s8 %v2007
    %v2009 = vlaneseq
    %v2010 = vshrl.u32 %v2009, 7
    %v2011 = vsub.s32 %v2008, %v2010
    %v2012 = vrot.slane %v2004, %v2011
    %v2014 = vunpack.c.l.s4 1966171168
    %v2015 = vunpack.c.0.s8 %v2014
    %v2016 = vlaneseq
    %v2017 = vshrl.u32 %v2016, 7
    %v2018 = vsub.s32 %v2015, %v2017
    %v2019 = vrot.slane %v2005, %v2018
    %v2020 = vcombine.low %v2012, %v2019
    %v2021 = vcombine.low %v1888, %v1889
    %v2022 = vcombine.low %v1890, %v1891
    %v2023 = vcombine.low %v1892, %v1893
    %v2024 = vcombine.low %v1894, %v1895
    %v2026 = vunpack.c.l.s4 1966171168
    %v2027 = vunpack.c.0.s8 %v2026
    %v2028 = vlaneseq
    %v2029 = vshrl.u32 %v2028, 7
    %v2030 = vsub.s32 %v2027, %v2029
    %v2031 = vrot.slane %v2021, %v2030
    %v2033 = vunpack.c.l.s4 1966171168
    %v2034 = vunpack.c.0.s8 %v2033
    %v2035 = vlaneseq
    %v2036 = vshrl.u32 %v2035, 7
    %v2037 = vsub.s32 %v2034, %v2036
    %v2038 = vrot.slane %v2022, %v2037
    %v2040 = vunpack.c.l.s4 1966171168
    %v2041 = vunpack.c.0.s8 %v2040
    %v2042 = vlaneseq
    %v2043 = vshrl.u32 %v2042, 7
    %v2044 = vsub.s32 %v2041, %v2043
    %v2045 = vrot.slane %v2023, %v2044
    %v2047 = vunpack.c.l.s4 1966171168
    %v2048 = vunpack.c.0.s8 %v2047
    %v2049 = vlaneseq
    %v2050 = vshrl.u32 %v2049, 7
    %v2051 = vsub.s32 %v2048, %v2050
    %v2052 = vrot.slane %v2024, %v2051
    %v2053 = vcombine.low %v2031, %v2038
    %v2054 = vcombine.low %v2045, %v2052
    %v2056 = vunpack.c.l.s4 1966171168
    %v2057 = vunpack.c.0.s8 %v2056
    %v2058 = vlaneseq
    %v2059 = vshrl.u32 %v2058, 7
    %v2060 = vsub.s32 %v2057, %v2059
    %v2061 = vrot.slane %v2053, %v2060
    %v2063 = vunpack.c.l.s4 1966171168
    %v2064 = vunpack.c.0.s8 %v2063
    %v2065 = vlaneseq
    %v2066 = vshrl.u32 %v2065, 7
    %v2067 = vsub.s32 %v2064, %v2066
    %v2068 = vrot.slane %v2054, %v2067
    %v2069 = vcombine.low %v2061, %v2068
    %v2070 = vcombine.low %v1896, %v1897
    %v2071 = vcombine.low %v1898, %v1899
    %v2073 = vunpack.c.l.s4 1966171168
    %v2074 = vunpack.c.0.s8 %v2073
    %v2075 = vlaneseq
    %v2076 = vshrl.u32 %v2075, 7
    %v2077 = vsub.s32 %v2074, %v2076
    %v2078 = vrot.slane %v2070, %v2077
    %v2080 = vunpack.c.l.s4 1966171168
    %v2081 = vunpack.c.0.s8 %v2080
    %v2082 = vlaneseq
    %v2083 = vshrl.u32 %v2082, 7
    %v2084 = vsub.s32 %v2081, %v2083
    %v2085 = vrot.slane %v2071, %v2084
    %v2087 = vunpack.c.l.s4 1966171168
    %v2088 = vunpack.c.0.s8 %v2087
    %v2089 = vlaneseq
    %v2090 = vshrl.u32 %v2089, 7
    %v2091 = vsub.s32 %v2088, %v2090
    %v2092 = vrot.slane %v1900, %v2091
    %v2093 = vcombine.low %v2078, %v2085
    %v2095 = vunpack.c.l.s4 1966171168
    %v2096 = vunpack.c.0.s8 %v2095
    %v2097 = vlaneseq
    %v2098 = vshrl.u32 %v2097, 7
    %v2099 = vsub.s32 %v2096, %v2098
    %v2100 = vrot.slane %v2093, %v2099
    %v2102 = vunpack.c.l.s4 1966171168
    %v2103 = vunpack.c.0.s8 %v2102
    %v2104 = vlaneseq
    %v2105 = vshrl.u32 %v2104, 7
    %v2106 = vsub.s32 %v2103, %v2105
    %v2107 = vrot.slane %v2092, %v2106
    %v2108 = vcombine.low %v2100, %v2107
    %v2109 = vcombine.low %v1905, %v1906
    %v2110 = vcombine.low %v1907, %v1908
    %v2111 = vcombine.low %v1909, %v1910
    %v2112 = vcombine.low %v1911, %v1912
    %v2114 = vunpack.c.l.s4 1966171168
    %v2115 = vunpack.c.0.s8 %v2114
    %v2116 = vlaneseq
    %v2117 = vshrl.u32 %v2116, 7
    %v2118 = vsub.s32 %v2115, %v2117
    %v2119 = vrot.slane %v2109, %v2118
    %v2121 = vunpack.c.l.s4 1966171168
    %v2122 = vunpack.c.0.s8 %v2121
    %v2123 = vlaneseq
    %v2124 = vshrl.u32 %v2123, 7
    %v2125 = vsub.s32 %v2122, %v2124
    %v2126 = vrot.slane %v2110, %v2125
    %v2128 = vunpack.c.l.s4 1966171168
    %v2129 = vunpack.c.0.s8 %v2128
    %v2130 = vlaneseq
    %v2131 = vshrl.u32 %v2130, 7
    %v2132 = vsub.s32 %v2129, %v2131
    %v2133 = vrot.slane %v2111, %v2132
    %v2135 = vunpack.c.l.s4 1966171168
    %v2136 = vunpack.c.0.s8 %v2135
    %v2137 = vlaneseq
    %v2138 = vshrl.u32 %v2137, 7
    %v2139 = vsub.s32 %v2136, %v2138
    %v2140 = vrot.slane %v2112, %v2139
    %v2141 = vcombine.low %v2119, %v2126
    %v2142 = vcombine.low %v2133, %v2140
    %v2144 = vunpack.c.l.s4 1966171168
    %v2145 = vunpack.c.0.s8 %v2144
    %v2146 = vlaneseq
    %v2147 = vshrl.u32 %v2146, 7
    %v2148 = vsub.s32 %v2145, %v2147
    %v2149 = vrot.slane %v2141, %v2148
    %v2151 = vunpack.c.l.s4 1966171168
    %v2152 = vunpack.c.0.s8 %v2151
    %v2153 = vlaneseq
    %v2154 = vshrl.u32 %v2153, 7
    %v2155 = vsub.s32 %v2152, %v2154
    %v2156 = vrot.slane %v2142, %v2155
    %v2157 = vcombine.low %v2149, %v2156
    %v2158 = vcombine.low %v1913, %v1914
    %v2159 = vcombine.low %v1915, %v1916
    %v2160 = vcombine.low %v1917, %v1918
    %v2161 = vcombine.low %v1919, %v1920
    %v2163 = vunpack.c.l.s4 1966171168
    %v2164 = vunpack.c.0.s8 %v2163
    %v2165 = vlaneseq
    %v2166 = vshrl.u32 %v2165, 7
    %v2167 = vsub.s32 %v2164, %v2166
    %v2168 = vrot.slane %v2158, %v2167
    %v2170 = vunpack.c.l.s4 1966171168
    %v2171 = vunpack.c.0.s8 %v2170
    %v2172 = vlaneseq
    %v2173 = vshrl.u32 %v2172, 7
    %v2174 = vsub.s32 %v2171, %v2173
    %v2175 = vrot.slane %v2159, %v2174
    %v2177 = vunpack.c.l.s4 1966171168
    %v2178 = vunpack.c.0.s8 %v2177
    %v2179 = vlaneseq
    %v2180 = vshrl.u32 %v2179, 7
    %v2181 = vsub.s32 %v2178, %v2180
    %v2182 = vrot.slane %v2160, %v2181
    %v2184 = vunpack.c.l.s4 1966171168
    %v2185 = vunpack.c.0.s8 %v2184
    %v2186 = vlaneseq
    %v2187 = vshrl.u32 %v2186, 7
    %v2188 = vsub.s32 %v2185, %v2187
    %v2189 = vrot.slane %v2161, %v2188
    %v2190 = vcombine.low %v2168, %v2175
    %v2191 = vcombine.low %v2182, %v2189
    %v2193 = vunpack.c.l.s4 1966171168
    %v2194 = vunpack.c.0.s8 %v2193
    %v2195 = vlaneseq
    %v2196 = vshrl.u32 %v2195, 7
    %v2197 = vsub.s32 %v2194, %v2196
    %v2198 = vrot.slane %v2190, %v2197
    %v2200 = vunpack.c.l.s4 1966171168
    %v2201 = vunpack.c.0.s8 %v2200
    %v2202 = vlaneseq
    %v2203 = vshrl.u32 %v2202, 7
    %v2204 = vsub.s32 %v2201, %v2203
    %v2205 = vrot.slane %v2191, %v2204
    %v2206 = vcombine.low %v2198, %v2205
    %v2207 = vcombine.low %v1921, %v1922
    %v2208 = vcombine.low %v1923, %v1924
    %v2210 = vunpack.c.l.s4 1966171168
    %v2211 = vunpack.c.0.s8 %v2210
    %v2212 = vlaneseq
    %v2213 = vshrl.u32 %v2212, 7
    %v2214 = vsub.s32 %v2211, %v2213
    %v2215 = vrot.slane %v2207, %v2214
    %v2217 = vunpack.c.l.s4 1966171168
    %v2218 = vunpack.c.0.s8 %v2217
    %v2219 = vlaneseq
    %v2220 = vshrl.u32 %v2219, 7
    %v2221 = vsub.s32 %v2218, %v2220
    %v2222 = vrot.slane %v2208, %v2221
    %v2224 = vunpack.c.l.s4 1966171168
    %v2225 = vunpack.c.0.s8 %v2224
    %v2226 = vlaneseq
    %v2227 = vshrl.u32 %v2226, 7
    %v2228 = vsub.s32 %v2225, %v2227
    %v2229 = vrot.slane %v1925, %v2228
    %v2230 = vcombine.low %v2215, %v2222
    %v2232 = vunpack.c.l.s4 1966171168
    %v2233 = vunpack.c.0.s8 %v2232
    %v2234 = vlaneseq
    %v2235 = vshrl.u32 %v2234, 7
    %v2236 = vsub.s32 %v2233, %v2235
    %v2237 = vrot.slane %v2230, %v2236
    %v2239 = vunpack.c.l.s4 1966171168
    %v2240 = vunpack.c.0.s8 %v2239
    %v2241 = vlaneseq
    %v2242 = vshrl.u32 %v2241, 7
    %v2243 = vsub.s32 %v2240, %v2242
    %v2244 = vrot.slane %v2229, %v2243
    %v2245 = vcombine.low %v2237, %v2244
    %vm2252 = vcmask 162816
    %2253 = vst.msk [vmem:[#allocation2] sm:$0xff] %vm2252, %v2020
    %2254 = vst.msk [vmem:[#allocation2 + $0x10] sm:$0xff] %vm2252, %v2069
    %vm2255 = vcmask 159744
    %2256 = vst.msk [vmem:[#allocation2 + $0x20] sm:$0x1f] %vm2255, %v2108
    %2257 = vst.msk [vmem:[#allocation2 + $0x30] sm:$0xff] %vm2252, %v2157
    %2258 = vst.msk [vmem:[#allocation2 + $0x40] sm:$0xff] %vm2252, %v2206
    %2259 = vst.msk [vmem:[#allocation2 + $0x50] sm:$0x1f] %vm2255, %v2245
    %v2262 = vcombine.low %v1881, %v1882
    %v2263 = vcombine.low %v1883, %v1884
    %v2264 = vcombine.low %v1885, %v1886
    %v2265 = vcombine.low %v1887, %v1888
    %v2267 = vunpack.c.l.s4 1966171168
    %v2268 = vunpack.c.0.s8 %v2267
    %v2269 = vlaneseq
    %v2270 = vshrl.u32 %v2269, 7
    %v2271 = vsub.s32 %v2268, %v2270
    %v2272 = vrot.slane %v2262, %v2271
    %v2274 = vunpack.c.l.s4 1966171168
    %v2275 = vunpack.c.0.s8 %v2274
    %v2276 = vlaneseq
    %v2277 = vshrl.u32 %v2276, 7
    %v2278 = vsub.s32 %v2275, %v2277
    %v2279 = vrot.slane %v2263, %v2278
    %v2281 = vunpack.c.l.s4 1966171168
    %v2282 = vunpack.c.0.s8 %v2281
    %v2283 = vlaneseq
    %v2284 = vshrl.u32 %v2283, 7
    %v2285 = vsub.s32 %v2282, %v2284
    %v2286 = vrot.slane %v2264, %v2285
    %v2288 = vunpack.c.l.s4 1966171168
    %v2289 = vunpack.c.0.s8 %v2288
    %v2290 = vlaneseq
    %v2291 = vshrl.u32 %v2290, 7
    %v2292 = vsub.s32 %v2289, %v2291
    %v2293 = vrot.slane %v2265, %v2292
    %v2294 = vcombine.low %v2272, %v2279
    %v2295 = vcombine.low %v2286, %v2293
    %v2297 = vunpack.c.l.s4 1966171168
    %v2298 = vunpack.c.0.s8 %v2297
    %v2299 = vlaneseq
    %v2300 = vshrl.u32 %v2299, 7
    %v2301 = vsub.s32 %v2298, %v2300
    %v2302 = vrot.slane %v2294, %v2301
    %v2304 = vunpack.c.l.s4 1966171168
    %v2305 = vunpack.c.0.s8 %v2304
    %v2306 = vlaneseq
    %v2307 = vshrl.u32 %v2306, 7
    %v2308 = vsub.s32 %v2305, %v2307
    %v2309 = vrot.slane %v2295, %v2308
    %v2310 = vcombine.low %v2302, %v2309
    %v2311 = vcombine.low %v1889, %v1890
    %v2312 = vcombine.low %v1891, %v1892
    %v2313 = vcombine.low %v1893, %v1894
    %v2314 = vcombine.low %v1895, %v1896
    %v2316 = vunpack.c.l.s4 1966171168
    %v2317 = vunpack.c.0.s8 %v2316
    %v2318 = vlaneseq
    %v2319 = vshrl.u32 %v2318, 7
    %v2320 = vsub.s32 %v2317, %v2319
    %v2321 = vrot.slane %v2311, %v2320
    %v2323 = vunpack.c.l.s4 1966171168
    %v2324 = vunpack.c.0.s8 %v2323
    %v2325 = vlaneseq
    %v2326 = vshrl.u32 %v2325, 7
    %v2327 = vsub.s32 %v2324, %v2326
    %v2328 = vrot.slane %v2312, %v2327
    %v2330 = vunpack.c.l.s4 1966171168
    %v2331 = vunpack.c.0.s8 %v2330
    %v2332 = vlaneseq
    %v2333 = vshrl.u32 %v2332, 7
    %v2334 = vsub.s32 %v2331, %v2333
    %v2335 = vrot.slane %v2313, %v2334
    %v2337 = vunpack.c.l.s4 1966171168
    %v2338 = vunpack.c.0.s8 %v2337
    %v2339 = vlaneseq
    %v2340 = vshrl.u32 %v2339, 7
    %v2341 = vsub.s32 %v2338, %v2340
    %v2342 = vrot.slane %v2314, %v2341
    %v2343 = vcombine.low %v2321, %v2328
    %v2344 = vcombine.low %v2335, %v2342
    %v2346 = vunpack.c.l.s4 1966171168
    %v2347 = vunpack.c.0.s8 %v2346
    %v2348 = vlaneseq
    %v2349 = vshrl.u32 %v2348, 7
    %v2350 = vsub.s32 %v2347, %v2349
    %v2351 = vrot.slane %v2343, %v2350
    %v2353 = vunpack.c.l.s4 1966171168
    %v2354 = vunpack.c.0.s8 %v2353
    %v2355 = vlaneseq
    %v2356 = vshrl.u32 %v2355, 7
    %v2357 = vsub.s32 %v2354, %v2356
    %v2358 = vrot.slane %v2344, %v2357
    %v2359 = vcombine.low %v2351, %v2358
    %v2360 = vcombine.low %v1897, %v1898
    %v2361 = vcombine.low %v1899, %v1900
    %v2363 = vunpack.c.l.s4 1966171168
    %v2364 = vunpack.c.0.s8 %v2363
    %v2365 = vlaneseq
    %v2366 = vshrl.u32 %v2365, 7
    %v2367 = vsub.s32 %v2364, %v2366
    %v2368 = vrot.slane %v2360, %v2367
    %v2370 = vunpack.c.l.s4 1966171168
    %v2371 = vunpack.c.0.s8 %v2370
    %v2372 = vlaneseq
    %v2373 = vshrl.u32 %v2372, 7
    %v2374 = vsub.s32 %v2371, %v2373
    %v2375 = vrot.slane %v2361, %v2374
    %v2377 = vunpack.c.l.s4 1966171168
    %v2378 = vunpack.c.0.s8 %v2377
    %v2379 = vlaneseq
    %v2380 = vshrl.u32 %v2379, 7
    %v2381 = vsub.s32 %v2378, %v2380
    %v2382 = vrot.slane %v1901, %v2381
    %v2383 = vcombine.low %v2368, %v2375
    %v2385 = vunpack.c.l.s4 1966171168
    %v2386 = vunpack.c.0.s8 %v2385
    %v2387 = vlaneseq
    %v2388 = vshrl.u32 %v2387, 7
    %v2389 = vsub.s32 %v2386, %v2388
    %v2390 = vrot.slane %v2383, %v2389
    %v2392 = vunpack.c.l.s4 1966171168
    %v2393 = vunpack.c.0.s8 %v2392
    %v2394 = vlaneseq
    %v2395 = vshrl.u32 %v2394, 7
    %v2396 = vsub.s32 %v2393, %v2395
    %v2397 = vrot.slane %v2382, %v2396
    %v2398 = vcombine.low %v2390, %v2397
    %v2399 = vcombine.low %v1906, %v1907
    %v2400 = vcombine.low %v1908, %v1909
    %v2401 = vcombine.low %v1910, %v1911
    %v2402 = vcombine.low %v1912, %v1913
    %v2404 = vunpack.c.l.s4 1966171168
    %v2405 = vunpack.c.0.s8 %v2404
    %v2406 = vlaneseq
    %v2407 = vshrl.u32 %v2406, 7
    %v2408 = vsub.s32 %v2405, %v2407
    %v2409 = vrot.slane %v2399, %v2408
    %v2411 = vunpack.c.l.s4 1966171168
    %v2412 = vunpack.c.0.s8 %v2411
    %v2413 = vlaneseq
    %v2414 = vshrl.u32 %v2413, 7
    %v2415 = vsub.s32 %v2412, %v2414
    %v2416 = vrot.slane %v2400, %v2415
    %v2418 = vunpack.c.l.s4 1966171168
    %v2419 = vunpack.c.0.s8 %v2418
    %v2420 = vlaneseq
    %v2421 = vshrl.u32 %v2420, 7
    %v2422 = vsub.s32 %v2419, %v2421
    %v2423 = vrot.slane %v2401, %v2422
    %v2425 = vunpack.c.l.s4 1966171168
    %v2426 = vunpack.c.0.s8 %v2425
    %v2427 = vlaneseq
    %v2428 = vshrl.u32 %v2427, 7
    %v2429 = vsub.s32 %v2426, %v2428
    %v2430 = vrot.slane %v2402, %v2429
    %v2431 = vcombine.low %v2409, %v2416
    %v2432 = vcombine.low %v2423, %v2430
    %v2434 = vunpack.c.l.s4 1966171168
    %v2435 = vunpack.c.0.s8 %v2434
    %v2436 = vlaneseq
    %v2437 = vshrl.u32 %v2436, 7
    %v2438 = vsub.s32 %v2435, %v2437
    %v2439 = vrot.slane %v2431, %v2438
    %v2441 = vunpack.c.l.s4 1966171168
    %v2442 = vunpack.c.0.s8 %v2441
    %v2443 = vlaneseq
    %v2444 = vshrl.u32 %v2443, 7
    %v2445 = vsub.s32 %v2442, %v2444
    %v2446 = vrot.slane %v2432, %v2445
    %v2447 = vcombine.low %v2439, %v2446
    %v2448 = vcombine.low %v1914, %v1915
    %v2449 = vcombine.low %v1916, %v1917
    %v2450 = vcombine.low %v1918, %v1919
    %v2451 = vcombine.low %v1920, %v1921
    %v2453 = vunpack.c.l.s4 1966171168
    %v2454 = vunpack.c.0.s8 %v2453
    %v2455 = vlaneseq
    %v2456 = vshrl.u32 %v2455, 7
    %v2457 = vsub.s32 %v2454, %v2456
    %v2458 = vrot.slane %v2448, %v2457
    %v2460 = vunpack.c.l.s4 1966171168
    %v2461 = vunpack.c.0.s8 %v2460
    %v2462 = vlaneseq
    %v2463 = vshrl.u32 %v2462, 7
    %v2464 = vsub.s32 %v2461, %v2463
    %v2465 = vrot.slane %v2449, %v2464
    %v2467 = vunpack.c.l.s4 1966171168
    %v2468 = vunpack.c.0.s8 %v2467
    %v2469 = vlaneseq
    %v2470 = vshrl.u32 %v2469, 7
    %v2471 = vsub.s32 %v2468, %v2470
    %v2472 = vrot.slane %v2450, %v2471
    %v2474 = vunpack.c.l.s4 1966171168
    %v2475 = vunpack.c.0.s8 %v2474
    %v2476 = vlaneseq
    %v2477 = vshrl.u32 %v2476, 7
    %v2478 = vsub.s32 %v2475, %v2477
    %v2479 = vrot.slane %v2451, %v2478
    %v2480 = vcombine.low %v2458, %v2465
    %v2481 = vcombine.low %v2472, %v2479
    %v2483 = vunpack.c.l.s4 1966171168
    %v2484 = vunpack.c.0.s8 %v2483
    %v2485 = vlaneseq
    %v2486 = vshrl.u32 %v2485, 7
    %v2487 = vsub.s32 %v2484, %v2486
    %v2488 = vrot.slane %v2480, %v2487
    %v2490 = vunpack.c.l.s4 1966171168
    %v2491 = vunpack.c.0.s8 %v2490
    %v2492 = vlaneseq
    %v2493 = vshrl.u32 %v2492, 7
    %v2494 = vsub.s32 %v2491, %v2493
    %v2495 = vrot.slane %v2481, %v2494
    %v2496 = vcombine.low %v2488, %v2495
    %v2497 = vcombine.low %v1922, %v1923
    %v2498 = vcombine.low %v1924, %v1925
    %v2500 = vunpack.c.l.s4 1966171168
    %v2501 = vunpack.c.0.s8 %v2500
    %v2502 = vlaneseq
    %v2503 = vshrl.u32 %v2502, 7
    %v2504 = vsub.s32 %v2501, %v2503
    %v2505 = vrot.slane %v2497, %v2504
    %v2507 = vunpack.c.l.s4 1966171168
    %v2508 = vunpack.c.0.s8 %v2507
    %v2509 = vlaneseq
    %v2510 = vshrl.u32 %v2509, 7
    %v2511 = vsub.s32 %v2508, %v2510
    %v2512 = vrot.slane %v2498, %v2511
    %v2514 = vunpack.c.l.s4 1966171168
    %v2515 = vunpack.c.0.s8 %v2514
    %v2516 = vlaneseq
    %v2517 = vshrl.u32 %v2516, 7
    %v2518 = vsub.s32 %v2515, %v2517
    %v2519 = vrot.slane %v1926, %v2518
    %v2520 = vcombine.low %v2505, %v2512
    %v2522 = vunpack.c.l.s4 1966171168
    %v2523 = vunpack.c.0.s8 %v2522
    %v2524 = vlaneseq
    %v2525 = vshrl.u32 %v2524, 7
    %v2526 = vsub.s32 %v2523, %v2525
    %v2527 = vrot.slane %v2520, %v2526
    %v2529 = vunpack.c.l.s4 1966171168
    %v2530 = vunpack.c.0.s8 %v2529
    %v2531 = vlaneseq
    %v2532 = vshrl.u32 %v2531, 7
    %v2533 = vsub.s32 %v2530, %v2532
    %v2534 = vrot.slane %v2519, %v2533
    %v2535 = vcombine.low %v2527, %v2534
    %2536 = vrot.lane.b32.xlu0 %v2310, 20
    %v2537 = vpop.permute.xlu0 %2536
    %2538 = vrot.lane.b32.xlu0 %v2359, 20
    %v2539 = vpop.permute.xlu0 %2538
    %2540 = vrot.lane.b32.xlu0 %v2398, 20
    %v2541 = vpop.permute.xlu0 %2540
    %2542 = vrot.lane.b32.xlu0 %v2447, 20
    %v2543 = vpop.permute.xlu0 %2542
    %2544 = vrot.lane.b32.xlu0 %v2496, 20
    %v2545 = vpop.permute.xlu0 %2544
    %2546 = vrot.lane.b32.xlu0 %v2535, 20
    %v2547 = vpop.permute.xlu0 %2546
    %vm2554 = vcmask 326816
    %2555 = vst.msk [vmem:[#allocation2] sm:$0xff] %vm2554, %v2537
    %2556 = vst.msk [vmem:[#allocation2 + $0x10] sm:$0xff] %vm2554, %v2539
    %vm2557 = vcmask 323744
    %2558 = vst.msk [vmem:[#allocation2 + $0x20] sm:$0x1f] %vm2557, %v2541
    %2559 = vst.msk [vmem:[#allocation2 + $0x30] sm:$0xff] %vm2554, %v2543
    %2560 = vst.msk [vmem:[#allocation2 + $0x40] sm:$0xff] %vm2554, %v2545
    %2561 = vst.msk [vmem:[#allocation2 + $0x50] sm:$0x1f] %vm2557, %v2547
    %v2564 = vcombine.low %v1989, %v1996
    %v2565 = vcombine.low %v2003, %v2031
    %v2567 = vunpack.c.l.s4 1966171168
    %v2568 = vunpack.c.0.s8 %v2567
    %v2569 = vlaneseq
    %v2570 = vshrl.u32 %v2569, 7
    %v2571 = vsub.s32 %v2568, %v2570
    %v2572 = vrot.slane %v2564, %v2571
    %v2574 = vunpack.c.l.s4 1966171168
    %v2575 = vunpack.c.0.s8 %v2574
    %v2576 = vlaneseq
    %v2577 = vshrl.u32 %v2576, 7
    %v2578 = vsub.s32 %v2575, %v2577
    %v2579 = vrot.slane %v2565, %v2578
    %v2580 = vcombine.low %v2572, %v2579
    %v2581 = vcombine.low %v2038, %v2045
    %v2582 = vcombine.low %v2052, %v2078
    %v2584 = vunpack.c.l.s4 1966171168
    %v2585 = vunpack.c.0.s8 %v2584
    %v2586 = vlaneseq
    %v2587 = vshrl.u32 %v2586, 7
    %v2588 = vsub.s32 %v2585, %v2587
    %v2589 = vrot.slane %v2581, %v2588
    %v2591 = vunpack.c.l.s4 1966171168
    %v2592 = vunpack.c.0.s8 %v2591
    %v2593 = vlaneseq
    %v2594 = vshrl.u32 %v2593, 7
    %v2595 = vsub.s32 %v2592, %v2594
    %v2596 = vrot.slane %v2582, %v2595
    %v2597 = vcombine.low %v2589, %v2596
    %v2598 = vcombine.low %v1900, %v1901
    %v2600 = vunpack.c.l.s4 1966171168
    %v2601 = vunpack.c.0.s8 %v2600
    %v2602 = vlaneseq
    %v2603 = vshrl.u32 %v2602, 7
    %v2604 = vsub.s32 %v2601, %v2603
    %v2605 = vrot.slane %v2598, %v2604
    %v2607 = vunpack.c.l.s4 1966171168
    %v2608 = vunpack.c.0.s8 %v2607
    %v2609 = vlaneseq
    %v2610 = vshrl.u32 %v2609, 7
    %v2611 = vsub.s32 %v2608, %v2610
    %v2612 = vrot.slane %v1902, %v2611
    %v2613 = vcombine.low %v2085, %v2605
    %v2615 = vunpack.c.l.s4 1966171168
    %v2616 = vunpack.c.0.s8 %v2615
    %v2617 = vlaneseq
    %v2618 = vshrl.u32 %v2617, 7
    %v2619 = vsub.s32 %v2616, %v2618
    %v2620 = vrot.slane %v2613, %v2619
    %v2622 = vunpack.c.l.s4 1966171168
    %v2623 = vunpack.c.0.s8 %v2622
    %v2624 = vlaneseq
    %v2625 = vshrl.u32 %v2624, 7
    %v2626 = vsub.s32 %v2623, %v2625
    %v2627 = vrot.slane %v2612, %v2626
    %v2628 = vcombine.low %v2620, %v2627
    %v2629 = vcombine.low %v2126, %v2133
    %v2630 = vcombine.low %v2140, %v2168
    %v2632 = vunpack.c.l.s4 1966171168
    %v2633 = vunpack.c.0.s8 %v2632
    %v2634 = vlaneseq
    %v2635 = vshrl.u32 %v2634, 7
    %v2636 = vsub.s32 %v2633, %v2635
    %v2637 = vrot.slane %v2629, %v2636
    %v2639 = vunpack.c.l.s4 1966171168
    %v2640 = vunpack.c.0.s8 %v2639
    %v2641 = vlaneseq
    %v2642 = vshrl.u32 %v2641, 7
    %v2643 = vsub.s32 %v2640, %v2642
    %v2644 = vrot.slane %v2630, %v2643
    %v2645 = vcombine.low %v2637, %v2644
    %v2646 = vcombine.low %v2175, %v2182
    %v2647 = vcombine.low %v2189, %v2215
    %v2649 = vunpack.c.l.s4 1966171168
    %v2650 = vunpack.c.0.s8 %v2649
    %v2651 = vlaneseq
    %v2652 = vshrl.u32 %v2651, 7
    %v2653 = vsub.s32 %v2650, %v2652
    %v2654 = vrot.slane %v2646, %v2653
    %v2656 = vunpack.c.l.s4 1966171168
    %v2657 = vunpack.c.0.s8 %v2656
    %v2658 = vlaneseq
    %v2659 = vshrl.u32 %v2658, 7
    %v2660 = vsub.s32 %v2657, %v2659
    %v2661 = vrot.slane %v2647, %v2660
    %v2662 = vcombine.low %v2654, %v2661
    %v2663 = vcombine.low %v1925, %v1926
    %v2665 = vunpack.c.l.s4 1966171168
    %v2666 = vunpack.c.0.s8 %v2665
    %v2667 = vlaneseq
    %v2668 = vshrl.u32 %v2667, 7
    %v2669 = vsub.s32 %v2666, %v2668
    %v2670 = vrot.slane %v2663, %v2669
    %v2672 = vunpack.c.l.s4 1966171168
    %v2673 = vunpack.c.0.s8 %v2672
    %v2674 = vlaneseq
    %v2675 = vshrl.u32 %v2674, 7
    %v2676 = vsub.s32 %v2673, %v2675
    %v2677 = vrot.slane %v1927, %v2676
    %v2678 = vcombine.low %v2222, %v2670
    %v2680 = vunpack.c.l.s4 1966171168
    %v2681 = vunpack.c.0.s8 %v2680
    %v2682 = vlaneseq
    %v2683 = vshrl.u32 %v2682, 7
    %v2684 = vsub.s32 %v2681, %v2683
    %v2685 = vrot.slane %v2678, %v2684
    %v2687 = vunpack.c.l.s4 1966171168
    %v2688 = vunpack.c.0.s8 %v2687
    %v2689 = vlaneseq
    %v2690 = vshrl.u32 %v2689, 7
    %v2691 = vsub.s32 %v2688, %v2690
    %v2692 = vrot.slane %v2677, %v2691
    %v2693 = vcombine.low %v2685, %v2692
    %2694 = vrot.lane.b32.xlu0 %v2580, 40
    %v2695 = vpop.permute.xlu0 %2694
    %2696 = vrot.lane.b32.xlu0 %v2597, 40
    %v2697 = vpop.permute.xlu0 %2696
    %2698 = vrot.lane.b32.xlu0 %v2628, 40
    %v2699 = vpop.permute.xlu0 %2698
    %2700 = vrot.lane.b32.xlu0 %v2645, 40
    %v2701 = vpop.permute.xlu0 %2700
    %2702 = vrot.lane.b32.xlu0 %v2662, 40
    %v2703 = vpop.permute.xlu0 %2702
    %2704 = vrot.lane.b32.xlu0 %v2693, 40
    %v2705 = vpop.permute.xlu0 %2704
    %vm2712 = vcmask 490816
    %2713 = vst.msk [vmem:[#allocation2] sm:$0xff] %vm2712, %v2695
    %2714 = vst.msk [vmem:[#allocation2 + $0x10] sm:$0xff] %vm2712, %v2697
    %vm2715 = vcmask 487744
    %2716 = vst.msk [vmem:[#allocation2 + $0x20] sm:$0x1f] %vm2715, %v2699
    %2717 = vst.msk [vmem:[#allocation2 + $0x30] sm:$0xff] %vm2712, %v2701
    %2718 = vst.msk [vmem:[#allocation2 + $0x40] sm:$0xff] %vm2712, %v2703
    %2719 = vst.msk [vmem:[#allocation2 + $0x50] sm:$0x1f] %vm2715, %v2705
    %v2722 = vcombine.low %v2279, %v2286
    %v2723 = vcombine.low %v2293, %v2321
    %v2725 = vunpack.c.l.s4 1966171168
    %v2726 = vunpack.c.0.s8 %v2725
    %v2727 = vlaneseq
    %v2728 = vshrl.u32 %v2727, 7
    %v2729 = vsub.s32 %v2726, %v2728
    %v2730 = vrot.slane %v2722, %v2729
    %v2732 = vunpack.c.l.s4 1966171168
    %v2733 = vunpack.c.0.s8 %v2732
    %v2734 = vlaneseq
    %v2735 = vshrl.u32 %v2734, 7
    %v2736 = vsub.s32 %v2733, %v2735
    %v2737 = vrot.slane %v2723, %v2736
    %v2738 = vcombine.low %v2730, %v2737
    %v2739 = vcombine.low %v2328, %v2335
    %v2740 = vcombine.low %v2342, %v2368
    %v2742 = vunpack.c.l.s4 1966171168
    %v2743 = vunpack.c.0.s8 %v2742
    %v2744 = vlaneseq
    %v2745 = vshrl.u32 %v2744, 7
    %v2746 = vsub.s32 %v2743, %v2745
    %v2747 = vrot.slane %v2739, %v2746
    %v2749 = vunpack.c.l.s4 1966171168
    %v2750 = vunpack.c.0.s8 %v2749
    %v2751 = vlaneseq
    %v2752 = vshrl.u32 %v2751, 7
    %v2753 = vsub.s32 %v2750, %v2752
    %v2754 = vrot.slane %v2740, %v2753
    %v2755 = vcombine.low %v2747, %v2754
    %v2756 = vcombine.low %v1901, %v1902
    %v2758 = vunpack.c.l.s4 1966171168
    %v2759 = vunpack.c.0.s8 %v2758
    %v2760 = vlaneseq
    %v2761 = vshrl.u32 %v2760, 7
    %v2762 = vsub.s32 %v2759, %v2761
    %v2763 = vrot.slane %v2756, %v2762
    %v2765 = vunpack.c.l.s4 1966171168
    %v2766 = vunpack.c.0.s8 %v2765
    %v2767 = vlaneseq
    %v2768 = vshrl.u32 %v2767, 7
    %v2769 = vsub.s32 %v2766, %v2768
    %v2770 = vrot.slane %v1903, %v2769
    %v2771 = vcombine.low %v2375, %v2763
    %v2773 = vunpack.c.l.s4 1966171168
    %v2774 = vunpack.c.0.s8 %v2773
    %v2775 = vlaneseq
    %v2776 = vshrl.u32 %v2775, 7
    %v2777 = vsub.s32 %v2774, %v2776
    %v2778 = vrot.slane %v2771, %v2777
    %v2780 = vunpack.c.l.s4 1966171168
    %v2781 = vunpack.c.0.s8 %v2780
    %v2782 = vlaneseq
    %v2783 = vshrl.u32 %v2782, 7
    %v2784 = vsub.s32 %v2781, %v2783
    %v2785 = vrot.slane %v2770, %v2784
    %v2786 = vcombine.low %v2778, %v2785
    %v2787 = vcombine.low %v2416, %v2423
    %v2788 = vcombine.low %v2430, %v2458
    %v2790 = vunpack.c.l.s4 1966171168
    %v2791 = vunpack.c.0.s8 %v2790
    %v2792 = vlaneseq
    %v2793 = vshrl.u32 %v2792, 7
    %v2794 = vsub.s32 %v2791, %v2793
    %v2795 = vrot.slane %v2787, %v2794
    %v2797 = vunpack.c.l.s4 1966171168
    %v2798 = vunpack.c.0.s8 %v2797
    %v2799 = vlaneseq
    %v2800 = vshrl.u32 %v2799, 7
    %v2801 = vsub.s32 %v2798, %v2800
    %v2802 = vrot.slane %v2788, %v2801
    %v2803 = vcombine.low %v2795, %v2802
    %v2804 = vcombine.low %v2465, %v2472
    %v2805 = vcombine.low %v2479, %v2505
    %v2807 = vunpack.c.l.s4 1966171168
    %v2808 = vunpack.c.0.s8 %v2807
    %v2809 = vlaneseq
    %v2810 = vshrl.u32 %v2809, 7
    %v2811 = vsub.s32 %v2808, %v2810
    %v2812 = vrot.slane %v2804, %v2811
    %v2814 = vunpack.c.l.s4 1966171168
    %v2815 = vunpack.c.0.s8 %v2814
    %v2816 = vlaneseq
    %v2817 = vshrl.u32 %v2816, 7
    %v2818 = vsub.s32 %v2815, %v2817
    %v2819 = vrot.slane %v2805, %v2818
    %v2820 = vcombine.low %v2812, %v2819
    %v2821 = vcombine.low %v1926, %v1927
    %v2823 = vunpack.c.l.s4 1966171168
    %v2824 = vunpack.c.0.s8 %v2823
    %v2825 = vlaneseq
    %v2826 = vshrl.u32 %v2825, 7
    %v2827 = vsub.s32 %v2824, %v2826
    %v2828 = vrot.slane %v2821, %v2827
    %v2830 = vunpack.c.l.s4 1966171168
    %v2831 = vunpack.c.0.s8 %v2830
    %v2832 = vlaneseq
    %v2833 = vshrl.u32 %v2832, 7
    %v2834 = vsub.s32 %v2831, %v2833
    %v2835 = vrot.slane %v1928, %v2834
    %v2836 = vcombine.low %v2512, %v2828
    %v2838 = vunpack.c.l.s4 1966171168
    %v2839 = vunpack.c.0.s8 %v2838
    %v2840 = vlaneseq
    %v2841 = vshrl.u32 %v2840, 7
    %v2842 = vsub.s32 %v2839, %v2841
    %v2843 = vrot.slane %v2836, %v2842
    %v2845 = vunpack.c.l.s4 1966171168
    %v2846 = vunpack.c.0.s8 %v2845
    %v2847 = vlaneseq
    %v2848 = vshrl.u32 %v2847, 7
    %v2849 = vsub.s32 %v2846, %v2848
    %v2850 = vrot.slane %v2835, %v2849
    %v2851 = vcombine.low %v2843, %v2850
    %2852 = vrot.lane.b32.xlu0 %v2738, 60
    %v2853 = vpop.permute.xlu0 %2852
    %2854 = vrot.lane.b32.xlu0 %v2755, 60
    %v2855 = vpop.permute.xlu0 %2854
    %2856 = vrot.lane.b32.xlu0 %v2786, 60
    %v2857 = vpop.permute.xlu0 %2856
    %2858 = vrot.lane.b32.xlu0 %v2803, 60
    %v2859 = vpop.permute.xlu0 %2858
    %2860 = vrot.lane.b32.xlu0 %v2820, 60
    %v2861 = vpop.permute.xlu0 %2860
    %2862 = vrot.lane.b32.xlu0 %v2851, 60
    %v2863 = vpop.permute.xlu0 %2862
    %vm2870 = vcmask 654816
    %2871 = vst.msk [vmem:[#allocation2] sm:$0xff] %vm2870, %v2853
    %2872 = vst.msk [vmem:[#allocation2 + $0x10] sm:$0xff] %vm2870, %v2855
    %vm2873 = vcmask 651744
    %2874 = vst.msk [vmem:[#allocation2 + $0x20] sm:$0x1f] %vm2873, %v2857
    %2875 = vst.msk [vmem:[#allocation2 + $0x30] sm:$0xff] %vm2870, %v2859
    %2876 = vst.msk [vmem:[#allocation2 + $0x40] sm:$0xff] %vm2870, %v2861
    %2877 = vst.msk [vmem:[#allocation2 + $0x50] sm:$0x1f] %vm2873, %v2863
    %v2880 = vcombine.low %v2019, %v2061
    %v2881 = vcombine.low %v2068, %v2100
    %v2882 = vcombine.low %v1902, %v1903
    %v2884 = vunpack.c.l.s4 1966171168
    %v2885 = vunpack.c.0.s8 %v2884
    %v2886 = vlaneseq
    %v2887 = vshrl.u32 %v2886, 7
    %v2888 = vsub.s32 %v2885, %v2887
    %v2889 = vrot.slane %v2882, %v2888
    %v2891 = vunpack.c.l.s4 1966171168
    %v2892 = vunpack.c.0.s8 %v2891
    %v2893 = vlaneseq
    %v2894 = vshrl.u32 %v2893, 7
    %v2895 = vsub.s32 %v2892, %v2894
    %v2896 = vrot.slane %v1904, %v2895
    %v2897 = vcombine.low %v2605, %v2889
    %v2899 = vunpack.c.l.s4 1966171168
    %v2900 = vunpack.c.0.s8 %v2899
    %v2901 = vlaneseq
    %v2902 = vshrl.u32 %v2901, 7
    %v2903 = vsub.s32 %v2900, %v2902
    %v2904 = vrot.slane %v2897, %v2903
    %v2906 = vunpack.c.l.s4 1966171168
    %v2907 = vunpack.c.0.s8 %v2906
    %v2908 = vlaneseq
    %v2909 = vshrl.u32 %v2908, 7
    %v2910 = vsub.s32 %v2907, %v2909
    %v2911 = vrot.slane %v2896, %v2910
    %v2912 = vcombine.low %v2904, %v2911
    %v2913 = vcombine.low %v2156, %v2198
    %v2914 = vcombine.low %v2205, %v2237
    %v2915 = vcombine.low %v1927, %v1928
    %v2917 = vunpack.c.l.s4 1966171168
    %v2918 = vunpack.c.0.s8 %v2917
    %v2919 = vlaneseq
    %v2920 = vshrl.u32 %v2919, 7
    %v2921 = vsub.s32 %v2918, %v2920
    %v2922 = vrot.slane %v2915, %v2921
    %v2924 = vunpack.c.l.s4 1966171168
    %v2925 = vunpack.c.0.s8 %v2924
    %v2926 = vlaneseq
    %v2927 = vshrl.u32 %v2926, 7
    %v2928 = vsub.s32 %v2925, %v2927
    %v2929 = vrot.slane %v1929, %v2928
    %v2930 = vcombine.low %v2670, %v2922
    %v2932 = vunpack.c.l.s4 1966171168
    %v2933 = vunpack.c.0.s8 %v2932
    %v2934 = vlaneseq
    %v2935 = vshrl.u32 %v2934, 7
    %v2936 = vsub.s32 %v2933, %v2935
    %v2937 = vrot.slane %v2930, %v2936
    %v2939 = vunpack.c.l.s4 1966171168
    %v2940 = vunpack.c.0.s8 %v2939
    %v2941 = vlaneseq
    %v2942 = vshrl.u32 %v2941, 7
    %v2943 = vsub.s32 %v2940, %v2942
    %v2944 = vrot.slane %v2929, %v2943
    %v2945 = vcombine.low %v2937, %v2944
    %2946 = vrot.lane.b32.xlu0 %v2880, 80
    %v2947 = vpop.permute.xlu0 %2946
    %2948 = vrot.lane.b32.xlu0 %v2881, 80
    %v2949 = vpop.permute.xlu0 %2948
    %2950 = vrot.lane.b32.xlu0 %v2912, 80
    %v2951 = vpop.permute.xlu0 %2950
    %2952 = vrot.lane.b32.xlu0 %v2913, 80
    %v2953 = vpop.permute.xlu0 %2952
    %2954 = vrot.lane.b32.xlu0 %v2914, 80
    %v2955 = vpop.permute.xlu0 %2954
    %2956 = vrot.lane.b32.xlu0 %v2945, 80
    %v2957 = vpop.permute.xlu0 %2956
    %vm2964 = vcmask 818816
    %2965 = vst.msk [vmem:[#allocation2] sm:$0xff] %vm2964, %v2947
    %2966 = vst.msk [vmem:[#allocation2 + $0x10] sm:$0xff] %vm2964, %v2949
    %vm2967 = vcmask 815744
    %2968 = vst.msk [vmem:[#allocation2 + $0x20] sm:$0x1f] %vm2967, %v2951
    %2969 = vst.msk [vmem:[#allocation2 + $0x30] sm:$0xff] %vm2964, %v2953
    %2970 = vst.msk [vmem:[#allocation2 + $0x40] sm:$0xff] %vm2964, %v2955
    %2971 = vst.msk [vmem:[#allocation2 + $0x50] sm:$0x1f] %vm2967, %v2957
    %v2972 = vld [vmem:[#allocation2] sm:$0xff]
    %v2973 = vld [vmem:[#allocation2 + $0x10] sm:$0xff]
    %v2974 = vld [vmem:[#allocation2 + $0x20] sm:$0x1f]
    %v2975 = vld [vmem:[#allocation2 + $0x30] sm:$0xff]
    %v2976 = vld [vmem:[#allocation2 + $0x40] sm:$0xff]
    %v2977 = vld [vmem:[#allocation2 + $0x50] sm:$0x1f]
    %v2978 = vld [vmem:[%s3] sm:$0xff]
    %v2979 = vld [vmem:[%s3 + $0x8] sm:$0xff]
    %v2980 = vld [vmem:[%s3 + $0x10] sm:$0xff]
    %v2981 = vld [vmem:[%s3 + $0x18] sm:$0xff]
    %v2982 = vld [vmem:[%s3 + $0x20] sm:$0xff]
    %v2983 = vld [vmem:[%s3 + $0x28] sm:$0xff]
    %v2984 = vld [vmem:[%s3 + $0x30] sm:$0xff]
    %v2985 = vld [vmem:[%s3 + $0x38] sm:$0xff]
    %v2986 = vld [vmem:[%s3 + $0x40] sm:$0xff]
    %v2987 = vld [vmem:[%s3 + $0x48] sm:$0xff]
    %v2988 = vld [vmem:[%s3 + $0x50] sm:$0xff]
    %v2989 = vld [vmem:[%s3 + $0x58] sm:$0xff]
    %v2990 = vld [vmem:[%s3 + $0x60] sm:$0xf]
    %v2997 = vcombine.high %v2972, %v2972
    %v2999 = vunpack.c.l.s4 1966171168
    %v3000 = vunpack.c.0.s8 %v2999
    %v3001 = vlaneseq
    %v3002 = vshrl.u32 %v3001, 7
    %v3003 = vsub.s32 %v3000, %v3002
    %v3004 = vrot.slane %v2972, %v3003
    %v3006 = vunpack.c.l.s4 1966171168
    %v3007 = vunpack.c.0.s8 %v3006
    %v3008 = vlaneseq
    %v3009 = vshrl.u32 %v3008, 7
    %v3010 = vsub.s32 %v3007, %v3009
    %v3011 = vrot.slane %v2997, %v3010
    %v3012 = vcombine.high %v3004, %v3004
    %v3013 = vcombine.high %v3011, %v3011
    %v3015 = vunpack.c.l.s4 1966171168
    %v3016 = vunpack.c.0.s8 %v3015
    %v3017 = vlaneseq
    %v3018 = vshrl.u32 %v3017, 7
    %v3019 = vsub.s32 %v3016, %v3018
    %v3020 = vrot.slane %v3004, %v3019
    %v3022 = vunpack.c.l.s4 1966171168
    %v3023 = vunpack.c.0.s8 %v3022
    %v3024 = vlaneseq
    %v3025 = vshrl.u32 %v3024, 7
    %v3026 = vsub.s32 %v3023, %v3025
    %v3027 = vrot.slane %v3011, %v3026
    %v3029 = vunpack.c.l.s4 1966171168
    %v3030 = vunpack.c.0.s8 %v3029
    %v3031 = vlaneseq
    %v3032 = vshrl.u32 %v3031, 7
    %v3033 = vsub.s32 %v3030, %v3032
    %v3034 = vrot.slane %v3012, %v3033
    %v3036 = vunpack.c.l.s4 1966171168
    %v3037 = vunpack.c.0.s8 %v3036
    %v3038 = vlaneseq
    %v3039 = vshrl.u32 %v3038, 7
    %v3040 = vsub.s32 %v3037, %v3039
    %v3041 = vrot.slane %v3013, %v3040
    %v3042 = vcombine.high %v3020, %v3020
    %v3043 = vcombine.high %v3027, %v3027
    %v3044 = vcombine.high %v3034, %v3034
    %v3045 = vcombine.high %v3041, %v3041
    %v3046 = vcombine.high %v2973, %v2973
    %v3048 = vunpack.c.l.s4 1966171168
    %v3049 = vunpack.c.0.s8 %v3048
    %v3050 = vlaneseq
    %v3051 = vshrl.u32 %v3050, 7
    %v3052 = vsub.s32 %v3049, %v3051
    %v3053 = vrot.slane %v2973, %v3052
    %v3055 = vunpack.c.l.s4 1966171168
    %v3056 = vunpack.c.0.s8 %v3055
    %v3057 = vlaneseq
    %v3058 = vshrl.u32 %v3057, 7
    %v3059 = vsub.s32 %v3056, %v3058
    %v3060 = vrot.slane %v3046, %v3059
    %v3061 = vcombine.high %v3053, %v3053
    %v3062 = vcombine.high %v3060, %v3060
    %v3064 = vunpack.c.l.s4 1966171168
    %v3065 = vunpack.c.0.s8 %v3064
    %v3066 = vlaneseq
    %v3067 = vshrl.u32 %v3066, 7
    %v3068 = vsub.s32 %v3065, %v3067
    %v3069 = vrot.slane %v3053, %v3068
    %v3071 = vunpack.c.l.s4 1966171168
    %v3072 = vunpack.c.0.s8 %v3071
    %v3073 = vlaneseq
    %v3074 = vshrl.u32 %v3073, 7
    %v3075 = vsub.s32 %v3072, %v3074
    %v3076 = vrot.slane %v3060, %v3075
    %v3078 = vunpack.c.l.s4 1966171168
    %v3079 = vunpack.c.0.s8 %v3078
    %v3080 = vlaneseq
    %v3081 = vshrl.u32 %v3080, 7
    %v3082 = vsub.s32 %v3079, %v3081
    %v3083 = vrot.slane %v3061, %v3082
    %v3085 = vunpack.c.l.s4 1966171168
    %v3086 = vunpack.c.0.s8 %v3085
    %v3087 = vlaneseq
    %v3088 = vshrl.u32 %v3087, 7
    %v3089 = vsub.s32 %v3086, %v3088
    %v3090 = vrot.slane %v3062, %v3089
    %v3091 = vcombine.high %v3069, %v3069
    %v3092 = vcombine.high %v3076, %v3076
    %v3093 = vcombine.high %v3083, %v3083
    %v3094 = vcombine.high %v3090, %v3090
    %v3095 = vcombine.high %v2974, %v2974
    %v3097 = vunpack.c.l.s4 1966171168
    %v3098 = vunpack.c.0.s8 %v3097
    %v3099 = vlaneseq
    %v3100 = vshrl.u32 %v3099, 7
    %v3101 = vsub.s32 %v3098, %v3100
    %v3102 = vrot.slane %v2974, %v3101
    %v3104 = vunpack.c.l.s4 1966171168
    %v3105 = vunpack.c.0.s8 %v3104
    %v3106 = vlaneseq
    %v3107 = vshrl.u32 %v3106, 7
    %v3108 = vsub.s32 %v3105, %v3107
    %v3109 = vrot.slane %v3095, %v3108
    %v3110 = vcombine.high %v3102, %v3102
    %v3112 = vunpack.c.l.s4 1966171168
    %v3113 = vunpack.c.0.s8 %v3112
    %v3114 = vlaneseq
    %v3115 = vshrl.u32 %v3114, 7
    %v3116 = vsub.s32 %v3113, %v3115
    %v3117 = vrot.slane %v3102, %v3116
    %v3119 = vunpack.c.l.s4 1966171168
    %v3120 = vunpack.c.0.s8 %v3119
    %v3121 = vlaneseq
    %v3122 = vshrl.u32 %v3121, 7
    %v3123 = vsub.s32 %v3120, %v3122
    %v3124 = vrot.slane %v3109, %v3123
    %v3126 = vunpack.c.l.s4 1966171168
    %v3127 = vunpack.c.0.s8 %v3126
    %v3128 = vlaneseq
    %v3129 = vshrl.u32 %v3128, 7
    %v3130 = vsub.s32 %v3127, %v3129
    %v3131 = vrot.slane %v3110, %v3130
    %v3132 = vcombine.high %v3117, %v3117
    %v3133 = vcombine.high %v3131, %v3131
    %v3134 = vcombine.high %v2975, %v2975
    %v3136 = vunpack.c.l.s4 1966171168
    %v3137 = vunpack.c.0.s8 %v3136
    %v3138 = vlaneseq
    %v3139 = vshrl.u32 %v3138, 7
    %v3140 = vsub.s32 %v3137, %v3139
    %v3141 = vrot.slane %v2975, %v3140
    %v3143 = vunpack.c.l.s4 1966171168
    %v3144 = vunpack.c.0.s8 %v3143
    %v3145 = vlaneseq
    %v3146 = vshrl.u32 %v3145, 7
    %v3147 = vsub.s32 %v3144, %v3146
    %v3148 = vrot.slane %v3134, %v3147
    %v3149 = vcombine.high %v3141, %v3141
    %v3150 = vcombine.high %v3148, %v3148
    %v3152 = vunpack.c.l.s4 1966171168
    %v3153 = vunpack.c.0.s8 %v3152
    %v3154 = vlaneseq
    %v3155 = vshrl.u32 %v3154, 7
    %v3156 = vsub.s32 %v3153, %v3155
    %v3157 = vrot.slane %v3141, %v3156
    %v3159 = vunpack.c.l.s4 1966171168
    %v3160 = vunpack.c.0.s8 %v3159
    %v3161 = vlaneseq
    %v3162 = vshrl.u32 %v3161, 7
    %v3163 = vsub.s32 %v3160, %v3162
    %v3164 = vrot.slane %v3148, %v3163
    %v3166 = vunpack.c.l.s4 1966171168
    %v3167 = vunpack.c.0.s8 %v3166
    %v3168 = vlaneseq
    %v3169 = vshrl.u32 %v3168, 7
    %v3170 = vsub.s32 %v3167, %v3169
    %v3171 = vrot.slane %v3149, %v3170
    %v3173 = vunpack.c.l.s4 1966171168
    %v3174 = vunpack.c.0.s8 %v3173
    %v3175 = vlaneseq
    %v3176 = vshrl.u32 %v3175, 7
    %v3177 = vsub.s32 %v3174, %v3176
    %v3178 = vrot.slane %v3150, %v3177
    %v3179 = vcombine.high %v3157, %v3157
    %v3180 = vcombine.high %v3164, %v3164
    %v3181 = vcombine.high %v3171, %v3171
    %v3182 = vcombine.high %v3178, %v3178
    %v3183 = vcombine.high %v2976, %v2976
    %v3185 = vunpack.c.l.s4 1966171168
    %v3186 = vunpack.c.0.s8 %v3185
    %v3187 = vlaneseq
    %v3188 = vshrl.u32 %v3187, 7
    %v3189 = vsub.s32 %v3186, %v3188
    %v3190 = vrot.slane %v2976, %v3189
    %v3192 = vunpack.c.l.s4 1966171168
    %v3193 = vunpack.c.0.s8 %v3192
    %v3194 = vlaneseq
    %v3195 = vshrl.u32 %v3194, 7
    %v3196 = vsub.s32 %v3193, %v3195
    %v3197 = vrot.slane %v3183, %v3196
    %v3198 = vcombine.high %v3190, %v3190
    %v3199 = vcombine.high %v3197, %v3197
    %v3201 = vunpack.c.l.s4 1966171168
    %v3202 = vunpack.c.0.s8 %v3201
    %v3203 = vlaneseq
    %v3204 = vshrl.u32 %v3203, 7
    %v3205 = vsub.s32 %v3202, %v3204
    %v3206 = vrot.slane %v3190, %v3205
    %v3208 = vunpack.c.l.s4 1966171168
    %v3209 = vunpack.c.0.s8 %v3208
    %v3210 = vlaneseq
    %v3211 = vshrl.u32 %v3210, 7
    %v3212 = vsub.s32 %v3209, %v3211
    %v3213 = vrot.slane %v3197, %v3212
    %v3215 = vunpack.c.l.s4 1966171168
    %v3216 = vunpack.c.0.s8 %v3215
    %v3217 = vlaneseq
    %v3218 = vshrl.u32 %v3217, 7
    %v3219 = vsub.s32 %v3216, %v3218
    %v3220 = vrot.slane %v3198, %v3219
    %v3222 = vunpack.c.l.s4 1966171168
    %v3223 = vunpack.c.0.s8 %v3222
    %v3224 = vlaneseq
    %v3225 = vshrl.u32 %v3224, 7
    %v3226 = vsub.s32 %v3223, %v3225
    %v3227 = vrot.slane %v3199, %v3226
    %v3228 = vcombine.high %v3206, %v3206
    %v3229 = vcombine.high %v3213, %v3213
    %v3230 = vcombine.high %v3220, %v3220
    %v3231 = vcombine.high %v3227, %v3227
    %v3232 = vcombine.high %v2977, %v2977
    %v3234 = vunpack.c.l.s4 1966171168
    %v3235 = vunpack.c.0.s8 %v3234
    %v3236 = vlaneseq
    %v3237 = vshrl.u32 %v3236, 7
    %v3238 = vsub.s32 %v3235, %v3237
    %v3239 = vrot.slane %v2977, %v3238
    %v3241 = vunpack.c.l.s4 1966171168
    %v3242 = vunpack.c.0.s8 %v3241
    %v3243 = vlaneseq
    %v3244 = vshrl.u32 %v3243, 7
    %v3245 = vsub.s32 %v3242, %v3244
    %v3246 = vrot.slane %v3232, %v3245
    %v3247 = vcombine.high %v3239, %v3239
    %v3249 = vunpack.c.l.s4 1966171168
    %v3250 = vunpack.c.0.s8 %v3249
    %v3251 = vlaneseq
    %v3252 = vshrl.u32 %v3251, 7
    %v3253 = vsub.s32 %v3250, %v3252
    %v3254 = vrot.slane %v3239, %v3253
    %v3256 = vunpack.c.l.s4 1966171168
    %v3257 = vunpack.c.0.s8 %v3256
    %v3258 = vlaneseq
    %v3259 = vshrl.u32 %v3258, 7
    %v3260 = vsub.s32 %v3257, %v3259
    %v3261 = vrot.slane %v3246, %v3260
    %v3263 = vunpack.c.l.s4 1966171168
    %v3264 = vunpack.c.0.s8 %v3263
    %v3265 = vlaneseq
    %v3266 = vshrl.u32 %v3265, 7
    %v3267 = vsub.s32 %v3264, %v3266
    %v3268 = vrot.slane %v3247, %v3267
    %v3269 = vcombine.high %v3254, %v3254
    %v3270 = vcombine.high %v3268, %v3268
    %v3271 = vcombine.low %v3020, %v3034
    %v3272 = vcombine.low %v3042, %v3044
    %v3273 = vcombine.low %v3027, %v3041
    %v3274 = vcombine.low %v3043, %v3045
    %v3276 = vunpack.c.l.s4 1966171168
    %v3277 = vunpack.c.0.s8 %v3276
    %v3278 = vlaneseq
    %v3279 = vshrl.u32 %v3278, 7
    %v3280 = vsub.s32 %v3277, %v3279
    %v3281 = vrot.slane %v3271, %v3280
    %v3283 = vunpack.c.l.s4 1966171168
    %v3284 = vunpack.c.0.s8 %v3283
    %v3285 = vlaneseq
    %v3286 = vshrl.u32 %v3285, 7
    %v3287 = vsub.s32 %v3284, %v3286
    %v3288 = vrot.slane %v3272, %v3287
    %v3290 = vunpack.c.l.s4 1966171168
    %v3291 = vunpack.c.0.s8 %v3290
    %v3292 = vlaneseq
    %v3293 = vshrl.u32 %v3292, 7
    %v3294 = vsub.s32 %v3291, %v3293
    %v3295 = vrot.slane %v3273, %v3294
    %v3297 = vunpack.c.l.s4 1966171168
    %v3298 = vunpack.c.0.s8 %v3297
    %v3299 = vlaneseq
    %v3300 = vshrl.u32 %v3299, 7
    %v3301 = vsub.s32 %v3298, %v3300
    %v3302 = vrot.slane %v3274, %v3301
    %v3303 = vcombine.low %v3281, %v3288
    %v3304 = vcombine.low %v3295, %v3302
    %v3306 = vunpack.c.l.s4 1966171168
    %v3307 = vunpack.c.0.s8 %v3306
    %v3308 = vlaneseq
    %v3309 = vshrl.u32 %v3308, 7
    %v3310 = vsub.s32 %v3307, %v3309
    %v3311 = vrot.slane %v3303, %v3310
    %v3313 = vunpack.c.l.s4 1966171168
    %v3314 = vunpack.c.0.s8 %v3313
    %v3315 = vlaneseq
    %v3316 = vshrl.u32 %v3315, 7
    %v3317 = vsub.s32 %v3314, %v3316
    %v3318 = vrot.slane %v3304, %v3317
    %v3319 = vcombine.low %v3311, %v3318
    %v3320 = vcombine.low %v3069, %v3083
    %v3321 = vcombine.low %v3091, %v3093
    %v3322 = vcombine.low %v3076, %v3090
    %v3323 = vcombine.low %v3092, %v3094
    %v3325 = vunpack.c.l.s4 1966171168
    %v3326 = vunpack.c.0.s8 %v3325
    %v3327 = vlaneseq
    %v3328 = vshrl.u32 %v3327, 7
    %v3329 = vsub.s32 %v3326, %v3328
    %v3330 = vrot.slane %v3320, %v3329
    %v3332 = vunpack.c.l.s4 1966171168
    %v3333 = vunpack.c.0.s8 %v3332
    %v3334 = vlaneseq
    %v3335 = vshrl.u32 %v3334, 7
    %v3336 = vsub.s32 %v3333, %v3335
    %v3337 = vrot.slane %v3321, %v3336
    %v3339 = vunpack.c.l.s4 1966171168
    %v3340 = vunpack.c.0.s8 %v3339
    %v3341 = vlaneseq
    %v3342 = vshrl.u32 %v3341, 7
    %v3343 = vsub.s32 %v3340, %v3342
    %v3344 = vrot.slane %v3322, %v3343
    %v3346 = vunpack.c.l.s4 1966171168
    %v3347 = vunpack.c.0.s8 %v3346
    %v3348 = vlaneseq
    %v3349 = vshrl.u32 %v3348, 7
    %v3350 = vsub.s32 %v3347, %v3349
    %v3351 = vrot.slane %v3323, %v3350
    %v3352 = vcombine.low %v3330, %v3337
    %v3353 = vcombine.low %v3344, %v3351
    %v3355 = vunpack.c.l.s4 1966171168
    %v3356 = vunpack.c.0.s8 %v3355
    %v3357 = vlaneseq
    %v3358 = vshrl.u32 %v3357, 7
    %v3359 = vsub.s32 %v3356, %v3358
    %v3360 = vrot.slane %v3352, %v3359
    %v3362 = vunpack.c.l.s4 1966171168
    %v3363 = vunpack.c.0.s8 %v3362
    %v3364 = vlaneseq
    %v3365 = vshrl.u32 %v3364, 7
    %v3366 = vsub.s32 %v3363, %v3365
    %v3367 = vrot.slane %v3353, %v3366
    %v3368 = vcombine.low %v3360, %v3367
    %v3369 = vcombine.low %v3117, %v3131
    %v3370 = vcombine.low %v3132, %v3133
    %v3371 = vcombine.low %v3124, %v3157
    %v3372 = vcombine.low %v3171, %v3179
    %v3374 = vunpack.c.l.s4 1966171168
    %v3375 = vunpack.c.0.s8 %v3374
    %v3376 = vlaneseq
    %v3377 = vshrl.u32 %v3376, 7
    %v3378 = vsub.s32 %v3375, %v3377
    %v3379 = vrot.slane %v3369, %v3378
    %v3381 = vunpack.c.l.s4 1966171168
    %v3382 = vunpack.c.0.s8 %v3381
    %v3383 = vlaneseq
    %v3384 = vshrl.u32 %v3383, 7
    %v3385 = vsub.s32 %v3382, %v3384
    %v3386 = vrot.slane %v3370, %v3385
    %v3388 = vunpack.c.l.s4 1966171168
    %v3389 = vunpack.c.0.s8 %v3388
    %v3390 = vlaneseq
    %v3391 = vshrl.u32 %v3390, 7
    %v3392 = vsub.s32 %v3389, %v3391
    %v3393 = vrot.slane %v3371, %v3392
    %v3395 = vunpack.c.l.s4 1966171168
    %v3396 = vunpack.c.0.s8 %v3395
    %v3397 = vlaneseq
    %v3398 = vshrl.u32 %v3397, 7
    %v3399 = vsub.s32 %v3396, %v3398
    %v3400 = vrot.slane %v3372, %v3399
    %v3401 = vcombine.low %v3379, %v3386
    %v3402 = vcombine.low %v3393, %v3400
    %v3404 = vunpack.c.l.s4 1966171168
    %v3405 = vunpack.c.0.s8 %v3404
    %v3406 = vlaneseq
    %v3407 = vshrl.u32 %v3406, 7
    %v3408 = vsub.s32 %v3405, %v3407
    %v3409 = vrot.slane %v3401, %v3408
    %v3411 = vunpack.c.l.s4 1966171168
    %v3412 = vunpack.c.0.s8 %v3411
    %v3413 = vlaneseq
    %v3414 = vshrl.u32 %v3413, 7
    %v3415 = vsub.s32 %v3412, %v3414
    %v3416 = vrot.slane %v3402, %v3415
    %v3417 = vcombine.low %v3409, %v3416
    %v3418 = vcombine.low %v3181, %v3164
    %v3419 = vcombine.low %v3178, %v3180
    %v3420 = vcombine.low %v3182, %v3206
    %v3421 = vcombine.low %v3220, %v3228
    %v3423 = vunpack.c.l.s4 1966171168
    %v3424 = vunpack.c.0.s8 %v3423
    %v3425 = vlaneseq
    %v3426 = vshrl.u32 %v3425, 7
    %v3427 = vsub.s32 %v3424, %v3426
    %v3428 = vrot.slane %v3418, %v3427
    %v3430 = vunpack.c.l.s4 1966171168
    %v3431 = vunpack.c.0.s8 %v3430
    %v3432 = vlaneseq
    %v3433 = vshrl.u32 %v3432, 7
    %v3434 = vsub.s32 %v3431, %v3433
    %v3435 = vrot.slane %v3419, %v3434
    %v3437 = vunpack.c.l.s4 1966171168
    %v3438 = vunpack.c.0.s8 %v3437
    %v3439 = vlaneseq
    %v3440 = vshrl.u32 %v3439, 7
    %v3441 = vsub.s32 %v3438, %v3440
    %v3442 = vrot.slane %v3420, %v3441
    %v3444 = vunpack.c.l.s4 1966171168
    %v3445 = vunpack.c.0.s8 %v3444
    %v3446 = vlaneseq
    %v3447 = vshrl.u32 %v3446, 7
    %v3448 = vsub.s32 %v3445, %v3447
    %v3449 = vrot.slane %v3421, %v3448
    %v3450 = vcombine.low %v3428, %v3435
    %v3451 = vcombine.low %v3442, %v3449
    %v3453 = vunpack.c.l.s4 1966171168
    %v3454 = vunpack.c.0.s8 %v3453
    %v3455 = vlaneseq
    %v3456 = vshrl.u32 %v3455, 7
    %v3457 = vsub.s32 %v3454, %v3456
    %v3458 = vrot.slane %v3450, %v3457
    %v3460 = vunpack.c.l.s4 1966171168
    %v3461 = vunpack.c.0.s8 %v3460
    %v3462 = vlaneseq
    %v3463 = vshrl.u32 %v3462, 7
    %v3464 = vsub.s32 %v3461, %v3463
    %v3465 = vrot.slane %v3451, %v3464
    %v3466 = vcombine.low %v3458, %v3465
    %v3467 = vcombine.low %v3230, %v3213
    %v3468 = vcombine.low %v3227, %v3229
    %v3469 = vcombine.low %v3231, %v3254
    %v3470 = vcombine.low %v3268, %v3269
    %v3472 = vunpack.c.l.s4 1966171168
    %v3473 = vunpack.c.0.s8 %v3472
    %v3474 = vlaneseq
    %v3475 = vshrl.u32 %v3474, 7
    %v3476 = vsub.s32 %v3473, %v3475
    %v3477 = vrot.slane %v3467, %v3476
    %v3479 = vunpack.c.l.s4 1966171168
    %v3480 = vunpack.c.0.s8 %v3479
    %v3481 = vlaneseq
    %v3482 = vshrl.u32 %v3481, 7
    %v3483 = vsub.s32 %v3480, %v3482
    %v3484 = vrot.slane %v3468, %v3483
    %v3486 = vunpack.c.l.s4 1966171168
    %v3487 = vunpack.c.0.s8 %v3486
    %v3488 = vlaneseq
    %v3489 = vshrl.u32 %v3488, 7
    %v3490 = vsub.s32 %v3487, %v3489
    %v3491 = vrot.slane %v3469, %v3490
    %v3493 = vunpack.c.l.s4 1966171168
    %v3494 = vunpack.c.0.s8 %v3493
    %v3495 = vlaneseq
    %v3496 = vshrl.u32 %v3495, 7
    %v3497 = vsub.s32 %v3494, %v3496
    %v3498 = vrot.slane %v3470, %v3497
    %v3499 = vcombine.low %v3477, %v3484
    %v3500 = vcombine.low %v3491, %v3498
    %v3502 = vunpack.c.l.s4 1966171168
    %v3503 = vunpack.c.0.s8 %v3502
    %v3504 = vlaneseq
    %v3505 = vshrl.u32 %v3504, 7
    %v3506 = vsub.s32 %v3503, %v3505
    %v3507 = vrot.slane %v3499, %v3506
    %v3509 = vunpack.c.l.s4 1966171168
    %v3510 = vunpack.c.0.s8 %v3509
    %v3511 = vlaneseq
    %v3512 = vshrl.u32 %v3511, 7
    %v3513 = vsub.s32 %v3510, %v3512
    %v3514 = vrot.slane %v3500, %v3513
    %v3515 = vcombine.low %v3507, %v3514
    %v3516 = vcombine.low %v3270, %v3261
    %v3518 = vunpack.c.l.s4 1966171168
    %v3519 = vunpack.c.0.s8 %v3518
    %v3520 = vlaneseq
    %v3521 = vshrl.u32 %v3520, 7
    %v3522 = vsub.s32 %v3519, %v3521
    %v3523 = vrot.slane %v3516, %v3522
    %v3525 = vunpack.c.l.s4 1966171168
    %v3526 = vunpack.c.0.s8 %v3525
    %v3527 = vlaneseq
    %v3528 = vshrl.u32 %v3527, 7
    %v3529 = vsub.s32 %v3526, %v3528
    %v3530 = vrot.slane %v3523, %v3529
    %vm3531 = vcmask 818176
    %v3532 = vsel %vm3531, %v3319, 0
    %v3534 = vsel %vm3531, %v3368, 0
    %v3536 = vsel %vm3531, %v3417, 0
    %v3538 = vsel %vm3531, %v3466, 0
    %v3540 = vsel %vm3531, %v3515, 0
    %v3542 = vsel %vm3531, %v3530, 0
    %vm3544 = vcmask 1043456
    %v3546 = vsel %vm3544, %v2990, 0
    %3548 = vmatprep.subr.mxu0 0.0
    %3549 = vmatpush1.msra.mxu0 0.0
    %3550 = vmatprep.subr.mxu0 0.0
    %3551 = vmatpush1.msra.mxu0 0.0
    %3552 = vmatprep.subr.mxu0 0.0
    %3553 = vmatpush1.msra.mxu0 0.0
    %3554 = vmatprep.subr.mxu0 0.0
    %3555 = vmatpush1.msra.mxu0 %v3546
    %3556 = vmatprep.subr.mxu0 0.0
    %3557 = vmatpush1.msra.mxu0 %v2989
    %3558 = vmatprep.subr.mxu0 0.0
    %3559 = vmatpush1.msra.mxu0 %v2988
    %3560 = vmatprep.subr.mxu0 0.0
    %3561 = vmatpush1.msra.mxu0 %v2987
    %3562 = vmatprep.subr.mxu0 0.0
    %3563 = vmatpush1.msra.mxu0 %v2986
    %3564 = vmatprep.subr.mxu0 0.0
    %3565 = vmatpush1.msra.mxu0 %v2985
    %3566 = vmatprep.subr.mxu0 0.0
    %3567 = vmatpush1.msra.mxu0 %v2984
    %3568 = vmatprep.subr.mxu0 0.0
    %3569 = vmatpush1.msra.mxu0 %v2983
    %3570 = vmatprep.subr.mxu0 0.0
    %3571 = vmatpush1.msra.mxu0 %v2982
    %3572 = vmatprep.subr.mxu0 0.0
    %3573 = vmatpush1.msra.mxu0 %v2981
    %3574 = vmatprep.subr.mxu0 0.0
    %3575 = vmatpush1.msra.mxu0 %v2980
    %3576 = vmatprep.subr.mxu0 0.0
    %3577 = vmatpush1.msra.mxu0 %v2979
    %3578 = vmatprep.subr.mxu0 0.0
    %3579 = vmatpush1.msra.mxu0 %v2978
    %3580 = vmatprep.subr.mxu0 0.0
    %3581 = vmatpush2.msra.mxu0 0.0
    %3582 = vmatprep.subr.mxu0 0.0
    %3583 = vmatpush2.msra.mxu0 0.0
    %3584 = vmatprep.subr.mxu0 0.0
    %3585 = vmatpush2.msra.mxu0 0.0
    %3586 = vmatprep.subr.mxu0 0.0
    %3587 = vmatpush2.msra.mxu0 0.0
    %3588 = vmatprep.subr.mxu0 0.0
    %3589 = vmatpush2.msra.mxu0 0.0
    %3590 = vmatprep.subr.mxu0 0.0
    %3591 = vmatpush2.msra.mxu0 0.0
    %3592 = vmatprep.subr.mxu0 0.0
    %3593 = vmatpush2.msra.mxu0 0.0
    %3594 = vmatprep.subr.mxu0 0.0
    %3595 = vmatpush2.msra.mxu0 0.0
    %3596 = vmatprep.subr.mxu0 0.0
    %3597 = vmatpush2.msra.mxu0 0.0
    %3598 = vmatprep.subr.mxu0 0.0
    %3599 = vmatpush2.msra.mxu0 0.0
    %3600 = vmatprep.subr.mxu0 0.0
    %3601 = vmatpush2.msra.mxu0 0.0
    %3602 = vmatprep.subr.mxu0 0.0
    %3603 = vmatpush2.msra.mxu0 0.0
    %3604 = vmatprep.subr.mxu0 0.0
    %3605 = vmatpush2.msra.mxu0 0.0
    %3606 = vmatprep.subr.mxu0 0.0
    %3607 = vmatpush2.msra.mxu0 0.0
    %3608 = vmatprep.subr.mxu0 0.0
    %3609 = vmatpush2.msra.mxu0 0.0
    %3610 = vmatprep.subr.mxu0 0.0
    %3611 = vmatpush2.msra.mxu0 0.0
    %3612 = vmatprep.mubr.f32.mxu0 0.0
    %3613 = vmatmul.mubr.f32.gmra.mxu0 %v3532
    %v3614 = vpop.f32.mrf.mxu0
    %v3615 = vadd.f32 0.0, %v3614
    %v3616 = vpop.f32.mrf.mxu0
    %3617 = vmatprep.mubr.f32.mxu0 0.0
    %3618 = vmatmul.mubr.f32.gmra.mxu0 %v3534
    %v3619 = vpop.f32.mrf.mxu0
    %v3620 = vadd.f32 0.0, %v3619
    %v3621 = vpop.f32.mrf.mxu0
    %3622 = vmatprep.mubr.f32.mxu0 0.0
    %3623 = vmatmul.mubr.f32.gmra.mxu0 %v3536
    %v3624 = vpop.f32.mrf.mxu0
    %v3625 = vadd.f32 0.0, %v3624
    %v3626 = vpop.f32.mrf.mxu0
    %3627 = vmatprep.mubr.f32.mxu0 0.0
    %3628 = vmatmul.mubr.f32.gmra.mxu0 %v3538
    %v3629 = vpop.f32.mrf.mxu0
    %v3630 = vadd.f32 0.0, %v3629
    %v3631 = vpop.f32.mrf.mxu0
    %3632 = vmatprep.mubr.f32.mxu0 0.0
    %3633 = vmatmul.mubr.f32.gmra.mxu0 %v3540
    %v3634 = vpop.f32.mrf.mxu0
    %v3635 = vadd.f32 0.0, %v3634
    %v3636 = vpop.f32.mrf.mxu0
    %3637 = vmatprep.mubr.f32.mxu0 0.0
    %3638 = vmatmul.mubr.f32.gmra.mxu0 %v3542
    %v3639 = vpop.f32.mrf.mxu0
    %v3640 = vadd.f32 0.0, %v3639
    %v3641 = vpop.f32.mrf.mxu0
    %3642 = vdwg.mxu0
    %v3649 = vcombine.high %v3615, %v3615
    %v3651 = vunpack.c.l.s4 1966171168
    %v3652 = vunpack.c.0.s8 %v3651
    %v3653 = vlaneseq
    %v3654 = vshrl.u32 %v3653, 7
    %v3655 = vsub.s32 %v3652, %v3654
    %v3656 = vrot.slane %v3615, %v3655
    %v3658 = vunpack.c.l.s4 1966171168
    %v3659 = vunpack.c.0.s8 %v3658
    %v3660 = vlaneseq
    %v3661 = vshrl.u32 %v3660, 7
    %v3662 = vsub.s32 %v3659, %v3661
    %v3663 = vrot.slane %v3649, %v3662
    %v3664 = vcombine.high %v3656, %v3656
    %v3665 = vcombine.high %v3663, %v3663
    %v3667 = vunpack.c.l.s4 1966171168
    %v3668 = vunpack.c.0.s8 %v3667
    %v3669 = vlaneseq
    %v3670 = vshrl.u32 %v3669, 7
    %v3671 = vsub.s32 %v3668, %v3670
    %v3672 = vrot.slane %v3656, %v3671
    %v3674 = vunpack.c.l.s4 1966171168
    %v3675 = vunpack.c.0.s8 %v3674
    %v3676 = vlaneseq
    %v3677 = vshrl.u32 %v3676, 7
    %v3678 = vsub.s32 %v3675, %v3677
    %v3679 = vrot.slane %v3663, %v3678
    %v3681 = vunpack.c.l.s4 1966171168
    %v3682 = vunpack.c.0.s8 %v3681
    %v3683 = vlaneseq
    %v3684 = vshrl.u32 %v3683, 7
    %v3685 = vsub.s32 %v3682, %v3684
    %v3686 = vrot.slane %v3664, %v3685
    %v3688 = vunpack.c.l.s4 1966171168
    %v3689 = vunpack.c.0.s8 %v3688
    %v3690 = vlaneseq
    %v3691 = vshrl.u32 %v3690, 7
    %v3692 = vsub.s32 %v3689, %v3691
    %v3693 = vrot.slane %v3665, %v3692
    %v3694 = vcombine.high %v3672, %v3672
    %v3695 = vcombine.high %v3679, %v3679
    %v3696 = vcombine.high %v3686, %v3686
    %v3697 = vcombine.high %v3693, %v3693
    %v3698 = vcombine.high %v3620, %v3620
    %v3700 = vunpack.c.l.s4 1966171168
    %v3701 = vunpack.c.0.s8 %v3700
    %v3702 = vlaneseq
    %v3703 = vshrl.u32 %v3702, 7
    %v3704 = vsub.s32 %v3701, %v3703
    %v3705 = vrot.slane %v3620, %v3704
    %v3707 = vunpack.c.l.s4 1966171168
    %v3708 = vunpack.c.0.s8 %v3707
    %v3709 = vlaneseq
    %v3710 = vshrl.u32 %v3709, 7
    %v3711 = vsub.s32 %v3708, %v3710
    %v3712 = vrot.slane %v3698, %v3711
    %v3713 = vcombine.high %v3705, %v3705
    %v3714 = vcombine.high %v3712, %v3712
    %v3716 = vunpack.c.l.s4 1966171168
    %v3717 = vunpack.c.0.s8 %v3716
    %v3718 = vlaneseq
    %v3719 = vshrl.u32 %v3718, 7
    %v3720 = vsub.s32 %v3717, %v3719
    %v3721 = vrot.slane %v3705, %v3720
    %v3723 = vunpack.c.l.s4 1966171168
    %v3724 = vunpack.c.0.s8 %v3723
    %v3725 = vlaneseq
    %v3726 = vshrl.u32 %v3725, 7
    %v3727 = vsub.s32 %v3724, %v3726
    %v3728 = vrot.slane %v3712, %v3727
    %v3730 = vunpack.c.l.s4 1966171168
    %v3731 = vunpack.c.0.s8 %v3730
    %v3732 = vlaneseq
    %v3733 = vshrl.u32 %v3732, 7
    %v3734 = vsub.s32 %v3731, %v3733
    %v3735 = vrot.slane %v3713, %v3734
    %v3737 = vunpack.c.l.s4 1966171168
    %v3738 = vunpack.c.0.s8 %v3737
    %v3739 = vlaneseq
    %v3740 = vshrl.u32 %v3739, 7
    %v3741 = vsub.s32 %v3738, %v3740
    %v3742 = vrot.slane %v3714, %v3741
    %v3743 = vcombine.high %v3721, %v3721
    %v3744 = vcombine.high %v3728, %v3728
    %v3745 = vcombine.high %v3735, %v3735
    %v3746 = vcombine.high %v3742, %v3742
    %v3747 = vcombine.high %v3625, %v3625
    %v3749 = vunpack.c.l.s4 1966171168
    %v3750 = vunpack.c.0.s8 %v3749
    %v3751 = vlaneseq
    %v3752 = vshrl.u32 %v3751, 7
    %v3753 = vsub.s32 %v3750, %v3752
    %v3754 = vrot.slane %v3625, %v3753
    %v3756 = vunpack.c.l.s4 1966171168
    %v3757 = vunpack.c.0.s8 %v3756
    %v3758 = vlaneseq
    %v3759 = vshrl.u32 %v3758, 7
    %v3760 = vsub.s32 %v3757, %v3759
    %v3761 = vrot.slane %v3747, %v3760
    %v3762 = vcombine.high %v3754, %v3754
    %v3763 = vcombine.high %v3761, %v3761
    %v3765 = vunpack.c.l.s4 1966171168
    %v3766 = vunpack.c.0.s8 %v3765
    %v3767 = vlaneseq
    %v3768 = vshrl.u32 %v3767, 7
    %v3769 = vsub.s32 %v3766, %v3768
    %v3770 = vrot.slane %v3754, %v3769
    %v3772 = vunpack.c.l.s4 1966171168
    %v3773 = vunpack.c.0.s8 %v3772
    %v3774 = vlaneseq
    %v3775 = vshrl.u32 %v3774, 7
    %v3776 = vsub.s32 %v3773, %v3775
    %v3777 = vrot.slane %v3761, %v3776
    %v3779 = vunpack.c.l.s4 1966171168
    %v3780 = vunpack.c.0.s8 %v3779
    %v3781 = vlaneseq
    %v3782 = vshrl.u32 %v3781, 7
    %v3783 = vsub.s32 %v3780, %v3782
    %v3784 = vrot.slane %v3762, %v3783
    %v3786 = vunpack.c.l.s4 1966171168
    %v3787 = vunpack.c.0.s8 %v3786
    %v3788 = vlaneseq
    %v3789 = vshrl.u32 %v3788, 7
    %v3790 = vsub.s32 %v3787, %v3789
    %v3791 = vrot.slane %v3763, %v3790
    %v3792 = vcombine.high %v3770, %v3770
    %v3793 = vcombine.high %v3777, %v3777
    %v3794 = vcombine.high %v3784, %v3784
    %v3795 = vcombine.high %v3791, %v3791
    %v3796 = vcombine.high %v3630, %v3630
    %v3798 = vunpack.c.l.s4 1966171168
    %v3799 = vunpack.c.0.s8 %v3798
    %v3800 = vlaneseq
    %v3801 = vshrl.u32 %v3800, 7
    %v3802 = vsub.s32 %v3799, %v3801
    %v3803 = vrot.slane %v3630, %v3802
    %v3805 = vunpack.c.l.s4 1966171168
    %v3806 = vunpack.c.0.s8 %v3805
    %v3807 = vlaneseq
    %v3808 = vshrl.u32 %v3807, 7
    %v3809 = vsub.s32 %v3806, %v3808
    %v3810 = vrot.slane %v3796, %v3809
    %v3811 = vcombine.high %v3803, %v3803
    %v3812 = vcombine.high %v3810, %v3810
    %v3814 = vunpack.c.l.s4 1966171168
    %v3815 = vunpack.c.0.s8 %v3814
    %v3816 = vlaneseq
    %v3817 = vshrl.u32 %v3816, 7
    %v3818 = vsub.s32 %v3815, %v3817
    %v3819 = vrot.slane %v3803, %v3818
    %v3821 = vunpack.c.l.s4 1966171168
    %v3822 = vunpack.c.0.s8 %v3821
    %v3823 = vlaneseq
    %v3824 = vshrl.u32 %v3823, 7
    %v3825 = vsub.s32 %v3822, %v3824
    %v3826 = vrot.slane %v3810, %v3825
    %v3828 = vunpack.c.l.s4 1966171168
    %v3829 = vunpack.c.0.s8 %v3828
    %v3830 = vlaneseq
    %v3831 = vshrl.u32 %v3830, 7
    %v3832 = vsub.s32 %v3829, %v3831
    %v3833 = vrot.slane %v3811, %v3832
    %v3835 = vunpack.c.l.s4 1966171168
    %v3836 = vunpack.c.0.s8 %v3835
    %v3837 = vlaneseq
    %v3838 = vshrl.u32 %v3837, 7
    %v3839 = vsub.s32 %v3836, %v3838
    %v3840 = vrot.slane %v3812, %v3839
    %v3841 = vcombine.high %v3819, %v3819
    %v3842 = vcombine.high %v3826, %v3826
    %v3843 = vcombine.high %v3833, %v3833
    %v3844 = vcombine.high %v3840, %v3840
    %v3845 = vcombine.high %v3635, %v3635
    %v3847 = vunpack.c.l.s4 1966171168
    %v3848 = vunpack.c.0.s8 %v3847
    %v3849 = vlaneseq
    %v3850 = vshrl.u32 %v3849, 7
    %v3851 = vsub.s32 %v3848, %v3850
    %v3852 = vrot.slane %v3635, %v3851
    %v3854 = vunpack.c.l.s4 1966171168
    %v3855 = vunpack.c.0.s8 %v3854
    %v3856 = vlaneseq
    %v3857 = vshrl.u32 %v3856, 7
    %v3858 = vsub.s32 %v3855, %v3857
    %v3859 = vrot.slane %v3845, %v3858
    %v3860 = vcombine.high %v3852, %v3852
    %v3861 = vcombine.high %v3859, %v3859
    %v3863 = vunpack.c.l.s4 1966171168
    %v3864 = vunpack.c.0.s8 %v3863
    %v3865 = vlaneseq
    %v3866 = vshrl.u32 %v3865, 7
    %v3867 = vsub.s32 %v3864, %v3866
    %v3868 = vrot.slane %v3852, %v3867
    %v3870 = vunpack.c.l.s4 1966171168
    %v3871 = vunpack.c.0.s8 %v3870
    %v3872 = vlaneseq
    %v3873 = vshrl.u32 %v3872, 7
    %v3874 = vsub.s32 %v3871, %v3873
    %v3875 = vrot.slane %v3859, %v3874
    %v3877 = vunpack.c.l.s4 1966171168
    %v3878 = vunpack.c.0.s8 %v3877
    %v3879 = vlaneseq
    %v3880 = vshrl.u32 %v3879, 7
    %v3881 = vsub.s32 %v3878, %v3880
    %v3882 = vrot.slane %v3860, %v3881
    %v3884 = vunpack.c.l.s4 1966171168
    %v3885 = vunpack.c.0.s8 %v3884
    %v3886 = vlaneseq
    %v3887 = vshrl.u32 %v3886, 7
    %v3888 = vsub.s32 %v3885, %v3887
    %v3889 = vrot.slane %v3861, %v3888
    %v3890 = vcombine.high %v3868, %v3868
    %v3891 = vcombine.high %v3875, %v3875
    %v3892 = vcombine.high %v3882, %v3882
    %v3893 = vcombine.high %v3889, %v3889
    %v3895 = vunpack.c.l.s4 1966171168
    %v3896 = vunpack.c.0.s8 %v3895
    %v3897 = vlaneseq
    %v3898 = vshrl.u32 %v3897, 7
    %v3899 = vsub.s32 %v3896, %v3898
    %v3900 = vrot.slane %v3640, %v3899
    %v3901 = vcombine.high %v3900, %v3900
    %v3903 = vunpack.c.l.s4 1966171168
    %v3904 = vunpack.c.0.s8 %v3903
    %v3905 = vlaneseq
    %v3906 = vshrl.u32 %v3905, 7
    %v3907 = vsub.s32 %v3904, %v3906
    %v3908 = vrot.slane %v3900, %v3907
    %v3910 = vunpack.c.l.s4 1966171168
    %v3911 = vunpack.c.0.s8 %v3910
    %v3912 = vlaneseq
    %v3913 = vshrl.u32 %v3912, 7
    %v3914 = vsub.s32 %v3911, %v3913
    %v3915 = vrot.slane %v3901, %v3914
    %v3958 = vcombine.low %v3672, %v3686
    %v3959 = vcombine.low %v3694, %v3696
    %v3960 = vcombine.low %v3679, %v3693
    %v3961 = vcombine.low %v3695, %v3697
    %v3963 = vunpack.c.l.s4 1966171168
    %v3964 = vunpack.c.0.s8 %v3963
    %v3965 = vlaneseq
    %v3966 = vshrl.u32 %v3965, 7
    %v3967 = vsub.s32 %v3964, %v3966
    %v3968 = vrot.slane %v3958, %v3967
    %v3970 = vunpack.c.l.s4 1966171168
    %v3971 = vunpack.c.0.s8 %v3970
    %v3972 = vlaneseq
    %v3973 = vshrl.u32 %v3972, 7
    %v3974 = vsub.s32 %v3971, %v3973
    %v3975 = vrot.slane %v3959, %v3974
    %v3977 = vunpack.c.l.s4 1966171168
    %v3978 = vunpack.c.0.s8 %v3977
    %v3979 = vlaneseq
    %v3980 = vshrl.u32 %v3979, 7
    %v3981 = vsub.s32 %v3978, %v3980
    %v3982 = vrot.slane %v3960, %v3981
    %v3984 = vunpack.c.l.s4 1966171168
    %v3985 = vunpack.c.0.s8 %v3984
    %v3986 = vlaneseq
    %v3987 = vshrl.u32 %v3986, 7
    %v3988 = vsub.s32 %v3985, %v3987
    %v3989 = vrot.slane %v3961, %v3988
    %v3990 = vcombine.low %v3968, %v3975
    %v3991 = vcombine.low %v3982, %v3989
    %v3993 = vunpack.c.l.s4 1966171168
    %v3994 = vunpack.c.0.s8 %v3993
    %v3995 = vlaneseq
    %v3996 = vshrl.u32 %v3995, 7
    %v3997 = vsub.s32 %v3994, %v3996
    %v3998 = vrot.slane %v3990, %v3997
    %v4000 = vunpack.c.l.s4 1966171168
    %v4001 = vunpack.c.0.s8 %v4000
    %v4002 = vlaneseq
    %v4003 = vshrl.u32 %v4002, 7
    %v4004 = vsub.s32 %v4001, %v4003
    %v4005 = vrot.slane %v3991, %v4004
    %v4006 = vcombine.low %v3998, %v4005
    %v4007 = vcombine.low %v3721, %v3735
    %v4008 = vcombine.low %v3743, %v3745
    %v4009 = vcombine.low %v3728, %v3742
    %v4010 = vcombine.low %v3744, %v3746
    %v4012 = vunpack.c.l.s4 1966171168
    %v4013 = vunpack.c.0.s8 %v4012
    %v4014 = vlaneseq
    %v4015 = vshrl.u32 %v4014, 7
    %v4016 = vsub.s32 %v4013, %v4015
    %v4017 = vrot.slane %v4007, %v4016
    %v4019 = vunpack.c.l.s4 1966171168
    %v4020 = vunpack.c.0.s8 %v4019
    %v4021 = vlaneseq
    %v4022 = vshrl.u32 %v4021, 7
    %v4023 = vsub.s32 %v4020, %v4022
    %v4024 = vrot.slane %v4008, %v4023
    %v4026 = vunpack.c.l.s4 1966171168
    %v4027 = vunpack.c.0.s8 %v4026
    %v4028 = vlaneseq
    %v4029 = vshrl.u32 %v4028, 7
    %v4030 = vsub.s32 %v4027, %v4029
    %v4031 = vrot.slane %v4009, %v4030
    %v4033 = vunpack.c.l.s4 1966171168
    %v4034 = vunpack.c.0.s8 %v4033
    %v4035 = vlaneseq
    %v4036 = vshrl.u32 %v4035, 7
    %v4037 = vsub.s32 %v4034, %v4036
    %v4038 = vrot.slane %v4010, %v4037
    %v4039 = vcombine.low %v4017, %v4024
    %v4040 = vcombine.low %v4031, %v4038
    %v4042 = vunpack.c.l.s4 1966171168
    %v4043 = vunpack.c.0.s8 %v4042
    %v4044 = vlaneseq
    %v4045 = vshrl.u32 %v4044, 7
    %v4046 = vsub.s32 %v4043, %v4045
    %v4047 = vrot.slane %v4039, %v4046
    %v4049 = vunpack.c.l.s4 1966171168
    %v4050 = vunpack.c.0.s8 %v4049
    %v4051 = vlaneseq
    %v4052 = vshrl.u32 %v4051, 7
    %v4053 = vsub.s32 %v4050, %v4052
    %v4054 = vrot.slane %v4040, %v4053
    %v4055 = vcombine.low %v4047, %v4054
    %v4056 = vcombine.low %v3770, %v3784
    %v4057 = vcombine.low %v3792, %v3794
    %v4059 = vunpack.c.l.s4 1966171168
    %v4060 = vunpack.c.0.s8 %v4059
    %v4061 = vlaneseq
    %v4062 = vshrl.u32 %v4061, 7
    %v4063 = vsub.s32 %v4060, %v4062
    %v4064 = vrot.slane %v4056, %v4063
    %v4066 = vunpack.c.l.s4 1966171168
    %v4067 = vunpack.c.0.s8 %v4066
    %v4068 = vlaneseq
    %v4069 = vshrl.u32 %v4068, 7
    %v4070 = vsub.s32 %v4067, %v4069
    %v4071 = vrot.slane %v4057, %v4070
    %v4073 = vunpack.c.l.s4 1966171168
    %v4074 = vunpack.c.0.s8 %v4073
    %v4075 = vlaneseq
    %v4076 = vshrl.u32 %v4075, 7
    %v4077 = vsub.s32 %v4074, %v4076
    %v4078 = vrot.slane %v3777, %v4077
    %v4079 = vcombine.low %v4064, %v4071
    %v4081 = vunpack.c.l.s4 1966171168
    %v4082 = vunpack.c.0.s8 %v4081
    %v4083 = vlaneseq
    %v4084 = vshrl.u32 %v4083, 7
    %v4085 = vsub.s32 %v4082, %v4084
    %v4086 = vrot.slane %v4079, %v4085
    %v4088 = vunpack.c.l.s4 1966171168
    %v4089 = vunpack.c.0.s8 %v4088
    %v4090 = vlaneseq
    %v4091 = vshrl.u32 %v4090, 7
    %v4092 = vsub.s32 %v4089, %v4091
    %v4093 = vrot.slane %v4078, %v4092
    %v4094 = vcombine.low %v4086, %v4093
    %v4095 = vcombine.low %v3791, %v3793
    %v4096 = vcombine.low %v3795, %v3819
    %v4097 = vcombine.low %v3833, %v3841
    %v4098 = vcombine.low %v3843, %v3826
    %v4100 = vunpack.c.l.s4 1966171168
    %v4101 = vunpack.c.0.s8 %v4100
    %v4102 = vlaneseq
    %v4103 = vshrl.u32 %v4102, 7
    %v4104 = vsub.s32 %v4101, %v4103
    %v4105 = vrot.slane %v4095, %v4104
    %v4107 = vunpack.c.l.s4 1966171168
    %v4108 = vunpack.c.0.s8 %v4107
    %v4109 = vlaneseq
    %v4110 = vshrl.u32 %v4109, 7
    %v4111 = vsub.s32 %v4108, %v4110
    %v4112 = vrot.slane %v4096, %v4111
    %v4114 = vunpack.c.l.s4 1966171168
    %v4115 = vunpack.c.0.s8 %v4114
    %v4116 = vlaneseq
    %v4117 = vshrl.u32 %v4116, 7
    %v4118 = vsub.s32 %v4115, %v4117
    %v4119 = vrot.slane %v4097, %v4118
    %v4121 = vunpack.c.l.s4 1966171168
    %v4122 = vunpack.c.0.s8 %v4121
    %v4123 = vlaneseq
    %v4124 = vshrl.u32 %v4123, 7
    %v4125 = vsub.s32 %v4122, %v4124
    %v4126 = vrot.slane %v4098, %v4125
    %v4127 = vcombine.low %v4105, %v4112
    %v4128 = vcombine.low %v4119, %v4126
    %v4130 = vunpack.c.l.s4 1966171168
    %v4131 = vunpack.c.0.s8 %v4130
    %v4132 = vlaneseq
    %v4133 = vshrl.u32 %v4132, 7
    %v4134 = vsub.s32 %v4131, %v4133
    %v4135 = vrot.slane %v4127, %v4134
    %v4137 = vunpack.c.l.s4 1966171168
    %v4138 = vunpack.c.0.s8 %v4137
    %v4139 = vlaneseq
    %v4140 = vshrl.u32 %v4139, 7
    %v4141 = vsub.s32 %v4138, %v4140
    %v4142 = vrot.slane %v4128, %v4141
    %v4143 = vcombine.low %v4135, %v4142
    %v4144 = vcombine.low %v3840, %v3842
    %v4145 = vcombine.low %v3844, %v3868
    %v4146 = vcombine.low %v3882, %v3890
    %v4147 = vcombine.low %v3892, %v3875
    %v4149 = vunpack.c.l.s4 1966171168
    %v4150 = vunpack.c.0.s8 %v4149
    %v4151 = vlaneseq
    %v4152 = vshrl.u32 %v4151, 7
    %v4153 = vsub.s32 %v4150, %v4152
    %v4154 = vrot.slane %v4144, %v4153
    %v4156 = vunpack.c.l.s4 1966171168
    %v4157 = vunpack.c.0.s8 %v4156
    %v4158 = vlaneseq
    %v4159 = vshrl.u32 %v4158, 7
    %v4160 = vsub.s32 %v4157, %v4159
    %v4161 = vrot.slane %v4145, %v4160
    %v4163 = vunpack.c.l.s4 1966171168
    %v4164 = vunpack.c.0.s8 %v4163
    %v4165 = vlaneseq
    %v4166 = vshrl.u32 %v4165, 7
    %v4167 = vsub.s32 %v4164, %v4166
    %v4168 = vrot.slane %v4146, %v4167
    %v4170 = vunpack.c.l.s4 1966171168
    %v4171 = vunpack.c.0.s8 %v4170
    %v4172 = vlaneseq
    %v4173 = vshrl.u32 %v4172, 7
    %v4174 = vsub.s32 %v4171, %v4173
    %v4175 = vrot.slane %v4147, %v4174
    %v4176 = vcombine.low %v4154, %v4161
    %v4177 = vcombine.low %v4168, %v4175
    %v4179 = vunpack.c.l.s4 1966171168
    %v4180 = vunpack.c.0.s8 %v4179
    %v4181 = vlaneseq
    %v4182 = vshrl.u32 %v4181, 7
    %v4183 = vsub.s32 %v4180, %v4182
    %v4184 = vrot.slane %v4176, %v4183
    %v4186 = vunpack.c.l.s4 1966171168
    %v4187 = vunpack.c.0.s8 %v4186
    %v4188 = vlaneseq
    %v4189 = vshrl.u32 %v4188, 7
    %v4190 = vsub.s32 %v4187, %v4189
    %v4191 = vrot.slane %v4177, %v4190
    %v4192 = vcombine.low %v4184, %v4191
    %v4193 = vcombine.low %v3889, %v3891
    %v4194 = vcombine.low %v3893, %v3908
    %v4196 = vunpack.c.l.s4 1966171168
    %v4197 = vunpack.c.0.s8 %v4196
    %v4198 = vlaneseq
    %v4199 = vshrl.u32 %v4198, 7
    %v4200 = vsub.s32 %v4197, %v4199
    %v4201 = vrot.slane %v4193, %v4200
    %v4203 = vunpack.c.l.s4 1966171168
    %v4204 = vunpack.c.0.s8 %v4203
    %v4205 = vlaneseq
    %v4206 = vshrl.u32 %v4205, 7
    %v4207 = vsub.s32 %v4204, %v4206
    %v4208 = vrot.slane %v4194, %v4207
    %v4210 = vunpack.c.l.s4 1966171168
    %v4211 = vunpack.c.0.s8 %v4210
    %v4212 = vlaneseq
    %v4213 = vshrl.u32 %v4212, 7
    %v4214 = vsub.s32 %v4211, %v4213
    %v4215 = vrot.slane %v3915, %v4214
    %v4216 = vcombine.low %v4201, %v4208
    %v4218 = vunpack.c.l.s4 1966171168
    %v4219 = vunpack.c.0.s8 %v4218
    %v4220 = vlaneseq
    %v4221 = vshrl.u32 %v4220, 7
    %v4222 = vsub.s32 %v4219, %v4221
    %v4223 = vrot.slane %v4216, %v4222
    %v4225 = vunpack.c.l.s4 1966171168
    %v4226 = vunpack.c.0.s8 %v4225
    %v4227 = vlaneseq
    %v4228 = vshrl.u32 %v4227, 7
    %v4229 = vsub.s32 %v4226, %v4228
    %v4230 = vrot.slane %v4215, %v4229
    %v4231 = vcombine.low %v4223, %v4230
    %vm4238 = vcmask 326656
    %v4239 = vsel %vm4238, %v4006, 0.0
    %v4240 = vsel %vm4238, %v4055, 0.0
    %v4241 = vadd.f32 %v4239, %v4240
    %vm4242 = vcmask 323584
    %v4243 = vsel %vm4242, %v4094, 0.0
    %v4244 = vadd.f32 %v4241, %v4243
    %v4245 = vsel %vm4238, %v4143, 0.0
    %v4246 = vadd.f32 %v4244, %v4245
    %v4247 = vsel %vm4238, %v4192, 0.0
    %v4248 = vadd.f32 %v4246, %v4247
    %v4249 = vsel %vm4242, %v4231, 0.0
    %v4250 = vadd.f32 %v4248, %v4249
    %v4251 = vrot.slane %v4250, 4
    %v4252 = vadd.f32 %v4250, %v4251
    %v4253 = vrot.slane %v4252, 2
    %v4254 = vadd.f32 %v4252, %v4253
    %v4255 = vrot.slane %v4254, 1
    %v4256 = vadd.f32 %v4254, %v4255
    %v4257 = vmul.f32 %v3672, %v3672
    %v4258 = vmul.f32 %v3686, %v3686
    %v4259 = vmul.f32 %v3694, %v3694
    %v4260 = vmul.f32 %v3696, %v3696
    %v4261 = vmul.f32 %v3679, %v3679
    %v4262 = vmul.f32 %v3693, %v3693
    %v4263 = vmul.f32 %v3695, %v3695
    %v4264 = vmul.f32 %v3697, %v3697
    %v4265 = vmul.f32 %v3721, %v3721
    %v4266 = vmul.f32 %v3735, %v3735
    %v4267 = vmul.f32 %v3743, %v3743
    %v4268 = vmul.f32 %v3745, %v3745
    %v4269 = vmul.f32 %v3728, %v3728
    %v4270 = vmul.f32 %v3742, %v3742
    %v4271 = vmul.f32 %v3744, %v3744
    %v4272 = vmul.f32 %v3746, %v3746
    %v4273 = vmul.f32 %v3770, %v3770
    %v4274 = vmul.f32 %v3784, %v3784
    %v4275 = vmul.f32 %v3792, %v3792
    %v4276 = vmul.f32 %v3794, %v3794
    %v4277 = vmul.f32 %v3777, %v3777
    %v4278 = vmul.f32 %v3791, %v3791
    %v4279 = vmul.f32 %v3793, %v3793
    %v4280 = vmul.f32 %v3795, %v3795
    %v4281 = vmul.f32 %v3819, %v3819
    %v4282 = vmul.f32 %v3833, %v3833
    %v4283 = vmul.f32 %v3841, %v3841
    %v4284 = vmul.f32 %v3843, %v3843
    %v4285 = vmul.f32 %v3826, %v3826
    %v4286 = vmul.f32 %v3840, %v3840
    %v4287 = vmul.f32 %v3842, %v3842
    %v4288 = vmul.f32 %v3844, %v3844
    %v4289 = vmul.f32 %v3868, %v3868
    %v4290 = vmul.f32 %v3882, %v3882
    %v4291 = vmul.f32 %v3890, %v3890
    %v4292 = vmul.f32 %v3892, %v3892
    %v4293 = vmul.f32 %v3875, %v3875
    %v4294 = vmul.f32 %v3889, %v3889
    %v4295 = vmul.f32 %v3891, %v3891
    %v4296 = vmul.f32 %v3893, %v3893
    %v4297 = vmul.f32 %v3908, %v3908
    %v4298 = vmul.f32 %v3915, %v3915
    %v4341 = vcombine.low %v4257, %v4258
    %v4342 = vcombine.low %v4259, %v4260
    %v4343 = vcombine.low %v4261, %v4262
    %v4344 = vcombine.low %v4263, %v4264
    %v4346 = vunpack.c.l.s4 1966171168
    %v4347 = vunpack.c.0.s8 %v4346
    %v4348 = vlaneseq
    %v4349 = vshrl.u32 %v4348, 7
    %v4350 = vsub.s32 %v4347, %v4349
    %v4351 = vrot.slane %v4341, %v4350
    %v4353 = vunpack.c.l.s4 1966171168
    %v4354 = vunpack.c.0.s8 %v4353
    %v4355 = vlaneseq
    %v4356 = vshrl.u32 %v4355, 7
    %v4357 = vsub.s32 %v4354, %v4356
    %v4358 = vrot.slane %v4342, %v4357
    %v4360 = vunpack.c.l.s4 1966171168
    %v4361 = vunpack.c.0.s8 %v4360
    %v4362 = vlaneseq
    %v4363 = vshrl.u32 %v4362, 7
    %v4364 = vsub.s32 %v4361, %v4363
    %v4365 = vrot.slane %v4343, %v4364
    %v4367 = vunpack.c.l.s4 1966171168
    %v4368 = vunpack.c.0.s8 %v4367
    %v4369 = vlaneseq
    %v4370 = vshrl.u32 %v4369, 7
    %v4371 = vsub.s32 %v4368, %v4370
    %v4372 = vrot.slane %v4344, %v4371
    %v4373 = vcombine.low %v4351, %v4358
    %v4374 = vcombine.low %v4365, %v4372
    %v4376 = vunpack.c.l.s4 1966171168
    %v4377 = vunpack.c.0.s8 %v4376
    %v4378 = vlaneseq
    %v4379 = vshrl.u32 %v4378, 7
    %v4380 = vsub.s32 %v4377, %v4379
    %v4381 = vrot.slane %v4373, %v4380
    %v4383 = vunpack.c.l.s4 1966171168
    %v4384 = vunpack.c.0.s8 %v4383
    %v4385 = vlaneseq
    %v4386 = vshrl.u32 %v4385, 7
    %v4387 = vsub.s32 %v4384, %v4386
    %v4388 = vrot.slane %v4374, %v4387
    %v4389 = vcombine.low %v4381, %v4388
    %v4390 = vcombine.low %v4265, %v4266
    %v4391 = vcombine.low %v4267, %v4268
    %v4392 = vcombine.low %v4269, %v4270
    %v4393 = vcombine.low %v4271, %v4272
    %v4395 = vunpack.c.l.s4 1966171168
    %v4396 = vunpack.c.0.s8 %v4395
    %v4397 = vlaneseq
    %v4398 = vshrl.u32 %v4397, 7
    %v4399 = vsub.s32 %v4396, %v4398
    %v4400 = vrot.slane %v4390, %v4399
    %v4402 = vunpack.c.l.s4 1966171168
    %v4403 = vunpack.c.0.s8 %v4402
    %v4404 = vlaneseq
    %v4405 = vshrl.u32 %v4404, 7
    %v4406 = vsub.s32 %v4403, %v4405
    %v4407 = vrot.slane %v4391, %v4406
    %v4409 = vunpack.c.l.s4 1966171168
    %v4410 = vunpack.c.0.s8 %v4409
    %v4411 = vlaneseq
    %v4412 = vshrl.u32 %v4411, 7
    %v4413 = vsub.s32 %v4410, %v4412
    %v4414 = vrot.slane %v4392, %v4413
    %v4416 = vunpack.c.l.s4 1966171168
    %v4417 = vunpack.c.0.s8 %v4416
    %v4418 = vlaneseq
    %v4419 = vshrl.u32 %v4418, 7
    %v4420 = vsub.s32 %v4417, %v4419
    %v4421 = vrot.slane %v4393, %v4420
    %v4422 = vcombine.low %v4400, %v4407
    %v4423 = vcombine.low %v4414, %v4421
    %v4425 = vunpack.c.l.s4 1966171168
    %v4426 = vunpack.c.0.s8 %v4425
    %v4427 = vlaneseq
    %v4428 = vshrl.u32 %v4427, 7
    %v4429 = vsub.s32 %v4426, %v4428
    %v4430 = vrot.slane %v4422, %v4429
    %v4432 = vunpack.c.l.s4 1966171168
    %v4433 = vunpack.c.0.s8 %v4432
    %v4434 = vlaneseq
    %v4435 = vshrl.u32 %v4434, 7
    %v4436 = vsub.s32 %v4433, %v4435
    %v4437 = vrot.slane %v4423, %v4436
    %v4438 = vcombine.low %v4430, %v4437
    %v4439 = vcombine.low %v4273, %v4274
    %v4440 = vcombine.low %v4275, %v4276
    %v4442 = vunpack.c.l.s4 1966171168
    %v4443 = vunpack.c.0.s8 %v4442
    %v4444 = vlaneseq
    %v4445 = vshrl.u32 %v4444, 7
    %v4446 = vsub.s32 %v4443, %v4445
    %v4447 = vrot.slane %v4439, %v4446
    %v4449 = vunpack.c.l.s4 1966171168
    %v4450 = vunpack.c.0.s8 %v4449
    %v4451 = vlaneseq
    %v4452 = vshrl.u32 %v4451, 7
    %v4453 = vsub.s32 %v4450, %v4452
    %v4454 = vrot.slane %v4440, %v4453
    %v4456 = vunpack.c.l.s4 1966171168
    %v4457 = vunpack.c.0.s8 %v4456
    %v4458 = vlaneseq
    %v4459 = vshrl.u32 %v4458, 7
    %v4460 = vsub.s32 %v4457, %v4459
    %v4461 = vrot.slane %v4277, %v4460
    %v4462 = vcombine.low %v4447, %v4454
    %v4464 = vunpack.c.l.s4 1966171168
    %v4465 = vunpack.c.0.s8 %v4464
    %v4466 = vlaneseq
    %v4467 = vshrl.u32 %v4466, 7
    %v4468 = vsub.s32 %v4465, %v4467
    %v4469 = vrot.slane %v4462, %v4468
    %v4471 = vunpack.c.l.s4 1966171168
    %v4472 = vunpack.c.0.s8 %v4471
    %v4473 = vlaneseq
    %v4474 = vshrl.u32 %v4473, 7
    %v4475 = vsub.s32 %v4472, %v4474
    %v4476 = vrot.slane %v4461, %v4475
    %v4477 = vcombine.low %v4469, %v4476
    %v4478 = vcombine.low %v4278, %v4279
    %v4479 = vcombine.low %v4280, %v4281
    %v4480 = vcombine.low %v4282, %v4283
    %v4481 = vcombine.low %v4284, %v4285
    %v4483 = vunpack.c.l.s4 1966171168
    %v4484 = vunpack.c.0.s8 %v4483
    %v4485 = vlaneseq
    %v4486 = vshrl.u32 %v4485, 7
    %v4487 = vsub.s32 %v4484, %v4486
    %v4488 = vrot.slane %v4478, %v4487
    %v4490 = vunpack.c.l.s4 1966171168
    %v4491 = vunpack.c.0.s8 %v4490
    %v4492 = vlaneseq
    %v4493 = vshrl.u32 %v4492, 7
    %v4494 = vsub.s32 %v4491, %v4493
    %v4495 = vrot.slane %v4479, %v4494
    %v4497 = vunpack.c.l.s4 1966171168
    %v4498 = vunpack.c.0.s8 %v4497
    %v4499 = vlaneseq
    %v4500 = vshrl.u32 %v4499, 7
    %v4501 = vsub.s32 %v4498, %v4500
    %v4502 = vrot.slane %v4480, %v4501
    %v4504 = vunpack.c.l.s4 1966171168
    %v4505 = vunpack.c.0.s8 %v4504
    %v4506 = vlaneseq
    %v4507 = vshrl.u32 %v4506, 7
    %v4508 = vsub.s32 %v4505, %v4507
    %v4509 = vrot.slane %v4481, %v4508
    %v4510 = vcombine.low %v4488, %v4495
    %v4511 = vcombine.low %v4502, %v4509
    %v4513 = vunpack.c.l.s4 1966171168
    %v4514 = vunpack.c.0.s8 %v4513
    %v4515 = vlaneseq
    %v4516 = vshrl.u32 %v4515, 7
    %v4517 = vsub.s32 %v4514, %v4516
    %v4518 = vrot.slane %v4510, %v4517
    %v4520 = vunpack.c.l.s4 1966171168
    %v4521 = vunpack.c.0.s8 %v4520
    %v4522 = vlaneseq
    %v4523 = vshrl.u32 %v4522, 7
    %v4524 = vsub.s32 %v4521, %v4523
    %v4525 = vrot.slane %v4511, %v4524
    %v4526 = vcombine.low %v4518, %v4525
    %v4527 = vcombine.low %v4286, %v4287
    %v4528 = vcombine.low %v4288, %v4289
    %v4529 = vcombine.low %v4290, %v4291
    %v4530 = vcombine.low %v4292, %v4293
    %v4532 = vunpack.c.l.s4 1966171168
    %v4533 = vunpack.c.0.s8 %v4532
    %v4534 = vlaneseq
    %v4535 = vshrl.u32 %v4534, 7
    %v4536 = vsub.s32 %v4533, %v4535
    %v4537 = vrot.slane %v4527, %v4536
    %v4539 = vunpack.c.l.s4 1966171168
    %v4540 = vunpack.c.0.s8 %v4539
    %v4541 = vlaneseq
    %v4542 = vshrl.u32 %v4541, 7
    %v4543 = vsub.s32 %v4540, %v4542
    %v4544 = vrot.slane %v4528, %v4543
    %v4546 = vunpack.c.l.s4 1966171168
    %v4547 = vunpack.c.0.s8 %v4546
    %v4548 = vlaneseq
    %v4549 = vshrl.u32 %v4548, 7
    %v4550 = vsub.s32 %v4547, %v4549
    %v4551 = vrot.slane %v4529, %v4550
    %v4553 = vunpack.c.l.s4 1966171168
    %v4554 = vunpack.c.0.s8 %v4553
    %v4555 = vlaneseq
    %v4556 = vshrl.u32 %v4555, 7
    %v4557 = vsub.s32 %v4554, %v4556
    %v4558 = vrot.slane %v4530, %v4557
    %v4559 = vcombine.low %v4537, %v4544
    %v4560 = vcombine.low %v4551, %v4558
    %v4562 = vunpack.c.l.s4 1966171168
    %v4563 = vunpack.c.0.s8 %v4562
    %v4564 = vlaneseq
    %v4565 = vshrl.u32 %v4564, 7
    %v4566 = vsub.s32 %v4563, %v4565
    %v4567 = vrot.slane %v4559, %v4566
    %v4569 = vunpack.c.l.s4 1966171168
    %v4570 = vunpack.c.0.s8 %v4569
    %v4571 = vlaneseq
    %v4572 = vshrl.u32 %v4571, 7
    %v4573 = vsub.s32 %v4570, %v4572
    %v4574 = vrot.slane %v4560, %v4573
    %v4575 = vcombine.low %v4567, %v4574
    %v4576 = vcombine.low %v4294, %v4295
    %v4577 = vcombine.low %v4296, %v4297
    %v4579 = vunpack.c.l.s4 1966171168
    %v4580 = vunpack.c.0.s8 %v4579
    %v4581 = vlaneseq
    %v4582 = vshrl.u32 %v4581, 7
    %v4583 = vsub.s32 %v4580, %v4582
    %v4584 = vrot.slane %v4576, %v4583
    %v4586 = vunpack.c.l.s4 1966171168
    %v4587 = vunpack.c.0.s8 %v4586
    %v4588 = vlaneseq
    %v4589 = vshrl.u32 %v4588, 7
    %v4590 = vsub.s32 %v4587, %v4589
    %v4591 = vrot.slane %v4577, %v4590
    %v4593 = vunpack.c.l.s4 1966171168
    %v4594 = vunpack.c.0.s8 %v4593
    %v4595 = vlaneseq
    %v4596 = vshrl.u32 %v4595, 7
    %v4597 = vsub.s32 %v4594, %v4596
    %v4598 = vrot.slane %v4298, %v4597
    %v4599 = vcombine.low %v4584, %v4591
    %v4601 = vunpack.c.l.s4 1966171168
    %v4602 = vunpack.c.0.s8 %v4601
    %v4603 = vlaneseq
    %v4604 = vshrl.u32 %v4603, 7
    %v4605 = vsub.s32 %v4602, %v4604
    %v4606 = vrot.slane %v4599, %v4605
    %v4608 = vunpack.c.l.s4 1966171168
    %v4609 = vunpack.c.0.s8 %v4608
    %v4610 = vlaneseq
    %v4611 = vshrl.u32 %v4610, 7
    %v4612 = vsub.s32 %v4609, %v4611
    %v4613 = vrot.slane %v4598, %v4612
    %v4614 = vcombine.low %v4606, %v4613
    %v4621 = vsel %vm4238, %v4389, 0.0
    %v4622 = vsel %vm4238, %v4438, 0.0
    %v4623 = vadd.f32 %v4621, %v4622
    %v4624 = vsel %vm4242, %v4477, 0.0
    %v4625 = vadd.f32 %v4623, %v4624
    %v4626 = vsel %vm4238, %v4526, 0.0
    %v4627 = vadd.f32 %v4625, %v4626
    %v4628 = vsel %vm4238, %v4575, 0.0
    %v4629 = vadd.f32 %v4627, %v4628
    %v4630 = vsel %vm4242, %v4614, 0.0
    %v4631 = vadd.f32 %v4629, %v4630
    %v4632 = vrot.slane %v4631, 4
    %v4633 = vadd.f32 %v4631, %v4632
    %v4634 = vrot.slane %v4633, 2
    %v4635 = vadd.f32 %v4633, %v4634
    %v4636 = vrot.slane %v4635, 1
    %v4637 = vadd.f32 %v4635, %v4636
    %v4638 = vmul.f32 %v4256, 0.023809524
    %v4639 = vmul.f32 %v4637, 0.023809524
    %v4640 = vmul.f32 %v4638, %v4638
    %v4641 = vsub.f32 %v4639, %v4640
    %v4642 = vld [vmem:[%s4] sm:$0x1]
    %v4643 = vadd.f32 %v4641, 1e-05
    %v4644 = vrsqrt.pop %v4643
    %v4645 = vmul.f32 %v4642, %v4644
    %v4646 = vld [vmem:[%s5] sm:$0x1]
    %v4647 = vmul.f32 %v4638, %v4645
    %v4648 = vsub.f32 %v4646, %v4647
    %v4650 = vlaneseq
    %v4651 = vshrl.u32 %v4650, 7
    %v4652 = vsub.s32 0, %v4651
    %v4653 = vrot.slane %v4645, %v4652
    %v4654 = vcombine.high %v4653, %v4653
    %v4656 = vunpack.c.l.s4 1966171168
    %v4657 = vunpack.c.0.s8 %v4656
    %v4658 = vlaneseq
    %v4659 = vshrl.u32 %v4658, 7
    %v4660 = vsub.s32 %v4657, %v4659
    %v4661 = vrot.slane %v4653, %v4660
    %v4663 = vunpack.c.l.s4 1966171168
    %v4664 = vunpack.c.0.s8 %v4663
    %v4665 = vlaneseq
    %v4666 = vshrl.u32 %v4665, 7
    %v4667 = vsub.s32 %v4664, %v4666
    %v4668 = vrot.slane %v4654, %v4667
    %v4669 = vcombine.high %v4661, %v4661
    %v4670 = vcombine.high %v4668, %v4668
    %v4672 = vunpack.c.l.s4 1966171168
    %v4673 = vunpack.c.0.s8 %v4672
    %v4674 = vlaneseq
    %v4675 = vshrl.u32 %v4674, 7
    %v4676 = vsub.s32 %v4673, %v4675
    %v4677 = vrot.slane %v4661, %v4676
    %v4679 = vunpack.c.l.s4 1966171168
    %v4680 = vunpack.c.0.s8 %v4679
    %v4681 = vlaneseq
    %v4682 = vshrl.u32 %v4681, 7
    %v4683 = vsub.s32 %v4680, %v4682
    %v4684 = vrot.slane %v4668, %v4683
    %v4686 = vunpack.c.l.s4 1966171168
    %v4687 = vunpack.c.0.s8 %v4686
    %v4688 = vlaneseq
    %v4689 = vshrl.u32 %v4688, 7
    %v4690 = vsub.s32 %v4687, %v4689
    %v4691 = vrot.slane %v4669, %v4690
    %v4693 = vunpack.c.l.s4 1966171168
    %v4694 = vunpack.c.0.s8 %v4693
    %v4695 = vlaneseq
    %v4696 = vshrl.u32 %v4695, 7
    %v4697 = vsub.s32 %v4694, %v4696
    %v4698 = vrot.slane %v4670, %v4697
    %v4699 = vcombine.high %v4677, %v4677
    %v4700 = vcombine.high %v4684, %v4684
    %v4701 = vcombine.high %v4691, %v4691
    %v4702 = vcombine.high %v4698, %v4698
    %v4711 = vmul.f32 %v3672, %v4677
    %v4712 = vmul.f32 %v3686, %v4691
    %v4713 = vmul.f32 %v3694, %v4699
    %v4714 = vmul.f32 %v3696, %v4701
    %v4715 = vmul.f32 %v3679, %v4684
    %v4716 = vmul.f32 %v3693, %v4698
    %v4717 = vmul.f32 %v3695, %v4700
    %v4718 = vmul.f32 %v3697, %v4702
    %v4719 = vmul.f32 %v3721, %v4677
    %v4720 = vmul.f32 %v3735, %v4691
    %v4721 = vmul.f32 %v3743, %v4699
    %v4722 = vmul.f32 %v3745, %v4701
    %v4723 = vmul.f32 %v3728, %v4684
    %v4724 = vmul.f32 %v3742, %v4698
    %v4725 = vmul.f32 %v3744, %v4700
    %v4726 = vmul.f32 %v3746, %v4702
    %v4727 = vmul.f32 %v3770, %v4677
    %v4728 = vmul.f32 %v3784, %v4691
    %v4729 = vmul.f32 %v3792, %v4699
    %v4730 = vmul.f32 %v3794, %v4701
    %v4731 = vmul.f32 %v3791, %v4677
    %v4732 = vmul.f32 %v3793, %v4691
    %v4733 = vmul.f32 %v3795, %v4699
    %v4734 = vmul.f32 %v3819, %v4701
    %v4735 = vmul.f32 %v3833, %v4684
    %v4736 = vmul.f32 %v3841, %v4698
    %v4737 = vmul.f32 %v3843, %v4700
    %v4738 = vmul.f32 %v3826, %v4702
    %v4739 = vmul.f32 %v3840, %v4677
    %v4740 = vmul.f32 %v3842, %v4691
    %v4741 = vmul.f32 %v3844, %v4699
    %v4742 = vmul.f32 %v3868, %v4701
    %v4743 = vmul.f32 %v3882, %v4684
    %v4744 = vmul.f32 %v3890, %v4698
    %v4745 = vmul.f32 %v3892, %v4700
    %v4746 = vmul.f32 %v3875, %v4702
    %v4747 = vmul.f32 %v3889, %v4677
    %v4748 = vmul.f32 %v3891, %v4691
    %v4749 = vmul.f32 %v3893, %v4699
    %v4750 = vmul.f32 %v3908, %v4701
    %v4752 = vlaneseq
    %v4753 = vshrl.u32 %v4752, 7
    %v4754 = vsub.s32 0, %v4753
    %v4755 = vrot.slane %v4648, %v4754
    %v4756 = vcombine.high %v4755, %v4755
    %v4758 = vunpack.c.l.s4 1966171168
    %v4759 = vunpack.c.0.s8 %v4758
    %v4760 = vlaneseq
    %v4761 = vshrl.u32 %v4760, 7
    %v4762 = vsub.s32 %v4759, %v4761
    %v4763 = vrot.slane %v4755, %v4762
    %v4765 = vunpack.c.l.s4 1966171168
    %v4766 = vunpack.c.0.s8 %v4765
    %v4767 = vlaneseq
    %v4768 = vshrl.u32 %v4767, 7
    %v4769 = vsub.s32 %v4766, %v4768
    %v4770 = vrot.slane %v4756, %v4769
    %v4771 = vcombine.high %v4763, %v4763
    %v4772 = vcombine.high %v4770, %v4770
    %v4774 = vunpack.c.l.s4 1966171168
    %v4775 = vunpack.c.0.s8 %v4774
    %v4776 = vlaneseq
    %v4777 = vshrl.u32 %v4776, 7
    %v4778 = vsub.s32 %v4775, %v4777
    %v4779 = vrot.slane %v4763, %v4778
    %v4781 = vunpack.c.l.s4 1966171168
    %v4782 = vunpack.c.0.s8 %v4781
    %v4783 = vlaneseq
    %v4784 = vshrl.u32 %v4783, 7
    %v4785 = vsub.s32 %v4782, %v4784
    %v4786 = vrot.slane %v4770, %v4785
    %v4788 = vunpack.c.l.s4 1966171168
    %v4789 = vunpack.c.0.s8 %v4788
    %v4790 = vlaneseq
    %v4791 = vshrl.u32 %v4790, 7
    %v4792 = vsub.s32 %v4789, %v4791
    %v4793 = vrot.slane %v4771, %v4792
    %v4795 = vunpack.c.l.s4 1966171168
    %v4796 = vunpack.c.0.s8 %v4795
    %v4797 = vlaneseq
    %v4798 = vshrl.u32 %v4797, 7
    %v4799 = vsub.s32 %v4796, %v4798
    %v4800 = vrot.slane %v4772, %v4799
    %v4801 = vcombine.high %v4779, %v4779
    %v4802 = vcombine.high %v4786, %v4786
    %v4803 = vcombine.high %v4793, %v4793
    %v4804 = vcombine.high %v4800, %v4800
    %v4813 = vadd.f32 %v4711, %v4779
    %v4814 = vadd.f32 %v4712, %v4793
    %v4815 = vadd.f32 %v4713, %v4801
    %v4816 = vadd.f32 %v4714, %v4803
    %v4817 = vadd.f32 %v4715, %v4786
    %v4818 = vadd.f32 %v4716, %v4800
    %v4819 = vadd.f32 %v4717, %v4802
    %v4820 = vadd.f32 %v4718, %v4804
    %v4821 = vadd.f32 %v4719, %v4779
    %v4822 = vadd.f32 %v4720, %v4793
    %v4823 = vadd.f32 %v4721, %v4801
    %v4824 = vadd.f32 %v4722, %v4803
    %v4825 = vadd.f32 %v4723, %v4786
    %v4826 = vadd.f32 %v4724, %v4800
    %v4827 = vadd.f32 %v4725, %v4802
    %v4828 = vadd.f32 %v4726, %v4804
    %v4829 = vadd.f32 %v4727, %v4779
    %v4830 = vadd.f32 %v4728, %v4793
    %v4831 = vadd.f32 %v4729, %v4801
    %v4832 = vadd.f32 %v4730, %v4803
    %v4833 = vadd.f32 %v4731, %v4779
    %v4834 = vadd.f32 %v4732, %v4793
    %v4835 = vadd.f32 %v4733, %v4801
    %v4836 = vadd.f32 %v4734, %v4803
    %v4837 = vadd.f32 %v4735, %v4786
    %v4838 = vadd.f32 %v4736, %v4800
    %v4839 = vadd.f32 %v4737, %v4802
    %v4840 = vadd.f32 %v4738, %v4804
    %v4841 = vadd.f32 %v4739, %v4779
    %v4842 = vadd.f32 %v4740, %v4793
    %v4843 = vadd.f32 %v4741, %v4801
    %v4844 = vadd.f32 %v4742, %v4803
    %v4845 = vadd.f32 %v4743, %v4786
    %v4846 = vadd.f32 %v4744, %v4800
    %v4847 = vadd.f32 %v4745, %v4802
    %v4848 = vadd.f32 %v4746, %v4804
    %v4849 = vadd.f32 %v4747, %v4779
    %v4850 = vadd.f32 %v4748, %v4793
    %v4851 = vadd.f32 %v4749, %v4801
    %v4852 = vadd.f32 %v4750, %v4803
    %v4853 = vmax.f32 %v4813, 0.0
    %v4854 = vmax.f32 %v4814, 0.0
    %v4855 = vmax.f32 %v4815, 0.0
    %v4856 = vmax.f32 %v4816, 0.0
    %v4857 = vmax.f32 %v4817, 0.0
    %v4858 = vmax.f32 %v4818, 0.0
    %v4859 = vmax.f32 %v4819, 0.0
    %v4860 = vmax.f32 %v4820, 0.0
    %v4861 = vmax.f32 %v4821, 0.0
    %v4862 = vmax.f32 %v4822, 0.0
    %v4863 = vmax.f32 %v4823, 0.0
    %v4864 = vmax.f32 %v4824, 0.0
    %v4865 = vmax.f32 %v4825, 0.0
    %v4866 = vmax.f32 %v4826, 0.0
    %v4867 = vmax.f32 %v4827, 0.0
    %v4868 = vmax.f32 %v4828, 0.0
    %v4869 = vmax.f32 %v4829, 0.0
    %v4870 = vmax.f32 %v4830, 0.0
    %v4871 = vmax.f32 %v4831, 0.0
    %v4872 = vmax.f32 %v4832, 0.0
    %v4873 = vmax.f32 %v4833, 0.0
    %v4874 = vmax.f32 %v4834, 0.0
    %v4875 = vmax.f32 %v4835, 0.0
    %v4876 = vmax.f32 %v4836, 0.0
    %v4877 = vmax.f32 %v4837, 0.0
    %v4878 = vmax.f32 %v4838, 0.0
    %v4879 = vmax.f32 %v4839, 0.0
    %v4880 = vmax.f32 %v4840, 0.0
    %v4881 = vmax.f32 %v4841, 0.0
    %v4882 = vmax.f32 %v4842, 0.0
    %v4883 = vmax.f32 %v4843, 0.0
    %v4884 = vmax.f32 %v4844, 0.0
    %v4885 = vmax.f32 %v4845, 0.0
    %v4886 = vmax.f32 %v4846, 0.0
    %v4887 = vmax.f32 %v4847, 0.0
    %v4888 = vmax.f32 %v4848, 0.0
    %v4889 = vmax.f32 %v4849, 0.0
    %v4890 = vmax.f32 %v4850, 0.0
    %v4891 = vmax.f32 %v4851, 0.0
    %v4892 = vmax.f32 %v4852, 0.0
    %v4933 = vcombine.low %v4853, %v4854
    %v4935 = vunpack.c.l.s4 1966171168
    %v4936 = vunpack.c.0.s8 %v4935
    %v4937 = vlaneseq
    %v4938 = vshrl.u32 %v4937, 7
    %v4939 = vsub.s32 %v4936, %v4938
    %v4940 = vrot.slane %v4933, %v4939
    %v4942 = vunpack.c.l.s4 1966171168
    %v4943 = vunpack.c.0.s8 %v4942
    %v4944 = vlaneseq
    %v4945 = vshrl.u32 %v4944, 7
    %v4946 = vsub.s32 %v4943, %v4945
    %v4947 = vrot.slane %v4940, %v4946
    %v4948 = vcombine.low %v4855, %v4856
    %v4950 = vunpack.c.l.s4 1966171168
    %v4951 = vunpack.c.0.s8 %v4950
    %v4952 = vlaneseq
    %v4953 = vshrl.u32 %v4952, 7
    %v4954 = vsub.s32 %v4951, %v4953
    %v4955 = vrot.slane %v4948, %v4954
    %v4957 = vunpack.c.l.s4 1966171168
    %v4958 = vunpack.c.0.s8 %v4957
    %v4959 = vlaneseq
    %v4960 = vshrl.u32 %v4959, 7
    %v4961 = vsub.s32 %v4958, %v4960
    %v4962 = vrot.slane %v4955, %v4961
    %v4963 = vcombine.low %v4857, %v4858
    %v4965 = vunpack.c.l.s4 1966171168
    %v4966 = vunpack.c.0.s8 %v4965
    %v4967 = vlaneseq
    %v4968 = vshrl.u32 %v4967, 7
    %v4969 = vsub.s32 %v4966, %v4968
    %v4970 = vrot.slane %v4963, %v4969
    %v4972 = vunpack.c.l.s4 1966171168
    %v4973 = vunpack.c.0.s8 %v4972
    %v4974 = vlaneseq
    %v4975 = vshrl.u32 %v4974, 7
    %v4976 = vsub.s32 %v4973, %v4975
    %v4977 = vrot.slane %v4970, %v4976
    %v4978 = vcombine.low %v4859, %v4860
    %v4980 = vunpack.c.l.s4 1966171168
    %v4981 = vunpack.c.0.s8 %v4980
    %v4982 = vlaneseq
    %v4983 = vshrl.u32 %v4982, 7
    %v4984 = vsub.s32 %v4981, %v4983
    %v4985 = vrot.slane %v4978, %v4984
    %v4987 = vunpack.c.l.s4 1966171168
    %v4988 = vunpack.c.0.s8 %v4987
    %v4989 = vlaneseq
    %v4990 = vshrl.u32 %v4989, 7
    %v4991 = vsub.s32 %v4988, %v4990
    %v4992 = vrot.slane %v4985, %v4991
    %v4993 = vcombine.low %v4861, %v4862
    %v4995 = vunpack.c.l.s4 1966171168
    %v4996 = vunpack.c.0.s8 %v4995
    %v4997 = vlaneseq
    %v4998 = vshrl.u32 %v4997, 7
    %v4999 = vsub.s32 %v4996, %v4998
    %v5000 = vrot.slane %v4993, %v4999
    %v5002 = vunpack.c.l.s4 1966171168
    %v5003 = vunpack.c.0.s8 %v5002
    %v5004 = vlaneseq
    %v5005 = vshrl.u32 %v5004, 7
    %v5006 = vsub.s32 %v5003, %v5005
    %v5007 = vrot.slane %v5000, %v5006
    %v5008 = vcombine.low %v4863, %v4864
    %v5010 = vunpack.c.l.s4 1966171168
    %v5011 = vunpack.c.0.s8 %v5010
    %v5012 = vlaneseq
    %v5013 = vshrl.u32 %v5012, 7
    %v5014 = vsub.s32 %v5011, %v5013
    %v5015 = vrot.slane %v5008, %v5014
    %v5017 = vunpack.c.l.s4 1966171168
    %v5018 = vunpack.c.0.s8 %v5017
    %v5019 = vlaneseq
    %v5020 = vshrl.u32 %v5019, 7
    %v5021 = vsub.s32 %v5018, %v5020
    %v5022 = vrot.slane %v5015, %v5021
    %v5023 = vcombine.low %v4865, %v4866
    %v5025 = vunpack.c.l.s4 1966171168
    %v5026 = vunpack.c.0.s8 %v5025
    %v5027 = vlaneseq
    %v5028 = vshrl.u32 %v5027, 7
    %v5029 = vsub.s32 %v5026, %v5028
    %v5030 = vrot.slane %v5023, %v5029
    %v5032 = vunpack.c.l.s4 1966171168
    %v5033 = vunpack.c.0.s8 %v5032
    %v5034 = vlaneseq
    %v5035 = vshrl.u32 %v5034, 7
    %v5036 = vsub.s32 %v5033, %v5035
    %v5037 = vrot.slane %v5030, %v5036
    %v5038 = vcombine.low %v4867, %v4868
    %v5040 = vunpack.c.l.s4 1966171168
    %v5041 = vunpack.c.0.s8 %v5040
    %v5042 = vlaneseq
    %v5043 = vshrl.u32 %v5042, 7
    %v5044 = vsub.s32 %v5041, %v5043
    %v5045 = vrot.slane %v5038, %v5044
    %v5047 = vunpack.c.l.s4 1966171168
    %v5048 = vunpack.c.0.s8 %v5047
    %v5049 = vlaneseq
    %v5050 = vshrl.u32 %v5049, 7
    %v5051 = vsub.s32 %v5048, %v5050
    %v5052 = vrot.slane %v5045, %v5051
    %v5053 = vcombine.low %v4869, %v4870
    %v5055 = vunpack.c.l.s4 1966171168
    %v5056 = vunpack.c.0.s8 %v5055
    %v5057 = vlaneseq
    %v5058 = vshrl.u32 %v5057, 7
    %v5059 = vsub.s32 %v5056, %v5058
    %v5060 = vrot.slane %v5053, %v5059
    %v5062 = vunpack.c.l.s4 1966171168
    %v5063 = vunpack.c.0.s8 %v5062
    %v5064 = vlaneseq
    %v5065 = vshrl.u32 %v5064, 7
    %v5066 = vsub.s32 %v5063, %v5065
    %v5067 = vrot.slane %v5060, %v5066
    %v5068 = vcombine.low %v4871, %v4872
    %v5070 = vunpack.c.l.s4 1966171168
    %v5071 = vunpack.c.0.s8 %v5070
    %v5072 = vlaneseq
    %v5073 = vshrl.u32 %v5072, 7
    %v5074 = vsub.s32 %v5071, %v5073
    %v5075 = vrot.slane %v5068, %v5074
    %v5077 = vunpack.c.l.s4 1966171168
    %v5078 = vunpack.c.0.s8 %v5077
    %v5079 = vlaneseq
    %v5080 = vshrl.u32 %v5079, 7
    %v5081 = vsub.s32 %v5078, %v5080
    %v5082 = vrot.slane %v5075, %v5081
    %v5083 = vcombine.low %v4873, %v4874
    %v5085 = vunpack.c.l.s4 1966171168
    %v5086 = vunpack.c.0.s8 %v5085
    %v5087 = vlaneseq
    %v5088 = vshrl.u32 %v5087, 7
    %v5089 = vsub.s32 %v5086, %v5088
    %v5090 = vrot.slane %v5083, %v5089
    %v5092 = vunpack.c.l.s4 1966171168
    %v5093 = vunpack.c.0.s8 %v5092
    %v5094 = vlaneseq
    %v5095 = vshrl.u32 %v5094, 7
    %v5096 = vsub.s32 %v5093, %v5095
    %v5097 = vrot.slane %v5090, %v5096
    %v5098 = vcombine.low %v4875, %v4876
    %v5100 = vunpack.c.l.s4 1966171168
    %v5101 = vunpack.c.0.s8 %v5100
    %v5102 = vlaneseq
    %v5103 = vshrl.u32 %v5102, 7
    %v5104 = vsub.s32 %v5101, %v5103
    %v5105 = vrot.slane %v5098, %v5104
    %v5107 = vunpack.c.l.s4 1966171168
    %v5108 = vunpack.c.0.s8 %v5107
    %v5109 = vlaneseq
    %v5110 = vshrl.u32 %v5109, 7
    %v5111 = vsub.s32 %v5108, %v5110
    %v5112 = vrot.slane %v5105, %v5111
    %v5113 = vcombine.low %v4877, %v4878
    %v5115 = vunpack.c.l.s4 1966171168
    %v5116 = vunpack.c.0.s8 %v5115
    %v5117 = vlaneseq
    %v5118 = vshrl.u32 %v5117, 7
    %v5119 = vsub.s32 %v5116, %v5118
    %v5120 = vrot.slane %v5113, %v5119
    %v5122 = vunpack.c.l.s4 1966171168
    %v5123 = vunpack.c.0.s8 %v5122
    %v5124 = vlaneseq
    %v5125 = vshrl.u32 %v5124, 7
    %v5126 = vsub.s32 %v5123, %v5125
    %v5127 = vrot.slane %v5120, %v5126
    %v5128 = vcombine.low %v4879, %v4880
    %v5130 = vunpack.c.l.s4 1966171168
    %v5131 = vunpack.c.0.s8 %v5130
    %v5132 = vlaneseq
    %v5133 = vshrl.u32 %v5132, 7
    %v5134 = vsub.s32 %v5131, %v5133
    %v5135 = vrot.slane %v5128, %v5134
    %v5137 = vunpack.c.l.s4 1966171168
    %v5138 = vunpack.c.0.s8 %v5137
    %v5139 = vlaneseq
    %v5140 = vshrl.u32 %v5139, 7
    %v5141 = vsub.s32 %v5138, %v5140
    %v5142 = vrot.slane %v5135, %v5141
    %v5143 = vcombine.low %v4881, %v4882
    %v5145 = vunpack.c.l.s4 1966171168
    %v5146 = vunpack.c.0.s8 %v5145
    %v5147 = vlaneseq
    %v5148 = vshrl.u32 %v5147, 7
    %v5149 = vsub.s32 %v5146, %v5148
    %v5150 = vrot.slane %v5143, %v5149
    %v5152 = vunpack.c.l.s4 1966171168
    %v5153 = vunpack.c.0.s8 %v5152
    %v5154 = vlaneseq
    %v5155 = vshrl.u32 %v5154, 7
    %v5156 = vsub.s32 %v5153, %v5155
    %v5157 = vrot.slane %v5150, %v5156
    %v5158 = vcombine.low %v4883, %v4884
    %v5160 = vunpack.c.l.s4 1966171168
    %v5161 = vunpack.c.0.s8 %v5160
    %v5162 = vlaneseq
    %v5163 = vshrl.u32 %v5162, 7
    %v5164 = vsub.s32 %v5161, %v5163
    %v5165 = vrot.slane %v5158, %v5164
    %v5167 = vunpack.c.l.s4 1966171168
    %v5168 = vunpack.c.0.s8 %v5167
    %v5169 = vlaneseq
    %v5170 = vshrl.u32 %v5169, 7
    %v5171 = vsub.s32 %v5168, %v5170
    %v5172 = vrot.slane %v5165, %v5171
    %v5173 = vcombine.low %v4885, %v4886
    %v5175 = vunpack.c.l.s4 1966171168
    %v5176 = vunpack.c.0.s8 %v5175
    %v5177 = vlaneseq
    %v5178 = vshrl.u32 %v5177, 7
    %v5179 = vsub.s32 %v5176, %v5178
    %v5180 = vrot.slane %v5173, %v5179
    %v5182 = vunpack.c.l.s4 1966171168
    %v5183 = vunpack.c.0.s8 %v5182
    %v5184 = vlaneseq
    %v5185 = vshrl.u32 %v5184, 7
    %v5186 = vsub.s32 %v5183, %v5185
    %v5187 = vrot.slane %v5180, %v5186
    %v5188 = vcombine.low %v4887, %v4888
    %v5190 = vunpack.c.l.s4 1966171168
    %v5191 = vunpack.c.0.s8 %v5190
    %v5192 = vlaneseq
    %v5193 = vshrl.u32 %v5192, 7
    %v5194 = vsub.s32 %v5191, %v5193
    %v5195 = vrot.slane %v5188, %v5194
    %v5197 = vunpack.c.l.s4 1966171168
    %v5198 = vunpack.c.0.s8 %v5197
    %v5199 = vlaneseq
    %v5200 = vshrl.u32 %v5199, 7
    %v5201 = vsub.s32 %v5198, %v5200
    %v5202 = vrot.slane %v5195, %v5201
    %v5203 = vcombine.low %v4889, %v4890
    %v5205 = vunpack.c.l.s4 1966171168
    %v5206 = vunpack.c.0.s8 %v5205
    %v5207 = vlaneseq
    %v5208 = vshrl.u32 %v5207, 7
    %v5209 = vsub.s32 %v5206, %v5208
    %v5210 = vrot.slane %v5203, %v5209
    %v5212 = vunpack.c.l.s4 1966171168
    %v5213 = vunpack.c.0.s8 %v5212
    %v5214 = vlaneseq
    %v5215 = vshrl.u32 %v5214, 7
    %v5216 = vsub.s32 %v5213, %v5215
    %v5217 = vrot.slane %v5210, %v5216
    %v5218 = vcombine.low %v4891, %v4892
    %v5220 = vunpack.c.l.s4 1966171168
    %v5221 = vunpack.c.0.s8 %v5220
    %v5222 = vlaneseq
    %v5223 = vshrl.u32 %v5222, 7
    %v5224 = vsub.s32 %v5221, %v5223
    %v5225 = vrot.slane %v5218, %v5224
    %v5227 = vunpack.c.l.s4 1966171168
    %v5228 = vunpack.c.0.s8 %v5227
    %v5229 = vlaneseq
    %v5230 = vshrl.u32 %v5229, 7
    %v5231 = vsub.s32 %v5228, %v5230
    %v5232 = vrot.slane %v5225, %v5231
    %vm5253 = vcmask 320512
    %v5254 = vsel %vm5253, %v4947, -inf
    %v5255 = vrot.slane %v5254, 4
    %v5256 = vmax.f32 %v5254, %v5255
    %v5257 = vrot.slane %v5256, 2
    %v5258 = vmax.f32 %v5256, %v5257
    %v5259 = vrot.slane %v5258, 1
    %v5260 = vmax.f32 %v5258, %v5259
    %v5261 = vsel %vm5253, %v4962, -inf
    %v5262 = vrot.slane %v5261, 4
    %v5263 = vmax.f32 %v5261, %v5262
    %v5264 = vrot.slane %v5263, 2
    %v5265 = vmax.f32 %v5263, %v5264
    %v5266 = vrot.slane %v5265, 1
    %v5267 = vmax.f32 %v5265, %v5266
    %v5268 = vsel %vm5253, %v4977, -inf
    %v5269 = vrot.slane %v5268, 4
    %v5270 = vmax.f32 %v5268, %v5269
    %v5271 = vrot.slane %v5270, 2
    %v5272 = vmax.f32 %v5270, %v5271
    %v5273 = vrot.slane %v5272, 1
    %v5274 = vmax.f32 %v5272, %v5273
    %v5275 = vsel %vm5253, %v4992, -inf
    %v5276 = vrot.slane %v5275, 4
    %v5277 = vmax.f32 %v5275, %v5276
    %v5278 = vrot.slane %v5277, 2
    %v5279 = vmax.f32 %v5277, %v5278
    %v5280 = vrot.slane %v5279, 1
    %v5281 = vmax.f32 %v5279, %v5280
    %v5282 = vsel %vm5253, %v5007, -inf
    %v5283 = vrot.slane %v5282, 4
    %v5284 = vmax.f32 %v5282, %v5283
    %v5285 = vrot.slane %v5284, 2
    %v5286 = vmax.f32 %v5284, %v5285
    %v5287 = vrot.slane %v5286, 1
    %v5288 = vmax.f32 %v5286, %v5287
    %v5289 = vsel %vm5253, %v5022, -inf
    %v5290 = vrot.slane %v5289, 4
    %v5291 = vmax.f32 %v5289, %v5290
    %v5292 = vrot.slane %v5291, 2
    %v5293 = vmax.f32 %v5291, %v5292
    %v5294 = vrot.slane %v5293, 1
    %v5295 = vmax.f32 %v5293, %v5294
    %v5296 = vsel %vm5253, %v5037, -inf
    %v5297 = vrot.slane %v5296, 4
    %v5298 = vmax.f32 %v5296, %v5297
    %v5299 = vrot.slane %v5298, 2
    %v5300 = vmax.f32 %v5298, %v5299
    %v5301 = vrot.slane %v5300, 1
    %v5302 = vmax.f32 %v5300, %v5301
    %v5303 = vsel %vm5253, %v5052, -inf
    %v5304 = vrot.slane %v5303, 4
    %v5305 = vmax.f32 %v5303, %v5304
    %v5306 = vrot.slane %v5305, 2
    %v5307 = vmax.f32 %v5305, %v5306
    %v5308 = vrot.slane %v5307, 1
    %v5309 = vmax.f32 %v5307, %v5308
    %v5310 = vsel %vm5253, %v5067, -inf
    %v5311 = vrot.slane %v5310, 4
    %v5312 = vmax.f32 %v5310, %v5311
    %v5313 = vrot.slane %v5312, 2
    %v5314 = vmax.f32 %v5312, %v5313
    %v5315 = vrot.slane %v5314, 1
    %v5316 = vmax.f32 %v5314, %v5315
    %v5317 = vsel %vm5253, %v5082, -inf
    %v5318 = vrot.slane %v5317, 4
    %v5319 = vmax.f32 %v5317, %v5318
    %v5320 = vrot.slane %v5319, 2
    %v5321 = vmax.f32 %v5319, %v5320
    %v5322 = vrot.slane %v5321, 1
    %v5323 = vmax.f32 %v5321, %v5322
    %v5324 = vsel %vm5253, %v5097, -inf
    %v5325 = vrot.slane %v5324, 4
    %v5326 = vmax.f32 %v5324, %v5325
    %v5327 = vrot.slane %v5326, 2
    %v5328 = vmax.f32 %v5326, %v5327
    %v5329 = vrot.slane %v5328, 1
    %v5330 = vmax.f32 %v5328, %v5329
    %v5331 = vsel %vm5253, %v5112, -inf
    %v5332 = vrot.slane %v5331, 4
    %v5333 = vmax.f32 %v5331, %v5332
    %v5334 = vrot.slane %v5333, 2
    %v5335 = vmax.f32 %v5333, %v5334
    %v5336 = vrot.slane %v5335, 1
    %v5337 = vmax.f32 %v5335, %v5336
    %v5338 = vsel %vm5253, %v5127, -inf
    %v5339 = vrot.slane %v5338, 4
    %v5340 = vmax.f32 %v5338, %v5339
    %v5341 = vrot.slane %v5340, 2
    %v5342 = vmax.f32 %v5340, %v5341
    %v5343 = vrot.slane %v5342, 1
    %v5344 = vmax.f32 %v5342, %v5343
    %v5345 = vsel %vm5253, %v5142, -inf
    %v5346 = vrot.slane %v5345, 4
    %v5347 = vmax.f32 %v5345, %v5346
    %v5348 = vrot.slane %v5347, 2
    %v5349 = vmax.f32 %v5347, %v5348
    %v5350 = vrot.slane %v5349, 1
    %v5351 = vmax.f32 %v5349, %v5350
    %v5352 = vsel %vm5253, %v5157, -inf
    %v5353 = vrot.slane %v5352, 4
    %v5354 = vmax.f32 %v5352, %v5353
    %v5355 = vrot.slane %v5354, 2
    %v5356 = vmax.f32 %v5354, %v5355
    %v5357 = vrot.slane %v5356, 1
    %v5358 = vmax.f32 %v5356, %v5357
    %v5359 = vsel %vm5253, %v5172, -inf
    %v5360 = vrot.slane %v5359, 4
    %v5361 = vmax.f32 %v5359, %v5360
    %v5362 = vrot.slane %v5361, 2
    %v5363 = vmax.f32 %v5361, %v5362
    %v5364 = vrot.slane %v5363, 1
    %v5365 = vmax.f32 %v5363, %v5364
    %v5366 = vsel %vm5253, %v5187, -inf
    %v5367 = vrot.slane %v5366, 4
    %v5368 = vmax.f32 %v5366, %v5367
    %v5369 = vrot.slane %v5368, 2
    %v5370 = vmax.f32 %v5368, %v5369
    %v5371 = vrot.slane %v5370, 1
    %v5372 = vmax.f32 %v5370, %v5371
    %v5373 = vsel %vm5253, %v5202, -inf
    %v5374 = vrot.slane %v5373, 4
    %v5375 = vmax.f32 %v5373, %v5374
    %v5376 = vrot.slane %v5375, 2
    %v5377 = vmax.f32 %v5375, %v5376
    %v5378 = vrot.slane %v5377, 1
    %v5379 = vmax.f32 %v5377, %v5378
    %v5380 = vsel %vm5253, %v5217, -inf
    %v5381 = vrot.slane %v5380, 4
    %v5382 = vmax.f32 %v5380, %v5381
    %v5383 = vrot.slane %v5382, 2
    %v5384 = vmax.f32 %v5382, %v5383
    %v5385 = vrot.slane %v5384, 1
    %v5386 = vmax.f32 %v5384, %v5385
    %v5387 = vsel %vm5253, %v5232, -inf
    %v5388 = vrot.slane %v5387, 4
    %v5389 = vmax.f32 %v5387, %v5388
    %v5390 = vrot.slane %v5389, 2
    %v5391 = vmax.f32 %v5389, %v5390
    %v5392 = vrot.slane %v5391, 1
    %v5393 = vmax.f32 %v5391, %v5392
    %v5406 = vsel %vm1212, %v5267, %v5260
    %v5407 = vsel %vm1214, %v5274, %v5406
    %v5408 = vsel %vm1216, %v5281, %v5407
    %v5409 = vsel %vm1218, %v5288, %v5408
    %v5410 = vsel %vm1220, %v5295, %v5409
    %v5411 = vsel %vm1212, %v5337, %v5330
    %v5412 = vsel %vm1214, %v5344, %v5411
    %v5413 = vsel %vm1216, %v5351, %v5412
    %v5414 = vsel %vm1218, %v5358, %v5413
    %v5415 = vsel %vm1220, %v5365, %v5414
    %vm5418 = vcmask 324608
    %5419 = vst.msk [vmem:[#allocation2] sm:$0x3f] %vm5418, %v5410
    %5420 = vst.msk [vmem:[#allocation2 + $0x30] sm:$0x3f] %vm5418, %v5415
    %v5423 = vsel %vm1212, %v5274, %v5267
    %v5424 = vsel %vm1214, %v5281, %v5423
    %v5425 = vsel %vm1216, %v5288, %v5424
    %v5426 = vsel %vm1218, %v5295, %v5425
    %v5427 = vsel %vm1220, %v5302, %v5426
    %v5428 = vsel %vm1212, %v5344, %v5337
    %v5429 = vsel %vm1214, %v5351, %v5428
    %v5430 = vsel %vm1216, %v5358, %v5429
    %v5431 = vsel %vm1218, %v5365, %v5430
    %v5432 = vsel %vm1220, %v5372, %v5431
    %5433 = vrot.lane.b32.xlu0 %v5427, 40
    %v5434 = vpop.permute.xlu0 %5433
    %5435 = vrot.lane.b32.xlu0 %v5432, 40
    %v5436 = vpop.permute.xlu0 %5435
    %vm5439 = vcmask 652608
    %5440 = vst.msk [vmem:[#allocation2] sm:$0x3f] %vm5439, %v5434
    %5441 = vst.msk [vmem:[#allocation2 + $0x30] sm:$0x3f] %vm5439, %v5436
    %v5444 = vsel %vm1212, %v5281, %v5274
    %v5445 = vsel %vm1214, %v5288, %v5444
    %v5446 = vsel %vm1216, %v5295, %v5445
    %v5447 = vsel %vm1218, %v5302, %v5446
    %v5448 = vsel %vm1220, %v5309, %v5447
    %v5449 = vsel %vm1212, %v5351, %v5344
    %v5450 = vsel %vm1214, %v5358, %v5449
    %v5451 = vsel %vm1216, %v5365, %v5450
    %v5452 = vsel %vm1218, %v5372, %v5451
    %v5453 = vsel %vm1220, %v5379, %v5452
    %5454 = vrot.lane.b32.xlu0 %v5448, 80
    %v5455 = vpop.permute.xlu0 %5454
    %5456 = vrot.lane.b32.xlu0 %v5453, 80
    %v5457 = vpop.permute.xlu0 %5456
    %vm5460 = vcmask 980608
    %5461 = vst.msk [vmem:[#allocation2] sm:$0x3f] %vm5460, %v5455
    %5462 = vst.msk [vmem:[#allocation2 + $0x30] sm:$0x3f] %vm5460, %v5457
    %v5465 = vsel %vm1212, %v5288, %v5281
    %v5466 = vsel %vm1214, %v5295, %v5465
    %v5467 = vsel %vm1216, %v5302, %v5466
    %v5468 = vsel %vm1218, %v5309, %v5467
    %v5469 = vsel %vm1220, %v5316, %v5468
    %v5470 = vsel %vm1212, %v5358, %v5351
    %v5471 = vsel %vm1214, %v5365, %v5470
    %v5472 = vsel %vm1216, %v5372, %v5471
    %v5473 = vsel %vm1218, %v5379, %v5472
    %v5474 = vsel %vm1220, %v5386, %v5473
    %5475 = vrot.lane.b32.xlu0 %v5469, 120
    %v5476 = vpop.permute.xlu0 %5475
    %5477 = vrot.lane.b32.xlu0 %v5474, 120
    %v5478 = vpop.permute.xlu0 %5477
    %vm5481 = vcmask 1046464
    %5482 = vst.msk [vmem:[#allocation2] sm:$0x3f] %vm5481, %v5476
    %vm5483 = vcmask 259072
    %5484 = vst.msk [vmem:[#allocation2 + $0x8] sm:$0x3f] %vm5483, %v5476
    %5485 = vst.msk [vmem:[#allocation2 + $0x30] sm:$0x3f] %vm5481, %v5478
    %5486 = vst.msk [vmem:[#allocation2 + $0x38] sm:$0x3f] %vm5483, %v5478
    %v5489 = vsel %vm1212, %v5295, %v5288
    %v5490 = vsel %vm1214, %v5302, %v5489
    %v5491 = vsel %vm1216, %v5309, %v5490
    %v5492 = vsel %vm1218, %v5316, %v5491
    %v5493 = vsel %vm1220, %v5323, %v5492
    %v5494 = vsel %vm1212, %v5365, %v5358
    %v5495 = vsel %vm1214, %v5372, %v5494
    %v5496 = vsel %vm1216, %v5379, %v5495
    %v5497 = vsel %vm1218, %v5386, %v5496
    %v5498 = vsel %vm1220, %v5393, %v5497
    %5499 = vrot.lane.b32.xlu0 %v5493, 32
    %v5500 = vpop.permute.xlu0 %5499
    %5501 = vrot.lane.b32.xlu0 %v5498, 32
    %v5502 = vpop.permute.xlu0 %5501
    %vm5505 = vcmask 587008
    %5506 = vst.msk [vmem:[#allocation2 + $0x8] sm:$0x3f] %vm5505, %v5500
    %5507 = vst.msk [vmem:[#allocation2 + $0x38] sm:$0x3f] %vm5505, %v5502
    %v5508 = vld [vmem:[#allocation2] sm:$0x3f]
    %v5509 = vld [vmem:[#allocation2 + $0x8] sm:$0x3f]
    %v5510 = vld [vmem:[#allocation2 + $0x30] sm:$0x3f]
    %v5511 = vld [vmem:[#allocation2 + $0x38] sm:$0x3f]
    %v5512 = vld [vmem:[%s6] sm:$0xff]
    %v5513 = vld [vmem:[%s6 + $0x8] sm:$0xff]
    %v5514 = vld [vmem:[%s6 + $0x10] sm:$0xff]
    %v5515 = vld [vmem:[%s6 + $0x18] sm:$0xff]
    %v5516 = vld [vmem:[%s6 + $0x20] sm:$0xff]
    %v5517 = vld [vmem:[%s6 + $0x28] sm:$0xff]
    %v5518 = vld [vmem:[%s6 + $0x30] sm:$0xff]
    %v5519 = vld [vmem:[%s6 + $0x38] sm:$0xff]
    %v5520 = vld [vmem:[%s6 + $0x40] sm:$0xff]
    %v5521 = vld [vmem:[%s6 + $0x48] sm:$0xff]
    %v5522 = vld [vmem:[%s6 + $0x50] sm:$0xff]
    %v5523 = vld [vmem:[%s6 + $0x58] sm:$0xff]
    %v5524 = vld [vmem:[%s6 + $0x60] sm:$0xff]
    %v5525 = vld [vmem:[%s6 + $0x68] sm:$0xff]
    %v5526 = vld [vmem:[%s6 + $0x70] sm:$0xff]
    %v5527 = vld [vmem:[%s6 + $0x78] sm:$0xff]
    %v5528 = vld [vmem:[%s6 + $0x80] sm:$0xff]
    %v5529 = vld [vmem:[%s6 + $0x88] sm:$0xff]
    %v5530 = vld [vmem:[%s6 + $0x90] sm:$0xff]
    %v5531 = vld [vmem:[%s6 + $0x98] sm:$0xff]
    %v5532 = vld [vmem:[%s6 + $0xa0] sm:$0xff]
    %v5533 = vld [vmem:[%s6 + $0xa8] sm:$0xff]
    %v5534 = vld [vmem:[%s6 + $0xb0] sm:$0xff]
    %v5535 = vld [vmem:[%s6 + $0xb8] sm:$0xff]
    %v5536 = vld [vmem:[%s6 + $0xc0] sm:$0xff]
    %v5541 = vcombine.low %v5508, %v5509
    %v5542 = vcombine.high %v5508, %v5509
    %v5544 = vunpack.c.l.s4 1983009808
    %v5545 = vunpack.c.0.s8 %v5544
    %v5546 = vlaneseq
    %v5547 = vshrl.u32 %v5546, 7
    %v5548 = vsub.s32 %v5545, %v5547
    %v5549 = vrot.slane %v5541, %v5548
    %v5551 = vunpack.c.l.s4 1983009808
    %v5552 = vunpack.c.0.s8 %v5551
    %v5553 = vlaneseq
    %v5554 = vshrl.u32 %v5553, 7
    %v5555 = vsub.s32 %v5552, %v5554
    %v5556 = vrot.slane %v5542, %v5555
    %v5557 = vcombine.high %v5549, %v5549
    %v5558 = vcombine.low %v5510, %v5511
    %v5559 = vcombine.high %v5510, %v5511
    %v5561 = vunpack.c.l.s4 1983009808
    %v5562 = vunpack.c.0.s8 %v5561
    %v5563 = vlaneseq
    %v5564 = vshrl.u32 %v5563, 7
    %v5565 = vsub.s32 %v5562, %v5564
    %v5566 = vrot.slane %v5558, %v5565
    %v5568 = vunpack.c.l.s4 1983009808
    %v5569 = vunpack.c.0.s8 %v5568
    %v5570 = vlaneseq
    %v5571 = vshrl.u32 %v5570, 7
    %v5572 = vsub.s32 %v5569, %v5571
    %v5573 = vrot.slane %v5559, %v5572
    %v5574 = vcombine.high %v5566, %v5566
    %v5575 = vcombine.low %v5549, %v5557
    %v5576 = vcombine.low %v5556, %v5566
    %v5578 = vunpack.c.l.s4 1983009808
    %v5579 = vunpack.c.0.s8 %v5578
    %v5580 = vlaneseq
    %v5581 = vshrl.u32 %v5580, 7
    %v5582 = vsub.s32 %v5579, %v5581
    %v5583 = vrot.slane %v5575, %v5582
    %v5585 = vunpack.c.l.s4 1983009808
    %v5586 = vunpack.c.0.s8 %v5585
    %v5587 = vlaneseq
    %v5588 = vshrl.u32 %v5587, 7
    %v5589 = vsub.s32 %v5586, %v5588
    %v5590 = vrot.slane %v5576, %v5589
    %v5591 = vcombine.low %v5583, %v5590
    %v5592 = vcombine.high %v5583, %v5590
    %v5593 = vcombine.low %v5574, %v5573
    %v5595 = vunpack.c.l.s4 1983009808
    %v5596 = vunpack.c.0.s8 %v5595
    %v5597 = vlaneseq
    %v5598 = vshrl.u32 %v5597, 7
    %v5599 = vsub.s32 %v5596, %v5598
    %v5600 = vrot.slane %v5593, %v5599
    %v5601 = vcombine.high %v5600, %v5600
    %vm5604 = vcmask 588800
    %v5605 = vsel %vm5604, %v5592, 0
    %v5607 = vsel %vm5604, %v5601, 0
    %5609 = vmatprep.subr.mxu0 0.0
    %5610 = vmatpush1.msra.mxu0 %v5527
    %5611 = vmatprep.subr.mxu0 0.0
    %5612 = vmatpush1.msra.mxu0 %v5526
    %5613 = vmatprep.subr.mxu0 0.0
    %5614 = vmatpush1.msra.mxu0 %v5525
    %5615 = vmatprep.subr.mxu0 0.0
    %5616 = vmatpush1.msra.mxu0 %v5524
    %5617 = vmatprep.subr.mxu0 0.0
    %5618 = vmatpush1.msra.mxu0 %v5523
    %5619 = vmatprep.subr.mxu0 0.0
    %5620 = vmatpush1.msra.mxu0 %v5522
    %5621 = vmatprep.subr.mxu0 0.0
    %5622 = vmatpush1.msra.mxu0 %v5521
    %5623 = vmatprep.subr.mxu0 0.0
    %5624 = vmatpush1.msra.mxu0 %v5520
    %5625 = vmatprep.subr.mxu0 0.0
    %5626 = vmatpush1.msra.mxu0 %v5519
    %5627 = vmatprep.subr.mxu0 0.0
    %5628 = vmatpush1.msra.mxu0 %v5518
    %5629 = vmatprep.subr.mxu0 0.0
    %5630 = vmatpush1.msra.mxu0 %v5517
    %5631 = vmatprep.subr.mxu0 0.0
    %5632 = vmatpush1.msra.mxu0 %v5516
    %5633 = vmatprep.subr.mxu0 0.0
    %5634 = vmatpush1.msra.mxu0 %v5515
    %5635 = vmatprep.subr.mxu0 0.0
    %5636 = vmatpush1.msra.mxu0 %v5514
    %5637 = vmatprep.subr.mxu0 0.0
    %5638 = vmatpush1.msra.mxu0 %v5513
    %5639 = vmatprep.subr.mxu0 0.0
    %5640 = vmatpush1.msra.mxu0 %v5512
    %5641 = vmatprep.subr.mxu0 0.0
    %5642 = vmatpush2.msra.mxu0 0.0
    %5643 = vmatprep.subr.mxu0 0.0
    %5644 = vmatpush2.msra.mxu0 0.0
    %5645 = vmatprep.subr.mxu0 0.0
    %5646 = vmatpush2.msra.mxu0 0.0
    %5647 = vmatprep.subr.mxu0 0.0
    %5648 = vmatpush2.msra.mxu0 0.0
    %5649 = vmatprep.subr.mxu0 0.0
    %5650 = vmatpush2.msra.mxu0 0.0
    %5651 = vmatprep.subr.mxu0 0.0
    %5652 = vmatpush2.msra.mxu0 0.0
    %5653 = vmatprep.subr.mxu0 0.0
    %5654 = vmatpush2.msra.mxu0 0.0
    %5655 = vmatprep.subr.mxu0 0.0
    %5656 = vmatpush2.msra.mxu0 %v5536
    %5657 = vmatprep.subr.mxu0 0.0
    %5658 = vmatpush2.msra.mxu0 %v5535
    %5659 = vmatprep.subr.mxu0 0.0
    %5660 = vmatpush2.msra.mxu0 %v5534
    %5661 = vmatprep.subr.mxu0 0.0
    %5662 = vmatpush2.msra.mxu0 %v5533
    %5663 = vmatprep.subr.mxu0 0.0
    %5664 = vmatpush2.msra.mxu0 %v5532
    %5665 = vmatprep.subr.mxu0 0.0
    %5666 = vmatpush2.msra.mxu0 %v5531
    %5667 = vmatprep.subr.mxu0 0.0
    %5668 = vmatpush2.msra.mxu0 %v5530
    %5669 = vmatprep.subr.mxu0 0.0
    %5670 = vmatpush2.msra.mxu0 %v5529
    %5671 = vmatprep.subr.mxu0 0.0
    %5672 = vmatpush2.msra.mxu0 %v5528
    %5673 = vmatprep.mubr.f32.mxu0 %v5605
    %5674 = vmatmul.mubr.f32.gmra.mxu0 %v5591
    %v5675 = vpop.f32.mrf.mxu0
    %v5676 = vadd.f32 0.0, %v5675
    %v5677 = vpop.f32.mrf.mxu0
    %5678 = vmatprep.mubr.f32.mxu0 %v5607
    %5679 = vmatmul.mubr.f32.gmra.mxu0 %v5600
    %v5680 = vpop.f32.mrf.mxu0
    %v5681 = vadd.f32 0.0, %v5680
    %v5682 = vpop.f32.mrf.mxu0
    %5683 = vdwg.mxu0
    %v5686 = vcombine.high %v5676, %v5676
    %v5688 = vunpack.c.l.s4 1983009808
    %v5689 = vunpack.c.0.s8 %v5688
    %v5690 = vlaneseq
    %v5691 = vshrl.u32 %v5690, 7
    %v5692 = vsub.s32 %v5689, %v5691
    %v5693 = vrot.slane %v5676, %v5692
    %v5695 = vunpack.c.l.s4 1983009808
    %v5696 = vunpack.c.0.s8 %v5695
    %v5697 = vlaneseq
    %v5698 = vshrl.u32 %v5697, 7
    %v5699 = vsub.s32 %v5696, %v5698
    %v5700 = vrot.slane %v5686, %v5699
    %v5701 = vcombine.high %v5693, %v5693
    %v5702 = vcombine.high %v5700, %v5700
    %v5704 = vunpack.c.l.s4 1983009808
    %v5705 = vunpack.c.0.s8 %v5704
    %v5706 = vlaneseq
    %v5707 = vshrl.u32 %v5706, 7
    %v5708 = vsub.s32 %v5705, %v5707
    %v5709 = vrot.slane %v5681, %v5708
    %v5710 = vcombine.high %v5709, %v5709
    %v5717 = vcombine.low %v5693, %v5701
    %v5719 = vunpack.c.l.s4 1983009808
    %v5720 = vunpack.c.0.s8 %v5719
    %v5721 = vlaneseq
    %v5722 = vshrl.u32 %v5721, 7
    %v5723 = vsub.s32 %v5720, %v5722
    %v5724 = vrot.slane %v5717, %v5723
    %v5726 = vunpack.c.l.s4 1983009808
    %v5727 = vunpack.c.0.s8 %v5726
    %v5728 = vlaneseq
    %v5729 = vshrl.u32 %v5728, 7
    %v5730 = vsub.s32 %v5727, %v5729
    %v5731 = vrot.slane %v5700, %v5730
    %v5732 = vcombine.low %v5724, %v5731
    %v5733 = vcombine.low %v5702, %v5709
    %v5735 = vunpack.c.l.s4 1983009808
    %v5736 = vunpack.c.0.s8 %v5735
    %v5737 = vlaneseq
    %v5738 = vshrl.u32 %v5737, 7
    %v5739 = vsub.s32 %v5736, %v5738
    %v5740 = vrot.slane %v5733, %v5739
    %v5742 = vunpack.c.l.s4 1983009808
    %v5743 = vunpack.c.0.s8 %v5742
    %v5744 = vlaneseq
    %v5745 = vshrl.u32 %v5744, 7
    %v5746 = vsub.s32 %v5743, %v5745
    %v5747 = vrot.slane %v5710, %v5746
    %v5748 = vcombine.low %v5740, %v5747
    %vm5751 = vcmask 488448
    %v5752 = vsel %vm5751, %v5732, 0.0
    %v5753 = vsel %vm5751, %v5748, 0.0
    %v5754 = vadd.f32 %v5752, %v5753
    %v5755 = vrot.slane %v5754, 4
    %v5756 = vadd.f32 %v5754, %v5755
    %v5757 = vrot.slane %v5756, 2
    %v5758 = vadd.f32 %v5756, %v5757
    %v5759 = vrot.slane %v5758, 1
    %v5760 = vadd.f32 %v5758, %v5759
    %v5761 = vmul.f32 %v5693, %v5693
    %v5762 = vmul.f32 %v5701, %v5701
    %v5763 = vmul.f32 %v5700, %v5700
    %v5764 = vmul.f32 %v5702, %v5702
    %v5765 = vmul.f32 %v5709, %v5709
    %v5766 = vmul.f32 %v5710, %v5710
    %v5773 = vcombine.low %v5761, %v5762
    %v5775 = vunpack.c.l.s4 1983009808
    %v5776 = vunpack.c.0.s8 %v5775
    %v5777 = vlaneseq
    %v5778 = vshrl.u32 %v5777, 7
    %v5779 = vsub.s32 %v5776, %v5778
    %v5780 = vrot.slane %v5773, %v5779
    %v5782 = vunpack.c.l.s4 1983009808
    %v5783 = vunpack.c.0.s8 %v5782
    %v5784 = vlaneseq
    %v5785 = vshrl.u32 %v5784, 7
    %v5786 = vsub.s32 %v5783, %v5785
    %v5787 = vrot.slane %v5763, %v5786
    %v5788 = vcombine.low %v5780, %v5787
    %v5789 = vcombine.low %v5764, %v5765
    %v5791 = vunpack.c.l.s4 1983009808
    %v5792 = vunpack.c.0.s8 %v5791
    %v5793 = vlaneseq
    %v5794 = vshrl.u32 %v5793, 7
    %v5795 = vsub.s32 %v5792, %v5794
    %v5796 = vrot.slane %v5789, %v5795
    %v5798 = vunpack.c.l.s4 1983009808
    %v5799 = vunpack.c.0.s8 %v5798
    %v5800 = vlaneseq
    %v5801 = vshrl.u32 %v5800, 7
    %v5802 = vsub.s32 %v5799, %v5801
    %v5803 = vrot.slane %v5766, %v5802
    %v5804 = vcombine.low %v5796, %v5803
    %v5807 = vsel %vm5751, %v5788, 0.0
    %v5808 = vsel %vm5751, %v5804, 0.0
    %v5809 = vadd.f32 %v5807, %v5808
    %v5810 = vrot.slane %v5809, 4
    %v5811 = vadd.f32 %v5809, %v5810
    %v5812 = vrot.slane %v5811, 2
    %v5813 = vadd.f32 %v5811, %v5812
    %v5814 = vrot.slane %v5813, 1
    %v5815 = vadd.f32 %v5813, %v5814
    %v5816 = vmul.f32 %v5760, 0.083333336
    %v5817 = vmul.f32 %v5815, 0.083333336
    %v5818 = vmul.f32 %v5816, %v5816
    %v5819 = vsub.f32 %v5817, %v5818
    %v5820 = vld [vmem:[%s7] sm:$0x1]
    %v5821 = vadd.f32 %v5819, 1e-05
    %v5822 = vrsqrt.pop %v5821
    %v5823 = vmul.f32 %v5820, %v5822
    %v5824 = vld [vmem:[%s8] sm:$0x1]
    %v5825 = vmul.f32 %v5816, %v5823
    %v5826 = vsub.f32 %v5824, %v5825
    %v5828 = vlaneseq
    %v5829 = vshrl.u32 %v5828, 7
    %v5830 = vsub.s32 0, %v5829
    %v5831 = vrot.slane %v5823, %v5830
    %v5832 = vcombine.high %v5831, %v5831
    %v5834 = vunpack.c.l.s4 1983009808
    %v5835 = vunpack.c.0.s8 %v5834
    %v5836 = vlaneseq
    %v5837 = vshrl.u32 %v5836, 7
    %v5838 = vsub.s32 %v5835, %v5837
    %v5839 = vrot.slane %v5831, %v5838
    %v5841 = vunpack.c.l.s4 1983009808
    %v5842 = vunpack.c.0.s8 %v5841
    %v5843 = vlaneseq
    %v5844 = vshrl.u32 %v5843, 7
    %v5845 = vsub.s32 %v5842, %v5844
    %v5846 = vrot.slane %v5832, %v5845
    %v5847 = vcombine.high %v5839, %v5839
    %v5851 = vmul.f32 %v5693, %v5839
    %v5852 = vmul.f32 %v5701, %v5847
    %v5853 = vmul.f32 %v5700, %v5846
    %v5854 = vmul.f32 %v5702, %v5839
    %v5855 = vmul.f32 %v5709, %v5847
    %v5856 = vmul.f32 %v5710, %v5846
    %v5858 = vlaneseq
    %v5859 = vshrl.u32 %v5858, 7
    %v5860 = vsub.s32 0, %v5859
    %v5861 = vrot.slane %v5826, %v5860
    %v5862 = vcombine.high %v5861, %v5861
    %v5864 = vunpack.c.l.s4 1983009808
    %v5865 = vunpack.c.0.s8 %v5864
    %v5866 = vlaneseq
    %v5867 = vshrl.u32 %v5866, 7
    %v5868 = vsub.s32 %v5865, %v5867
    %v5869 = vrot.slane %v5861, %v5868
    %v5871 = vunpack.c.l.s4 1983009808
    %v5872 = vunpack.c.0.s8 %v5871
    %v5873 = vlaneseq
    %v5874 = vshrl.u32 %v5873, 7
    %v5875 = vsub.s32 %v5872, %v5874
    %v5876 = vrot.slane %v5862, %v5875
    %v5877 = vcombine.high %v5869, %v5869
    %v5881 = vadd.f32 %v5851, %v5869
    %v5882 = vadd.f32 %v5852, %v5877
    %v5883 = vadd.f32 %v5853, %v5876
    %v5884 = vadd.f32 %v5854, %v5869
    %v5885 = vadd.f32 %v5855, %v5877
    %v5886 = vadd.f32 %v5856, %v5876
    %v5887 = vmax.f32 %v5881, 0.0
    %v5888 = vmax.f32 %v5882, 0.0
    %v5889 = vmax.f32 %v5883, 0.0
    %v5890 = vmax.f32 %v5884, 0.0
    %v5891 = vmax.f32 %v5885, 0.0
    %v5892 = vmax.f32 %v5886, 0.0
    %vm5893 = vcmask 484352
    %v5894 = vsel %vm5893, %v5887, -inf
    %v5895 = vrot.slane %v5894, 4
    %v5896 = vmax.f32 %v5894, %v5895
    %v5897 = vrot.slane %v5896, 2
    %v5898 = vmax.f32 %v5896, %v5897
    %v5899 = vrot.slane %v5898, 1
    %v5900 = vmax.f32 %v5898, %v5899
    %v5901 = vsel %vm5893, %v5888, -inf
    %v5902 = vrot.slane %v5901, 4
    %v5903 = vmax.f32 %v5901, %v5902
    %v5904 = vrot.slane %v5903, 2
    %v5905 = vmax.f32 %v5903, %v5904
    %v5906 = vrot.slane %v5905, 1
    %v5907 = vmax.f32 %v5905, %v5906
    %v5908 = vsel %vm5893, %v5889, -inf
    %v5909 = vrot.slane %v5908, 4
    %v5910 = vmax.f32 %v5908, %v5909
    %v5911 = vrot.slane %v5910, 2
    %v5912 = vmax.f32 %v5910, %v5911
    %v5913 = vrot.slane %v5912, 1
    %v5914 = vmax.f32 %v5912, %v5913
    %v5915 = vsel %vm5893, %v5890, -inf
    %v5916 = vrot.slane %v5915, 4
    %v5917 = vmax.f32 %v5915, %v5916
    %v5918 = vrot.slane %v5917, 2
    %v5919 = vmax.f32 %v5917, %v5918
    %v5920 = vrot.slane %v5919, 1
    %v5921 = vmax.f32 %v5919, %v5920
    %v5922 = vsel %vm5893, %v5891, -inf
    %v5923 = vrot.slane %v5922, 4
    %v5924 = vmax.f32 %v5922, %v5923
    %v5925 = vrot.slane %v5924, 2
    %v5926 = vmax.f32 %v5924, %v5925
    %v5927 = vrot.slane %v5926, 1
    %v5928 = vmax.f32 %v5926, %v5927
    %v5929 = vsel %vm5893, %v5892, -inf
    %v5930 = vrot.slane %v5929, 4
    %v5931 = vmax.f32 %v5929, %v5930
    %v5932 = vrot.slane %v5931, 2
    %v5933 = vmax.f32 %v5931, %v5932
    %v5934 = vrot.slane %v5933, 1
    %v5935 = vmax.f32 %v5933, %v5934
    %vm5936 = vcmask 483328
    %5937 = vst.msk [vmem:[#allocation2] sm:$0x1] %vm5936, %v5900
    %5938 = vst.msk [vmem:[#allocation2 + $0x30] sm:$0x1] %vm5936, %v5921
    %5941 = vrot.lane.b32.xlu0 %v5907, 60
    %v5942 = vpop.permute.xlu0 %5941
    %5943 = vrot.lane.b32.xlu0 %v5928, 60
    %v5944 = vpop.permute.xlu0 %5943
    %vm5947 = vcmask 975328
    %5948 = vst.msk [vmem:[#allocation2] sm:$0x1] %vm5947, %v5942
    %5949 = vst.msk [vmem:[#allocation2 + $0x30] sm:$0x1] %vm5947, %v5944
    %5952 = vrot.lane.b32.xlu0 %v5914, 120
    %v5953 = vpop.permute.xlu0 %5952
    %5954 = vrot.lane.b32.xlu0 %v5935, 120
    %v5955 = vpop.permute.xlu0 %5954
    %vm5958 = vcmask 1041344
    %5959 = vst.msk [vmem:[#allocation2] sm:$0x1] %vm5958, %v5953
    %vm5960 = vcmask 417792
    %5961 = vst.msk [vmem:[#allocation2 + $0x8] sm:$0x1] %vm5960, %v5953
    %5962 = vst.msk [vmem:[#allocation2 + $0x30] sm:$0x1] %vm5958, %v5955
    %5963 = vst.msk [vmem:[#allocation2 + $0x38] sm:$0x1] %vm5960, %v5955
    %v5964 = vld [vmem:[#allocation2] ss:$8 sm:$0x3]
    %s5965 = scalar_lea.vmem [#allocation2], 48
    %v5966 = vld [vmem:[%s5965] ss:$8 sm:$0x3]
    %v5967 = vld [vmem:[%s9] sm:$0xff]
    %v5968 = vld [vmem:[%s9 + $0x8] sm:$0xff]
    %v5969 = vld [vmem:[%s9 + $0x10] sm:$0xff]
    %v5970 = vld [vmem:[%s9 + $0x18] sm:$0xff]
    %v5971 = vld [vmem:[%s9 + $0x20] sm:$0xff]
    %v5972 = vld [vmem:[%s9 + $0x28] sm:$0xff]
    %v5973 = vld [vmem:[%s9 + $0x30] sm:$0xff]
    %v5974 = vld [vmem:[%s9 + $0x38] sm:$0xff]
    %v5975 = vld [vmem:[%s9 + $0x40] sm:$0xff]
    %v5976 = vld [vmem:[%s9 + $0x48] sm:$0xff]
    %v5977 = vld [vmem:[%s9 + $0x50] sm:$0xff]
    %v5978 = vld [vmem:[%s9 + $0x58] sm:$0xff]
    %v5979 = vld [vmem:[%s9 + $0x60] sm:$0xff]
    %v5980 = vld [vmem:[%s9 + $0x68] sm:$0xff]
    %v5981 = vld [vmem:[%s9 + $0x70] sm:$0xff]
    %v5982 = vld [vmem:[%s9 + $0x78] sm:$0xff]
    %v5983 = vld [vmem:[%s9 + $0x80] sm:$0xff]
    %v5984 = vld [vmem:[%s9 + $0x88] sm:$0xff]
    %v5985 = vld [vmem:[%s9 + $0x90] sm:$0xff]
    %v5986 = vld [vmem:[%s9 + $0x98] sm:$0xff]
    %v5987 = vld [vmem:[%s9 + $0xa0] sm:$0xff]
    %v5988 = vld [vmem:[%s9 + $0xa8] sm:$0xff]
    %v5989 = vld [vmem:[%s9 + $0xb0] sm:$0xf]
    %v5992 = vcombine.low %v5964, %v5966
    %v5994 = vunpack.c.l.s4 1966171168
    %v5995 = vunpack.c.0.s8 %v5994
    %v5996 = vlaneseq
    %v5997 = vshrl.u32 %v5996, 7
    %v5998 = vsub.s32 %v5995, %v5997
    %v5999 = vrot.slane %v5992, %v5998
    %v6000 = vcombine.high %v5999, %v5999
    %v6002 = vunpack.c.l.s4 1966171168
    %v6003 = vunpack.c.0.s8 %v6002
    %v6004 = vlaneseq
    %v6005 = vshrl.u32 %v6004, 7
    %v6006 = vsub.s32 %v6003, %v6005
    %v6007 = vrot.slane %v5999, %v6006
    %v6009 = vunpack.c.l.s4 1966171168
    %v6010 = vunpack.c.0.s8 %v6009
    %v6011 = vlaneseq
    %v6012 = vshrl.u32 %v6011, 7
    %v6013 = vsub.s32 %v6010, %v6012
    %v6014 = vrot.slane %v6000, %v6013
    %vm6016 = vcmask 424960
    %v6017 = vsel %vm6016, %v6014, 0
    %v6020 = vsel %vm3544, %v5989, 0
    %6022 = vmatprep.subr.mxu0 0.0
    %6023 = vmatpush1.msra.mxu0 %v5982
    %6024 = vmatprep.subr.mxu0 0.0
    %6025 = vmatpush1.msra.mxu0 %v5981
    %6026 = vmatprep.subr.mxu0 0.0
    %6027 = vmatpush1.msra.mxu0 %v5980
    %6028 = vmatprep.subr.mxu0 0.0
    %6029 = vmatpush1.msra.mxu0 %v5979
    %6030 = vmatprep.subr.mxu0 0.0
    %6031 = vmatpush1.msra.mxu0 %v5978
    %6032 = vmatprep.subr.mxu0 0.0
    %6033 = vmatpush1.msra.mxu0 %v5977
    %6034 = vmatprep.subr.mxu0 0.0
    %6035 = vmatpush1.msra.mxu0 %v5976
    %6036 = vmatprep.subr.mxu0 0.0
    %6037 = vmatpush1.msra.mxu0 %v5975
    %6038 = vmatprep.subr.mxu0 0.0
    %6039 = vmatpush1.msra.mxu0 %v5974
    %6040 = vmatprep.subr.mxu0 0.0
    %6041 = vmatpush1.msra.mxu0 %v5973
    %6042 = vmatprep.subr.mxu0 0.0
    %6043 = vmatpush1.msra.mxu0 %v5972
    %6044 = vmatprep.subr.mxu0 0.0
    %6045 = vmatpush1.msra.mxu0 %v5971
    %6046 = vmatprep.subr.mxu0 0.0
    %6047 = vmatpush1.msra.mxu0 %v5970
    %6048 = vmatprep.subr.mxu0 0.0
    %6049 = vmatpush1.msra.mxu0 %v5969
    %6050 = vmatprep.subr.mxu0 0.0
    %6051 = vmatpush1.msra.mxu0 %v5968
    %6052 = vmatprep.subr.mxu0 0.0
    %6053 = vmatpush1.msra.mxu0 %v5967
    %6054 = vmatprep.subr.mxu0 0.0
    %6055 = vmatpush2.msra.mxu0 0.0
    %6056 = vmatprep.subr.mxu0 0.0
    %6057 = vmatpush2.msra.mxu0 0.0
    %6058 = vmatprep.subr.mxu0 0.0
    %6059 = vmatpush2.msra.mxu0 0.0
    %6060 = vmatprep.subr.mxu0 0.0
    %6061 = vmatpush2.msra.mxu0 0.0
    %6062 = vmatprep.subr.mxu0 0.0
    %6063 = vmatpush2.msra.mxu0 0.0
    %6064 = vmatprep.subr.mxu0 0.0
    %6065 = vmatpush2.msra.mxu0 0.0
    %6066 = vmatprep.subr.mxu0 0.0
    %6067 = vmatpush2.msra.mxu0 0.0
    %6068 = vmatprep.subr.mxu0 0.0
    %6069 = vmatpush2.msra.mxu0 0.0
    %6070 = vmatprep.subr.mxu0 0.0
    %6071 = vmatpush2.msra.mxu0 0.0
    %6072 = vmatprep.subr.mxu0 0.0
    %6073 = vmatpush2.msra.mxu0 %v6020
    %6074 = vmatprep.subr.mxu0 0.0
    %6075 = vmatpush2.msra.mxu0 %v5988
    %6076 = vmatprep.subr.mxu0 0.0
    %6077 = vmatpush2.msra.mxu0 %v5987
    %6078 = vmatprep.subr.mxu0 0.0
    %6079 = vmatpush2.msra.mxu0 %v5986
    %6080 = vmatprep.subr.mxu0 0.0
    %6081 = vmatpush2.msra.mxu0 %v5985
    %6082 = vmatprep.subr.mxu0 0.0
    %6083 = vmatpush2.msra.mxu0 %v5984
    %6084 = vmatprep.subr.mxu0 0.0
    %6085 = vmatpush2.msra.mxu0 %v5983
    %6086 = vmatprep.mubr.f32.mxu0 %v6017
    %6087 = vmatmul.mubr.f32.gmra.mxu0 %v6007
    %v6088 = vpop.f32.mrf.mxu0
    %v6089 = vadd.f32 0.0, %v6088
    %v6090 = vpop.f32.mrf.mxu0
    %6091 = vdwg.mxu0
    %v6094 = vunpack.c.l.s4 1966171168
    %v6095 = vunpack.c.0.s8 %v6094
    %v6096 = vlaneseq
    %v6097 = vshrl.u32 %v6096, 7
    %v6098 = vsub.s32 %v6095, %v6097
    %v6099 = vrot.slane %v6089, %v6098
    %v6100 = vcombine.high %v6099, %v6099
    %v6102 = vunpack.c.l.s4 1966171168
    %v6103 = vunpack.c.0.s8 %v6102
    %v6104 = vlaneseq
    %v6105 = vshrl.u32 %v6104, 7
    %v6106 = vsub.s32 %v6103, %v6105
    %v6107 = vrot.slane %v6099, %v6106
    %v6109 = vunpack.c.l.s4 1966171168
    %v6110 = vunpack.c.0.s8 %v6109
    %v6111 = vlaneseq
    %v6112 = vshrl.u32 %v6111, 7
    %v6113 = vsub.s32 %v6110, %v6112
    %v6114 = vrot.slane %v6100, %v6113
    %vm6117 = vcmask 647168
    %v6118 = vsel %vm6117, %v6107, 0.0
    %v6119 = vsel %vm6117, %v6114, 0.0
    %v6120 = vadd.f32 %v6118, %v6119
    %v6121 = vrot.slane %v6120, 4
    %v6122 = vadd.f32 %v6120, %v6121
    %v6123 = vrot.slane %v6122, 2
    %v6124 = vadd.f32 %v6122, %v6123
    %v6125 = vrot.slane %v6124, 1
    %v6126 = vadd.f32 %v6124, %v6125
    %v6127 = vmul.f32 %v6107, %v6107
    %v6128 = vmul.f32 %v6114, %v6114
    %v6129 = vsel %vm6117, %v6127, 0.0
    %v6130 = vsel %vm6117, %v6128, 0.0
    %v6131 = vadd.f32 %v6129, %v6130
    %v6132 = vrot.slane %v6131, 4
    %v6133 = vadd.f32 %v6131, %v6132
    %v6134 = vrot.slane %v6133, 2
    %v6135 = vadd.f32 %v6133, %v6134
    %v6136 = vrot.slane %v6135, 1
    %v6137 = vadd.f32 %v6135, %v6136
    %v6138 = vmul.f32 %v6126, 0.5
    %v6139 = vmul.f32 %v6137, 0.5
    %v6140 = vmul.f32 %v6138, %v6138
    %v6141 = vsub.f32 %v6139, %v6140
    %v6142 = vld [vmem:[%s10] sm:$0x1]
    %v6143 = vadd.f32 %v6141, 1e-05
    %v6144 = vrsqrt.pop %v6143
    %v6145 = vmul.f32 %v6142, %v6144
    %v6146 = vld [vmem:[%s11] sm:$0x1]
    %v6147 = vmul.f32 %v6138, %v6145
    %v6148 = vsub.f32 %v6146, %v6147
    %v6149 = vmul.f32 %v6107, %v6145
    %v6150 = vmul.f32 %v6114, %v6145
    %v6151 = vadd.f32 %v6149, %v6148
    %v6152 = vadd.f32 %v6150, %v6148
    %v6153 = vmax.f32 %v6151, 0.0
    %v6154 = vmax.f32 %v6152, 0.0
    %v6155 = vld [vmem:[%s12] sm:$0xff]
    %v6156 = vld [vmem:[%s12 + $0x8] sm:$0xff]
    %v6157 = vld [vmem:[%s12 + $0x10] sm:$0xff]
    %v6158 = vld [vmem:[%s12 + $0x18] sm:$0xff]
    %v6159 = vld [vmem:[%s12 + $0x20] sm:$0xff]
    %v6160 = vld [vmem:[%s12 + $0x28] sm:$0xff]
    %v6161 = vld [vmem:[%s12 + $0x30] sm:$0xff]
    %v6162 = vld [vmem:[%s12 + $0x38] sm:$0xff]
    %v6163 = vld [vmem:[%s12 + $0x40] sm:$0xff]
    %v6164 = vld [vmem:[%s12 + $0x48] sm:$0xff]
    %v6165 = vld [vmem:[%s13] sm:$0x1]
    %v6167 = vlaneseq
    %v6168 = vshrl.u32 %v6167, 7
    %v6169 = vsub.s32 0, %v6168
    %v6170 = vrot.slane %v6165, %v6169
    %v6174 = vcombine.low %v6153, %v6154
    %v6176 = vunpack.c.l.s4 1966171168
    %v6177 = vunpack.c.0.s8 %v6176
    %v6178 = vlaneseq
    %v6179 = vshrl.u32 %v6178, 7
    %v6180 = vsub.s32 %v6177, %v6179
    %v6181 = vrot.slane %v6174, %v6180
    %v6183 = vunpack.c.l.s4 1966171168
    %v6184 = vunpack.c.0.s8 %v6183
    %v6185 = vlaneseq
    %v6186 = vshrl.u32 %v6185, 7
    %v6187 = vsub.s32 %v6184, %v6186
    %v6188 = vrot.slane %v6181, %v6187
    %vm6189 = vcmask 654336
    %v6190 = vsel %vm6189, %v6188, 0
    %6192 = vmatprep.subr.mxu0 0.0
    %6193 = vmatpush1.msra.mxu0 0.0
    %6194 = vmatprep.subr.mxu0 0.0
    %6195 = vmatpush1.msra.mxu0 0.0
    %6196 = vmatprep.subr.mxu0 0.0
    %6197 = vmatpush1.msra.mxu0 0.0
    %6198 = vmatprep.subr.mxu0 0.0
    %6199 = vmatpush1.msra.mxu0 0.0
    %6200 = vmatprep.subr.mxu0 0.0
    %6201 = vmatpush1.msra.mxu0 0.0
    %6202 = vmatprep.subr.mxu0 0.0
    %6203 = vmatpush1.msra.mxu0 0.0
    %6204 = vmatprep.subr.mxu0 0.0
    %6205 = vmatpush1.msra.mxu0 %v6164
    %6206 = vmatprep.subr.mxu0 0.0
    %6207 = vmatpush1.msra.mxu0 %v6163
    %6208 = vmatprep.subr.mxu0 0.0
    %6209 = vmatpush1.msra.mxu0 %v6162
    %6210 = vmatprep.subr.mxu0 0.0
    %6211 = vmatpush1.msra.mxu0 %v6161
    %6212 = vmatprep.subr.mxu0 0.0
    %6213 = vmatpush1.msra.mxu0 %v6160
    %6214 = vmatprep.subr.mxu0 0.0
    %6215 = vmatpush1.msra.mxu0 %v6159
    %6216 = vmatprep.subr.mxu0 0.0
    %6217 = vmatpush1.msra.mxu0 %v6158
    %6218 = vmatprep.subr.mxu0 0.0
    %6219 = vmatpush1.msra.mxu0 %v6157
    %6220 = vmatprep.subr.mxu0 0.0
    %6221 = vmatpush1.msra.mxu0 %v6156
    %6222 = vmatprep.subr.mxu0 0.0
    %6223 = vmatpush1.msra.mxu0 %v6155
    %6224 = vmatprep.subr.mxu0 0.0
    %6225 = vmatpush2.msra.mxu0 0.0
    %6226 = vmatprep.subr.mxu0 0.0
    %6227 = vmatpush2.msra.mxu0 0.0
    %6228 = vmatprep.subr.mxu0 0.0
    %6229 = vmatpush2.msra.mxu0 0.0
    %6230 = vmatprep.subr.mxu0 0.0
    %6231 = vmatpush2.msra.mxu0 0.0
    %6232 = vmatprep.subr.mxu0 0.0
    %6233 = vmatpush2.msra.mxu0 0.0
    %6234 = vmatprep.subr.mxu0 0.0
    %6235 = vmatpush2.msra.mxu0 0.0
    %6236 = vmatprep.subr.mxu0 0.0
    %6237 = vmatpush2.msra.mxu0 0.0
    %6238 = vmatprep.subr.mxu0 0.0
    %6239 = vmatpush2.msra.mxu0 0.0
    %6240 = vmatprep.subr.mxu0 0.0
    %6241 = vmatpush2.msra.mxu0 0.0
    %6242 = vmatprep.subr.mxu0 0.0
    %6243 = vmatpush2.msra.mxu0 0.0
    %6244 = vmatprep.subr.mxu0 0.0
    %6245 = vmatpush2.msra.mxu0 0.0
    %6246 = vmatprep.subr.mxu0 0.0
    %6247 = vmatpush2.msra.mxu0 0.0
    %6248 = vmatprep.subr.mxu0 0.0
    %6249 = vmatpush2.msra.mxu0 0.0
    %6250 = vmatprep.subr.mxu0 0.0
    %6251 = vmatpush2.msra.mxu0 0.0
    %6252 = vmatprep.subr.mxu0 0.0
    %6253 = vmatpush2.msra.mxu0 0.0
    %6254 = vmatprep.subr.mxu0 0.0
    %6255 = vmatpush2.msra.mxu0 0.0
    %6256 = vmatprep.mubr.f32.mxu0 0.0
    %6257 = vmatmul.mubr.f32.gmra.mxu0 %v6190
    %v6258 = vpop.f32.mrf.mxu0
    %v6259 = vadd.f32 %v6170, %v6258
    %v6260 = vpop.f32.mrf.mxu0
    %6261 = vdwg.mxu0
    %v6262 = vmax.f32 %v6259, 0.0
    %v6263 = vld [vmem:[%s14] sm:$0xff]
    %v6264 = vld [vmem:[%s14 + $0x8] sm:$0xff]
    %v6265 = vld [vmem:[%s14 + $0x10] sm:$0xff]
    %v6266 = vld [vmem:[%s14 + $0x18] sm:$0xff]
    %v6267 = vld [vmem:[%s14 + $0x20] sm:$0xff]
    %v6268 = vld [vmem:[%s15] sm:$0x1]
    %v6270 = vlaneseq
    %v6271 = vshrl.u32 %v6270, 7
    %v6272 = vsub.s32 0, %v6271
    %v6273 = vrot.slane %v6268, %v6272
    %v6276 = vsel %vm4238, %v6262, 0
    %6278 = vmatprep.subr.mxu0 0.0
    %6279 = vmatpush1.msra.mxu0 0.0
    %6280 = vmatprep.subr.mxu0 0.0
    %6281 = vmatpush1.msra.mxu0 0.0
    %6282 = vmatprep.subr.mxu0 0.0
    %6283 = vmatpush1.msra.mxu0 0.0
    %6284 = vmatprep.subr.mxu0 0.0
    %6285 = vmatpush1.msra.mxu0 0.0
    %6286 = vmatprep.subr.mxu0 0.0
    %6287 = vmatpush1.msra.mxu0 0.0
    %6288 = vmatprep.subr.mxu0 0.0
    %6289 = vmatpush1.msra.mxu0 0.0
    %6290 = vmatprep.subr.mxu0 0.0
    %6291 = vmatpush1.msra.mxu0 0.0
    %6292 = vmatprep.subr.mxu0 0.0
    %6293 = vmatpush1.msra.mxu0 0.0
    %6294 = vmatprep.subr.mxu0 0.0
    %6295 = vmatpush1.msra.mxu0 0.0
    %6296 = vmatprep.subr.mxu0 0.0
    %6297 = vmatpush1.msra.mxu0 0.0
    %6298 = vmatprep.subr.mxu0 0.0
    %6299 = vmatpush1.msra.mxu0 0.0
    %6300 = vmatprep.subr.mxu0 0.0
    %6301 = vmatpush1.msra.mxu0 %v6267
    %6302 = vmatprep.subr.mxu0 0.0
    %6303 = vmatpush1.msra.mxu0 %v6266
    %6304 = vmatprep.subr.mxu0 0.0
    %6305 = vmatpush1.msra.mxu0 %v6265
    %6306 = vmatprep.subr.mxu0 0.0
    %6307 = vmatpush1.msra.mxu0 %v6264
    %6308 = vmatprep.subr.mxu0 0.0
    %6309 = vmatpush1.msra.mxu0 %v6263
    %6310 = vmatprep.subr.mxu0 0.0
    %6311 = vmatpush2.msra.mxu0 0.0
    %6312 = vmatprep.subr.mxu0 0.0
    %6313 = vmatpush2.msra.mxu0 0.0
    %6314 = vmatprep.subr.mxu0 0.0
    %6315 = vmatpush2.msra.mxu0 0.0
    %6316 = vmatprep.subr.mxu0 0.0
    %6317 = vmatpush2.msra.mxu0 0.0
    %6318 = vmatprep.subr.mxu0 0.0
    %6319 = vmatpush2.msra.mxu0 0.0
    %6320 = vmatprep.subr.mxu0 0.0
    %6321 = vmatpush2.msra.mxu0 0.0
    %6322 = vmatprep.subr.mxu0 0.0
    %6323 = vmatpush2.msra.mxu0 0.0
    %6324 = vmatprep.subr.mxu0 0.0
    %6325 = vmatpush2.msra.mxu0 0.0
    %6326 = vmatprep.subr.mxu0 0.0
    %6327 = vmatpush2.msra.mxu0 0.0
    %6328 = vmatprep.subr.mxu0 0.0
    %6329 = vmatpush2.msra.mxu0 0.0
    %6330 = vmatprep.subr.mxu0 0.0
    %6331 = vmatpush2.msra.mxu0 0.0
    %6332 = vmatprep.subr.mxu0 0.0
    %6333 = vmatpush2.msra.mxu0 0.0
    %6334 = vmatprep.subr.mxu0 0.0
    %6335 = vmatpush2.msra.mxu0 0.0
    %6336 = vmatprep.subr.mxu0 0.0
    %6337 = vmatpush2.msra.mxu0 0.0
    %6338 = vmatprep.subr.mxu0 0.0
    %6339 = vmatpush2.msra.mxu0 0.0
    %6340 = vmatprep.subr.mxu0 0.0
    %6341 = vmatpush2.msra.mxu0 0.0
    %6342 = vmatprep.mubr.f32.mxu0 0.0
    %6343 = vmatmul.mubr.f32.gmra.mxu0 %v6276
    %v6344 = vpop.f32.mrf.mxu0
    %v6345 = vadd.f32 %v6273, %v6344
    %v6346 = vpop.f32.mrf.mxu0
    %6347 = vdwg.mxu0
    %vm6348 = vcmask 82944
    %6349 = vst.msk [vmem:[#allocation3] sm:$0x3] %vm6348, %v6345
    // Predicated region
    $region66: #{manifoldnet_forward.1} parent=1 // pred_check
      _
    $region67: #{manifoldnet_forward.1} parent=1 // pred_check_branch
      %6351 = sbr.rel (0) target = $region69
    $region68: #{manifoldnet_forward.1} parent=1 // pred_region
      %s6353 = ssub.s32 32, 32
      %6354 = vsyncadd [#allocation4], %s6353
      %s6356 = sshll.u32 [#allocation3], 4
      %s6357 = int_to_ptr.vmem [resolvable:$true] %s6356
      %6359 = dma.vmem_to_hbm [thread:$0]  %s6357, 32, %s16, [#allocation4]
    $region69: #{manifoldnet_forward.1} parent=1 // pred_fallthru
      _
    // Predicated region
    $region70: #{manifoldnet_forward.1} parent=1 // pred_check
      _
    $region71: #{manifoldnet_forward.1} parent=1 // pred_check_branch
      %6361 = sbr.rel (0) target = $region73
    $region72: #{manifoldnet_forward.1} parent=1 // pred_region
      %6362 = dma.done [#allocation4], 32
    $region73: #{manifoldnet_forward.1} parent=1 // pred_fallthru
      _
    %6363 = vsyncpa [#allocation4], 1

</llo_original>
